<compile_context>
chip_gen: v7x
topology: tpu7x:2x2x1
jax: 0.10.0
libtpu: 0.0.40
codegen_flags: <defaults>
</compile_context>

<pallas_src>
import math

import jax
import jax.numpy as jnp
from jax.experimental import pallas as pl
from jax.experimental.pallas import tpu as pltpu

DIM_MODEL = 768
DIM_FF = 3072


def _ffn_kernel(x_ref, w1_ref, b1_ref, w2_ref, b2_ref, o_ref, acc_ref):
    # x_ref : (tm, DIM_MODEL)  bf16
    # w1_ref: (DIM_MODEL, tf)  bf16      b1_ref: (1, tf)        f32
    # w2_ref: (tf, DIM_MODEL)  bf16      b2_ref: (1, DIM_MODEL) f32
    # o_ref : (tm, DIM_MODEL)  f32       acc_ref: (tm, DIM_MODEL) f32 scratch
    j = pl.program_id(1)

    @pl.when(j == 0)
    def _():
        acc_ref[...] = jnp.zeros_like(acc_ref)

    # fc1 chunk: bf16 x bf16 -> f32 accumulate on the MXU
    h = jnp.dot(x_ref[...], w1_ref[...], preferred_element_type=jnp.float32)
    h = h + b1_ref[...]

    # exact erf-based GELU (matches the PyTorch reference), in f32
    inv_sqrt2 = jnp.float32(1.0 / math.sqrt(2.0))
    h = h * 0.5 * (1.0 + jax.lax.erf(h * inv_sqrt2))

    # fc2 chunk: cast the activation back to bf16 for the MXU, accumulate in f32
    acc_ref[...] += jnp.dot(
        h.astype(w2_ref.dtype), w2_ref[...], preferred_element_type=jnp.float32
    )

    @pl.when(j == pl.num_programs(1) - 1)
    def _():
        o_ref[...] = (acc_ref[...] + b2_ref[...]).astype(o_ref.dtype)


def poswise_ffn(x, w1, b1, w2, b2, *, tm=256, tf=1024):
    """x: [B, S, DIM_MODEL]; weights in [in, out] layout; biases as [1, out]."""
    B, S, D = x.shape
    assert D == DIM_MODEL
    assert DIM_FF % tf == 0

    M = B * S
    # Shrink the row tile for small inputs (keep it a multiple of 16 for bf16
    # sublane packing) so padding does not inflate the FLOP count.
    tm = min(tm, max(16, pl.cdiv(M, 16) * 16))
    m_pad = pl.cdiv(M, tm) * tm

    x2d = x.reshape(M, D)
    if m_pad != M:
        x2d = jnp.pad(x2d, ((0, m_pad - M), (0, 0)))

    # bf16 operands for the MXU / weight DMA; biases stay f32 (added in f32).
    x_bf = x2d.astype(jnp.bfloat16)
    w1_bf = w1.astype(jnp.bfloat16)
    w2_bf = w2.astype(jnp.bfloat16)
    b1_f32 = b1.astype(jnp.float32)
    b2_f32 = b2.astype(jnp.float32)

    out2d = pl.pallas_call(
        _ffn_kernel,
        out_shape=jax.ShapeDtypeStruct((m_pad, D), jnp.float32),
        grid_spec=pltpu.PrefetchScalarGridSpec(
            num_scalar_prefetch=0,
            grid=(m_pad // tm, DIM_FF // tf),
            in_specs=[
                pl.BlockSpec((tm, DIM_MODEL), lambda i, j: (i, 0)),   # x row tile
                pl.BlockSpec((DIM_MODEL, tf), lambda i, j: (0, j)),   # W1 FF slab
                pl.BlockSpec((1, tf), lambda i, j: (0, j)),           # b1 FF slab
                pl.BlockSpec((tf, DIM_MODEL), lambda i, j: (j, 0)),   # W2 FF slab
                pl.BlockSpec((1, DIM_MODEL), lambda i, j: (0, 0)),    # b2
            ],
            out_specs=pl.BlockSpec((tm, DIM_MODEL), lambda i, j: (i, 0)),
            scratch_shapes=[pltpu.VMEM((tm, DIM_MODEL), jnp.float32)],
        ),
        compiler_params=pltpu.CompilerParams(
            dimension_semantics=("parallel", "arbitrary"),
            vmem_limit_bytes=48 << 20,  # legal on v7x (64 MiB physical), ample headroom
        ),
    )(x_bf, w1_bf, b1_f32, w2_bf, b2_f32)

    return out2d[:M].astype(x.dtype).reshape(B, S, D)


def init_params(key):
    """Deterministic init matching nn.Linear's default U(-1/sqrt(fan_in), 1/sqrt(fan_in)).

    Weights are generated directly in [in_features, out_features] layout.
    """
    k1, k2, k3, k4 = jax.random.split(key, 4)
    bound1 = 1.0 / math.sqrt(DIM_MODEL)
    bound2 = 1.0 / math.sqrt(DIM_FF)
    w1 = jax.random.uniform(k1, (DIM_MODEL, DIM_FF), jnp.float32, -bound1, bound1)
    b1 = jax.random.uniform(k2, (1, DIM_FF), jnp.float32, -bound1, bound1)
    w2 = jax.random.uniform(k3, (DIM_FF, DIM_MODEL), jnp.float32, -bound2, bound2)
    b2 = jax.random.uniform(k4, (1, DIM_MODEL), jnp.float32, -bound2, bound2)
    return w1, b1, w2, b2


if __name__ == "__main__":
    key = jax.random.PRNGKey(0)
    kx, kp = jax.random.split(key)

    # Small batch/seq; feature dims are fixed by the module (768 -> 3072 -> 768).
    B, S = 2, 8
    x = jax.random.normal(kx, (B, S, DIM_MODEL), dtype=jnp.float32)
    w1, b1, w2, b2 = init_params(kp)

    out = poswise_ffn(x, w1, b1, w2, b2)
    out = jax.block_until_ready(out)

    # sanity check against plain-JAX f32 reference (tolerance relaxed for bf16 matmuls)
    def ref(xr):
        h = xr @ w1 + b1
        h = h * 0.5 * (1.0 + jax.lax.erf(h / jnp.float32(math.sqrt(2.0))))
        return h @ w2 + b2

    expected = ref(x.reshape(B * S, DIM_MODEL)).reshape(B, S, DIM_MODEL)
    assert out.shape == (B, S, DIM_MODEL)
    assert jnp.allclose(out, expected, atol=3e-2, rtol=3e-2)

    print("KERNEL_OK")
</pallas_src>

<mosaic_0001>
module attributes {stable_mosaic.version = 11 : i64} {
  func.func @_ffn_kernel(%arg0: i32, %arg1: i32, %arg2: memref<16x768xbf16, #tpu.memory_space<vmem>>, %arg3: memref<768x1024xbf16, #tpu.memory_space<vmem>>, %arg4: memref<1x1024xf32, #tpu.memory_space<vmem>>, %arg5: memref<1024x768xbf16, #tpu.memory_space<vmem>>, %arg6: memref<1x768xf32, #tpu.memory_space<vmem>>, %arg7: memref<16x768xf32, #tpu.memory_space<vmem>>, %arg8: memref<16x768xf32, #tpu.memory_space<vmem>>) attributes {dimension_semantics = [#tpu.dimension_semantics<parallel>, #tpu.dimension_semantics<arbitrary>], iteration_bounds = array<i64: 1, 3>, scalar_prefetch = 0 : i64, scratch_operands = 1 : i64, tpu.core_type = #tpu.core_type<tc>, window_params = [{transform_indices = @transform_0, window_bounds = array<i64: 16, 768>}, {transform_indices = @transform_1, window_bounds = array<i64: 768, 1024>}, {transform_indices = @transform_2, window_bounds = array<i64: 1, 1024>}, {transform_indices = @transform_3, window_bounds = array<i64: 1024, 768>}, {pipeline_mode = #tpu.pipeline_mode<synchronous>, transform_indices = @transform_4, window_bounds = array<i64: 1, 768>}, {transform_indices = @transform_5, window_bounds = array<i64: 16, 768>}]} {
    %c0_i32 = arith.constant 0 : i32
    %0 = arith.cmpi eq, %arg1, %c0_i32 : i32
    %1 = arith.extui %0 : i1 to i32
    %c0_i32_0 = arith.constant 0 : i32
    %2 = arith.cmpi ne, %1, %c0_i32_0 : i32
    scf.if %2 {
      %cst_17 = arith.constant 0.000000e+00 : f32
      %26 = vector.broadcast %cst_17 : f32 to vector<16x768xf32>
      %c0_18 = arith.constant 0 : index
      %c0_19 = arith.constant 0 : index
      %27 = vector.load %arg8[%c0_18, %c0_19] : memref<16x768xf32, #tpu.memory_space<vmem>>, vector<16x768xf32>
      tpu.vector_store %arg8[%c0_18, %c0_19], %26 {strides = array<i32>} : memref<16x768xf32, #tpu.memory_space<vmem>>, vector<16x768xf32>,
    } else {
    }
    %c0 = arith.constant 0 : index
    %c0_1 = arith.constant 0 : index
    %3 = vector.load %arg2[%c0, %c0_1] : memref<16x768xbf16, #tpu.memory_space<vmem>>, vector<16x768xbf16>
    %c0_2 = arith.constant 0 : index
    %c0_3 = arith.constant 0 : index
    %4 = vector.load %arg3[%c0_2, %c0_3] : memref<768x1024xbf16, #tpu.memory_space<vmem>>, vector<768x1024xbf16>
    %cst = arith.constant dense<0.000000e+00> : vector<16x1024xf32>
    %5 = tpu.matmul %3, %4, %cst {dimension_numbers = #tpu.dot_dimension_numbers<[1], [0], [0], [1], [0, 0, 1, 1], [], []>} : vector<16x768xbf16>, vector<768x1024xbf16>, vector<16x1024xf32> -> vector<16x1024xf32>
    %c0_4 = arith.constant 0 : index
    %c0_5 = arith.constant 0 : index
    %6 = vector.load %arg4[%c0_4, %c0_5] : memref<1x1024xf32, #tpu.memory_space<vmem>>, vector<1x1024xf32>
    %7 = vector.broadcast %6 : vector<1x1024xf32> to vector<16x1024xf32>
    %8 = arith.addf %5, %7 : vector<16x1024xf32>
    %cst_6 = arith.constant 5.000000e-01 : f32
    %9 = vector.broadcast %cst_6 : f32 to vector<16x1024xf32>
    %10 = arith.mulf %8, %9 : vector<16x1024xf32>
    %cst_7 = arith.constant 0.707106769 : f32
    %11 = vector.broadcast %cst_7 : f32 to vector<16x1024xf32>
    %12 = arith.mulf %8, %11 : vector<16x1024xf32>
    %13 = math.erf %12 : vector<16x1024xf32>
    %cst_8 = arith.constant 1.000000e+00 : f32
    %14 = vector.broadcast %cst_8 : f32 to vector<16x1024xf32>
    %15 = arith.addf %14, %13 : vector<16x1024xf32>
    %16 = arith.mulf %10, %15 : vector<16x1024xf32>
    %c0_9 = arith.constant 0 : index
    %c0_10 = arith.constant 0 : index
    %17 = vector.load %arg8[%c0_9, %c0_10] : memref<16x768xf32, #tpu.memory_space<vmem>>, vector<16x768xf32>
    %18 = arith.truncf %16 : vector<16x1024xf32> to vector<16x1024xbf16>
    %c0_11 = arith.constant 0 : index
    %c0_12 = arith.constant 0 : index
    %19 = vector.load %arg5[%c0_11, %c0_12] : memref<1024x768xbf16, #tpu.memory_space<vmem>>, vector<1024x768xbf16>
    %cst_13 = arith.constant dense<0.000000e+00> : vector<16x768xf32>
    %20 = tpu.matmul %18, %19, %cst_13 {dimension_numbers = #tpu.dot_dimension_numbers<[1], [0], [0], [1], [0, 0, 1, 1], [], []>} : vector<16x1024xbf16>, vector<1024x768xbf16>, vector<16x768xf32> -> vector<16x768xf32>
    %21 = arith.addf %17, %20 : vector<16x768xf32>
    %c0_14 = arith.constant 0 : index
    %c0_15 = arith.constant 0 : index
    %22 = vector.load %arg8[%c0_14, %c0_15] : memref<16x768xf32, #tpu.memory_space<vmem>>, vector<16x768xf32>
    tpu.vector_store %arg8[%c0_14, %c0_15], %21 {strides = array<i32>} : memref<16x768xf32, #tpu.memory_space<vmem>>, vector<16x768xf32>,
    %c2_i32 = arith.constant 2 : i32
    %23 = arith.cmpi eq, %arg1, %c2_i32 : i32
    %24 = arith.extui %23 : i1 to i32
    %c0_i32_16 = arith.constant 0 : i32
    %25 = arith.cmpi ne, %24, %c0_i32_16 : i32
    scf.if %25 {
      %c0_17 = arith.constant 0 : index
      %c0_18 = arith.constant 0 : index
      %26 = vector.load %arg8[%c0_17, %c0_18] : memref<16x768xf32, #tpu.memory_space<vmem>>, vector<16x768xf32>
      %c0_19 = arith.constant 0 : index
      %c0_20 = arith.constant 0 : index
      %27 = vector.load %arg6[%c0_19, %c0_20] : memref<1x768xf32, #tpu.memory_space<vmem>>, vector<1x768xf32>
      %28 = vector.broadcast %27 : vector<1x768xf32> to vector<16x768xf32>
      %29 = arith.addf %26, %28 : vector<16x768xf32>
      %c0_21 = arith.constant 0 : index
      %c0_22 = arith.constant 0 : index
      %30 = vector.load %arg7[%c0_21, %c0_22] : memref<16x768xf32, #tpu.memory_space<vmem>>, vector<16x768xf32>
      tpu.vector_store %arg7[%c0_21, %c0_22], %29 {strides = array<i32>} : memref<16x768xf32, #tpu.memory_space<vmem>>, vector<16x768xf32>,
    } else {
    }
    return
  }
  func.func @transform_0(%arg0: i32, %arg1: i32) -> (i32, i32) {
    %c0_i32 = arith.constant 0 : i32
    %c0_i32_0 = arith.constant 0 : i32
    return %arg0, %c0_i32 : i32, i32
  }
  func.func @transform_1(%arg0: i32, %arg1: i32) -> (i32, i32) {
    %c0_i32 = arith.constant 0 : i32
    %c0_i32_0 = arith.constant 0 : i32
    return %c0_i32, %arg1 : i32, i32
  }
  func.func @transform_2(%arg0: i32, %arg1: i32) -> (i32, i32) {
    %c0_i32 = arith.constant 0 : i32
    %c0_i32_0 = arith.constant 0 : i32
    return %c0_i32, %arg1 : i32, i32
  }
  func.func @transform_3(%arg0: i32, %arg1: i32) -> (i32, i32) {
    %c0_i32 = arith.constant 0 : i32
    %c0_i32_0 = arith.constant 0 : i32
    return %arg1, %c0_i32 : i32, i32
  }
  func.func @transform_4(%arg0: i32, %arg1: i32) -> (i32, i32) {
    %c0_i32 = arith.constant 0 : i32
    %c0_i32_0 = arith.constant 0 : i32
    %c0_i32_1 = arith.constant 0 : i32
    return %c0_i32, %c0_i32_0 : i32, i32
  }
  func.func @transform_5(%arg0: i32, %arg1: i32) -> (i32, i32) {
    %c0_i32 = arith.constant 0 : i32
    %c0_i32_0 = arith.constant 0 : i32
    return %arg0, %c0_i32 : i32, i32
  }
}

</mosaic_0001>

<llo_original>
// kernel: tpu_custom_call.1
$region0: #{tpu_custom_call.1}
  #allocation0 [shape = 'u32[]', space=smem, size = 0x4, offset = 0x4, fixed_abs, tag = 'smem constant byte address 0x4 - core index']
  #allocation1 [shape = 'u32[144,128]{1,0:T(1,128)}', space=vmem, size = 0x12000, scoped, tag = 'internal scratch']
  #allocation2 [shape = 'f32[16,768]{1,0:T(8,128)}', space=vmem, size = 0xc000, scoped, tag = 'scratch operand']
  %s0 = inlined_call_operand.hbm [shape: bf16[16,768], index: 0, kind: input, shape index: {}]
  %s1 = inlined_call_operand.hbm [shape: bf16[768,3072], index: 1, kind: input, shape index: {}]
  %s2 = inlined_call_operand.hbm [shape: f32[1,3072], index: 2, kind: input, shape index: {}]
  %s3 = inlined_call_operand.hbm [shape: bf16[3072,768], index: 3, kind: input, shape index: {}]
  %s4 = inlined_call_operand.hbm [shape: f32[1,768], index: 4, kind: input, shape index: {}]
  %s5 = inlined_call_operand.hbm [shape: f32[16,768], index: 5, kind: output, shape index: {}]
  %s6 = sld [smem:[#allocation0]]
  $region81: #{tpu_custom_call.1} parent=0
    _
  %s8 = ssub.s32 1, %s6
  %s9 = scalar_select 0, %s8, %s6
  $region1: #{tpu_custom_call.1} parent=0
    #allocation3 [shape = 'u8[24576]{0}', space=vmem, size = 0x6000, scoped, tag = 'input window, operand 0, single buffered']
    #allocation4 [shape = 's32[2]{0}', space=sflag, size = 0x8, scoped, tag = 'scoped memory for tpu_custom_call.1']
    #allocation5 [shape = 's32[2]{0}', space=sflag, size = 0x8, scoped, tag = 'scoped memory for tpu_custom_call.1']
    #allocation6 [shape = 'u8[3145728]{0}', space=vmem, size = 0x300000, scoped, tag = 'input window, operand 1']
    #allocation7 [shape = 's32[2]{0}', space=sflag, size = 0x8, scoped, tag = 'scoped memory for tpu_custom_call.1']
    #allocation8 [shape = 'u8[8192]{0}', space=vmem, size = 0x2000, scoped, tag = 'input window, operand 2']
    #allocation9 [shape = 'u8[3145728]{0}', space=vmem, size = 0x300000, scoped, tag = 'input window, operand 3']
    #allocation10 [shape = 's32[2]{0}', space=sflag, size = 0x8, scoped, tag = 'scoped memory for tpu_custom_call.1']
    #allocation11 [shape = 'u8[3072]{0}', space=vmem, size = 0xc00, scoped, tag = 'input window, operand 4, single buffered']
    #allocation12 [shape = 'u8[49152]{0}', space=vmem, size = 0xc000, scoped, tag = 'output window, operand 0, single buffered']
    %10 = vsyncpa [#allocation4], 0
    %11 = vsyncpa [#allocation7], 0
    %s12 = scalar_lea.sflag [#allocation7], 1
    %13 = vsyncpa %s12, 0
    %14 = vsyncpa [#allocation10], 0
    %s15 = scalar_lea.sflag [#allocation10], 1
    %16 = vsyncpa %s15, 0
    %17 = vsyncpa [#allocation5], 0
    loop: start=0, step=1, limit=5
    $region2: #{tpu_custom_call.1} parent=1 // loop_pre_header
      _
    $region3: #{tpu_custom_call.1} parent=1 // loop_header
      %s19 = sphi 0, %s23
      %p20 = scmp.ge.s32.totalorder %s19, 5
      %s26 = sphi 0, %s38
      %s27 = sphi 0, %s34
      %s28 = sphi 0, %s26
      %s29 = sphi 0, %s27
      %s30 = sphi 0, %s28
      %s31 = sphi 0, %s29
      %s41 = sphi 0, %s43
      %s44 = sphi 0, %s41
      %s45 = sphi 0, %s44
      %s61 = sphi 0, %s45
      %s67 = sphi 0, %s69
      %s70 = sphi 0, %s67
      %s71 = sphi 0, %s70
      %s87 = sphi 0, %s71
      %s93 = sphi 0, %s95
      %s96 = sphi 0, %s93
      %s97 = sphi 0, %s96
      %s113 = sphi 0, %s97
      %s119 = sphi 0, %s121
      %s122 = sphi 0, %s119
      %s123 = sphi 0, %s122
      %s139 = sphi 0, %s123
      %s143 = sphi 0, %s143
      %s145 = sphi 0, %s143
      %s146 = sphi 0, %s145
      %s160 = sphi 0, %s146
      %s166 = sphi 0, %s168
      %s169 = sphi 0, %s166
      %s170 = sphi 0, %s169
      %s186 = sphi 0, %s170
    $region4: #{tpu_custom_call.1} parent=1 // loop_header_branch
      %22 = sbr.rel (%p20) target = $region8
    $region5: #{tpu_custom_call.1} parent=1 // loop_body
      %s24 = ssub.s32 %s19, 1
      %s25 = ssub.s32 %s19, 2
      %s32 = sadd.s32 1, %s27
      %p33 = scmp.ge.s32.totalorder %s32, 3
      %s34 = scalar_select %p33, 0, %s32
      %s35 = sadd.s32 1, %s26
      %s36 = scalar_select %p33, %s35, %s26
      %p37 = scmp.ge.s32.totalorder %s36, 1
      %s38 = scalar_select %p37, 0, %s36
      %s39 = ssub.s32 %s26, %s38
      %p40 = scmp.eq.s32.totalorder %s39, 0
      %s42 = sadd.s32 %s41, 1
      %s43 = scalar_select %p40, %s41, %s42
      %p46 = pneg %p40
      %p47 = scmp.eq.s32.totalorder %s19, 2
      %p48 = por %p46, %p47
      %p49 = scmp.ne.s32.totalorder %s41, %s44
      %p50 = scmp.eq.s32.totalorder %s19, 0
      %p51 = por %p49, %p50
      %p52 = scmp.ne.s32.totalorder %s41, %s44
      %p53 = scmp.eq.s32.totalorder %s24, 2
      %p54 = por %p52, %p53
      %p55 = scmp.ne.s32.totalorder %s44, %s45
      %p56 = scmp.eq.s32.totalorder %s24, 0
      %p57 = por %p55, %p56
      %p58 = scmp.ne.s32.totalorder %s44, %s45
      %p59 = scmp.eq.s32.totalorder %s25, 2
      %p60 = por %p58, %p59
      %p62 = scmp.ne.s32.totalorder %s45, %s61
      %p63 = scmp.eq.s32.totalorder %s25, 0
      %p64 = por %p62, %p63
      %s65 = ssub.s32 %s27, %s34
      %p66 = scmp.eq.s32.totalorder %s65, 0
      %s68 = sadd.s32 %s67, 1
      %s69 = scalar_select %p66, %s67, %s68
      %p72 = pneg %p66
      %p73 = scmp.eq.s32.totalorder %s19, 2
      %p74 = por %p72, %p73
      %p75 = scmp.ne.s32.totalorder %s67, %s70
      %p76 = scmp.eq.s32.totalorder %s19, 0
      %p77 = por %p75, %p76
      %p78 = scmp.ne.s32.totalorder %s67, %s70
      %p79 = scmp.eq.s32.totalorder %s24, 2
      %p80 = por %p78, %p79
      %p81 = scmp.ne.s32.totalorder %s70, %s71
      %p82 = scmp.eq.s32.totalorder %s24, 0
      %p83 = por %p81, %p82
      %p84 = scmp.ne.s32.totalorder %s70, %s71
      %p85 = scmp.eq.s32.totalorder %s25, 2
      %p86 = por %p84, %p85
      %p88 = scmp.ne.s32.totalorder %s71, %s87
      %p89 = scmp.eq.s32.totalorder %s25, 0
      %p90 = por %p88, %p89
      %s91 = ssub.s32 %s27, %s34
      %p92 = scmp.eq.s32.totalorder %s91, 0
      %s94 = sadd.s32 %s93, 1
      %s95 = scalar_select %p92, %s93, %s94
      %p98 = pneg %p92
      %p99 = scmp.eq.s32.totalorder %s19, 2
      %p100 = por %p98, %p99
      %p101 = scmp.ne.s32.totalorder %s93, %s96
      %p102 = scmp.eq.s32.totalorder %s19, 0
      %p103 = por %p101, %p102
      %p104 = scmp.ne.s32.totalorder %s93, %s96
      %p105 = scmp.eq.s32.totalorder %s24, 2
      %p106 = por %p104, %p105
      %p107 = scmp.ne.s32.totalorder %s96, %s97
      %p108 = scmp.eq.s32.totalorder %s24, 0
      %p109 = por %p107, %p108
      %p110 = scmp.ne.s32.totalorder %s96, %s97
      %p111 = scmp.eq.s32.totalorder %s25, 2
      %p112 = por %p110, %p111
      %p114 = scmp.ne.s32.totalorder %s97, %s113
      %p115 = scmp.eq.s32.totalorder %s25, 0
      %p116 = por %p114, %p115
      %s117 = ssub.s32 %s27, %s34
      %p118 = scmp.eq.s32.totalorder %s117, 0
      %s120 = sadd.s32 %s119, 1
      %s121 = scalar_select %p118, %s119, %s120
      %p124 = pneg %p118
      %p125 = scmp.eq.s32.totalorder %s19, 2
      %p126 = por %p124, %p125
      %p127 = scmp.ne.s32.totalorder %s119, %s122
      %p128 = scmp.eq.s32.totalorder %s19, 0
      %p129 = por %p127, %p128
      %p130 = scmp.ne.s32.totalorder %s119, %s122
      %p131 = scmp.eq.s32.totalorder %s24, 2
      %p132 = por %p130, %p131
      %p133 = scmp.ne.s32.totalorder %s122, %s123
      %p134 = scmp.eq.s32.totalorder %s24, 0
      %p135 = por %p133, %p134
      %p136 = scmp.ne.s32.totalorder %s122, %s123
      %p137 = scmp.eq.s32.totalorder %s25, 2
      %p138 = por %p136, %p137
      %p140 = scmp.ne.s32.totalorder %s123, %s139
      %p141 = scmp.eq.s32.totalorder %s25, 0
      %p142 = por %p140, %p141
      %s144 = sadd.s32 %s143, 1
      %p147 = scmp.eq.s32.totalorder %s19, 2
      %p148 = scmp.ne.s32.totalorder %s143, %s145
      %p149 = scmp.eq.s32.totalorder %s19, 0
      %p150 = por %p148, %p149
      %p151 = scmp.ne.s32.totalorder %s143, %s145
      %p152 = scmp.eq.s32.totalorder %s24, 2
      %p153 = por %p151, %p152
      %p154 = scmp.ne.s32.totalorder %s145, %s146
      %p155 = scmp.eq.s32.totalorder %s24, 0
      %p156 = por %p154, %p155
      %p157 = scmp.ne.s32.totalorder %s145, %s146
      %p158 = scmp.eq.s32.totalorder %s25, 2
      %p159 = por %p157, %p158
      %p161 = scmp.ne.s32.totalorder %s146, %s160
      %p162 = scmp.eq.s32.totalorder %s25, 0
      %p163 = por %p161, %p162
      %s164 = ssub.s32 %s26, %s38
      %p165 = scmp.eq.s32.totalorder %s164, 0
      %s167 = sadd.s32 %s166, 1
      %s168 = scalar_select %p165, %s166, %s167
      %p171 = pneg %p165
      %p172 = scmp.eq.s32.totalorder %s19, 2
      %p173 = por %p171, %p172
      %p174 = scmp.ne.s32.totalorder %s166, %s169
      %p175 = scmp.eq.s32.totalorder %s19, 0
      %p176 = por %p174, %p175
      %p177 = scmp.ne.s32.totalorder %s166, %s169
      %p178 = scmp.eq.s32.totalorder %s24, 2
      %p179 = por %p177, %p178
      %p180 = scmp.ne.s32.totalorder %s169, %s170
      %p181 = scmp.eq.s32.totalorder %s24, 0
      %p182 = por %p180, %p181
      %p183 = scmp.ne.s32.totalorder %s169, %s170
      %p184 = scmp.eq.s32.totalorder %s25, 2
      %p185 = por %p183, %p184
      %p187 = scmp.ne.s32.totalorder %s170, %s186
      %p188 = scmp.eq.s32.totalorder %s25, 0
      %p189 = por %p187, %p188
      %p190 = scmp.le.s32.totalorder 1, %s19
      %p191 = scmp.lt.s32.totalorder %s19, 4
      %p192 = pnand %p190, %p191
      %p193 = pneg %p192
      // Predicated region
      $region9: #{tpu_custom_call.1} parent=5 // pred_check
        _
      $region10: #{tpu_custom_call.1} parent=5 // pred_check_branch
        %195 = sbr.rel (%p192) target = $region12
      $region11: #{tpu_custom_call.1} parent=5 // pred_region
        %s196 = ssub.s32 %s19, 1
        // Predicated region
        $region13: #{tpu_custom_call.1} parent=11 // pred_check
          %p197 = pneg %p57
        $region14: #{tpu_custom_call.1} parent=11 // pred_check_branch
          %199 = sbr.rel (%p197) target = $region16
        $region15: #{tpu_custom_call.1} parent=11 // pred_region
          %s200 = smul.u32 2, %s28
          %s202 = ssub.s32 768, 768
          %203 = vsyncadd [#allocation4], %s202
          %s204 = smul.addr %s200, 6
          %s205 = smul.addr %s204, 64
          %s206 = scalar_lea.hbm %s0, %s205
          %s207 = sshll.u32 [#allocation3], 4
          %s208 = int_to_ptr.vmem [resolvable:$true] %s207
          %213 = dma.hbm_to_vmem [thread:$0]  %s206, 768, %s208, [#allocation4], 384, 384, 24
        $region16: #{tpu_custom_call.1} parent=11 // pred_fallthru
          _
        // Predicated region
        $region17: #{tpu_custom_call.1} parent=11 // pred_check
          %p214 = pneg %p156
        $region18: #{tpu_custom_call.1} parent=11 // pred_check_branch
          %216 = sbr.rel (%p214) target = $region20
        $region19: #{tpu_custom_call.1} parent=11 // pred_region
          %s218 = ssub.s32 96, 96
          %219 = vsyncadd [#allocation10], %s218
          %s221 = sshll.u32 [#allocation11], 4
          %s222 = int_to_ptr.vmem [resolvable:$true] %s221
          %224 = dma.hbm_to_vmem [thread:$0]  %s4, 96, %s222, [#allocation10]
        $region20: #{tpu_custom_call.1} parent=11 // pred_fallthru
          _
      $region12: #{tpu_custom_call.1} parent=5 // pred_fallthru
        _
      %p225 = scmp.lt.s32.totalorder %s19, 3
      // Predicated region
      $region21: #{tpu_custom_call.1} parent=5 // pred_check
        %p226 = pneg %p225
      $region22: #{tpu_custom_call.1} parent=5 // pred_check_branch
        %228 = sbr.rel (%p226) target = $region24
      $region23: #{tpu_custom_call.1} parent=5 // pred_region
        // Predicated region
        $region25: #{tpu_custom_call.1} parent=23 // pred_check
          %p229 = pneg %p77
        $region26: #{tpu_custom_call.1} parent=23 // pred_check_branch
          %231 = sbr.rel (%p229) target = $region28
        $region27: #{tpu_custom_call.1} parent=23 // pred_region
          %s232 = sand.u32 %s19, 1
          %s233 = scalar_lea.sflag [#allocation7], %s232
          %s234 = sand.u32 %s67, 1
          %s235 = smul.addr %s234, 3072
          %s236 = scalar_lea.vmem [#allocation6], %s235
          %s237 = smul.u32 8, %s27
          %s239 = ssub.s32 49152, 49152
          %240 = vsyncadd %s233, %s239
          %s241 = smul.addr %s237, 64
          %s242 = scalar_lea.hbm %s1, %s241
          %s243 = sshll.u32 %s236, 4
          %s244 = int_to_ptr.vmem [resolvable:$true] %s243
          %249 = dma.hbm_to_vmem [thread:$0]  %s242, 49152, %s244, %s233, 1536, 512, 32
        $region28: #{tpu_custom_call.1} parent=23 // pred_fallthru
          _
        // Predicated region
        $region29: #{tpu_custom_call.1} parent=23 // pred_check
          %p250 = pneg %p103
        $region30: #{tpu_custom_call.1} parent=23 // pred_check_branch
          %252 = sbr.rel (%p250) target = $region32
        $region31: #{tpu_custom_call.1} parent=23 // pred_region
          %s253 = sand.u32 %s19, 1
          %s254 = scalar_lea.sflag [#allocation7], %s253
          %s255 = sand.u32 %s93, 1
          %s256 = smul.addr %s255, 8
          %s257 = scalar_lea.vmem [#allocation8], %s256
          %s258 = smul.u32 8, %s27
          %s260 = ssub.s32 128, 128
          %261 = vsyncadd %s254, %s260
          %s262 = smul.addr %s258, 16
          %s263 = scalar_lea.hbm %s2, %s262
          %s265 = sshll.u32 %s257, 4
          %s266 = int_to_ptr.vmem [resolvable:$true] %s265
          %268 = dma.hbm_to_vmem [thread:$0]  %s263, 128, %s266, %s254
        $region32: #{tpu_custom_call.1} parent=23 // pred_fallthru
          _
        // Predicated region
        $region33: #{tpu_custom_call.1} parent=23 // pred_check
          %p269 = pneg %p129
        $region34: #{tpu_custom_call.1} parent=23 // pred_check_branch
          %271 = sbr.rel (%p269) target = $region36
        $region35: #{tpu_custom_call.1} parent=23 // pred_region
          %s272 = sand.u32 %s19, 1
          %s273 = scalar_lea.sflag [#allocation10], %s272
          %s274 = sand.u32 %s119, 1
          %s275 = smul.addr %s274, 3072
          %s276 = scalar_lea.vmem [#allocation9], %s275
          %s277 = smul.u32 128, %s27
          %s279 = ssub.s32 49152, 49152
          %280 = vsyncadd %s273, %s279
          %s281 = smul.addr %s277, 6
          %s282 = smul.addr %s281, 64
          %s283 = scalar_lea.hbm %s3, %s282
          %s284 = sshll.u32 %s276, 4
          %s285 = int_to_ptr.vmem [resolvable:$true] %s284
          %290 = dma.hbm_to_vmem [thread:$0]  %s283, 49152, %s285, %s273, 384, 384, 24
        $region36: #{tpu_custom_call.1} parent=23 // pred_fallthru
          _
      $region24: #{tpu_custom_call.1} parent=5 // pred_fallthru
        _
      %p291 = scmp.le.s32.totalorder 1, %s19
      %p292 = scmp.lt.s32.totalorder %s19, 4
      %p293 = pnand %p291, %p292
      %p294 = pneg %p293
      // Predicated region
      $region37: #{tpu_custom_call.1} parent=5 // pred_check
        _
      $region38: #{tpu_custom_call.1} parent=5 // pred_check_branch
        %296 = sbr.rel (%p293) target = $region40
      $region39: #{tpu_custom_call.1} parent=5 // pred_region
        %s297 = ssub.s32 %s19, 1
        // Predicated region
        $region41: #{tpu_custom_call.1} parent=39 // pred_check
          %p298 = pneg %p57
        $region42: #{tpu_custom_call.1} parent=39 // pred_check_branch
          %300 = sbr.rel (%p298) target = $region44
        $region43: #{tpu_custom_call.1} parent=39 // pred_region
          %301 = dma.done [#allocation4], 768
        $region44: #{tpu_custom_call.1} parent=39 // pred_fallthru
          _
        %s302 = sand.u32 %s24, 1
        %s303 = scalar_lea.sflag [#allocation7], %s302
        %s304 = sand.u32 %s70, 1
        %s305 = smul.addr %s304, 3072
        %s306 = scalar_lea.vmem [#allocation6], %s305
        // Predicated region
        $region45: #{tpu_custom_call.1} parent=39 // pred_check
          %p307 = pneg %p83
        $region46: #{tpu_custom_call.1} parent=39 // pred_check_branch
          %309 = sbr.rel (%p307) target = $region48
        $region47: #{tpu_custom_call.1} parent=39 // pred_region
          %310 = dma.done %s303, 49152
        $region48: #{tpu_custom_call.1} parent=39 // pred_fallthru
          _
        %s311 = sand.u32 %s24, 1
        %s312 = scalar_lea.sflag [#allocation7], %s311
        %s313 = sand.u32 %s96, 1
        %s314 = smul.addr %s313, 8
        %s315 = scalar_lea.vmem [#allocation8], %s314
        // Predicated region
        $region49: #{tpu_custom_call.1} parent=39 // pred_check
          %p316 = pneg %p109
        $region50: #{tpu_custom_call.1} parent=39 // pred_check_branch
          %318 = sbr.rel (%p316) target = $region52
        $region51: #{tpu_custom_call.1} parent=39 // pred_region
          %319 = dma.done %s312, 128
        $region52: #{tpu_custom_call.1} parent=39 // pred_fallthru
          _
        %s320 = sand.u32 %s24, 1
        %s321 = scalar_lea.sflag [#allocation10], %s320
        %s322 = sand.u32 %s122, 1
        %s323 = smul.addr %s322, 3072
        %s324 = scalar_lea.vmem [#allocation9], %s323
        // Predicated region
        $region53: #{tpu_custom_call.1} parent=39 // pred_check
          %p325 = pneg %p135
        $region54: #{tpu_custom_call.1} parent=39 // pred_check_branch
          %327 = sbr.rel (%p325) target = $region56
        $region55: #{tpu_custom_call.1} parent=39 // pred_region
          %328 = dma.done %s321, 49152
        $region56: #{tpu_custom_call.1} parent=39 // pred_fallthru
          _
        // Predicated region
        $region57: #{tpu_custom_call.1} parent=39 // pred_check
          %p329 = pneg %p156
        $region58: #{tpu_custom_call.1} parent=39 // pred_check_branch
          %331 = sbr.rel (%p329) target = $region60
        $region59: #{tpu_custom_call.1} parent=39 // pred_region
          %332 = dma.done [#allocation10], 96
        $region60: #{tpu_custom_call.1} parent=39 // pred_fallthru
          _
        %p333 = pneg %p57
        %p334 = pneg %p54
        %s335 = sand.u32 %s24, 1
        %s336 = scalar_lea.sflag [#allocation7], %s335
        %s337 = sand.u32 %s70, 1
        %s338 = smul.addr %s337, 3072
        %s339 = scalar_lea.vmem [#allocation6], %s338
        %p340 = pneg %p83
        %p341 = pneg %p80
        %s342 = sand.u32 %s24, 1
        %s343 = scalar_lea.sflag [#allocation7], %s342
        %s344 = sand.u32 %s96, 1
        %s345 = smul.addr %s344, 8
        %s346 = scalar_lea.vmem [#allocation8], %s345
        %p347 = pneg %p109
        %p348 = pneg %p106
        %s349 = sand.u32 %s24, 1
        %s350 = scalar_lea.sflag [#allocation10], %s349
        %s351 = sand.u32 %s122, 1
        %s352 = smul.addr %s351, 3072
        %s353 = scalar_lea.vmem [#allocation9], %s352
        %p354 = pneg %p135
        %p355 = pneg %p132
        %p356 = pneg %p156
        %p357 = pneg %p153
        %p358 = pneg %p182
        %p359 = pneg %p179
        %s360 = smul.u32 2, %s28
        %s361 = smul.u32 8, %s29
        %s362 = smul.u32 8, %s29
        %s363 = smul.u32 128, %s29
        %s364 = smul.u32 2, %s28
        %p365 = scmp.eq.s32.totalorder %s29, 0
        // Predicated region
        $region61: #{tpu_custom_call.1} parent=39 // pred_check
          %p366 = pneg %p365
        $region62: #{tpu_custom_call.1} parent=39 // pred_check_branch
          %368 = sbr.rel (%p366) target = $region64
        $region63: #{tpu_custom_call.1} parent=39 // pred_region
          %369 = vst [vmem:[#allocation2] sm:$0xff] 0.0
          %370 = vst [vmem:[#allocation2 + $0x8] sm:$0xff] 0.0
          %371 = vst [vmem:[#allocation2 + $0x10] sm:$0xff] 0.0
          %372 = vst [vmem:[#allocation2 + $0x18] sm:$0xff] 0.0
          %373 = vst [vmem:[#allocation2 + $0x20] sm:$0xff] 0.0
          %374 = vst [vmem:[#allocation2 + $0x28] sm:$0xff] 0.0
          %375 = vst [vmem:[#allocation2 + $0x30] sm:$0xff] 0.0
          %376 = vst [vmem:[#allocation2 + $0x38] sm:$0xff] 0.0
          %377 = vst [vmem:[#allocation2 + $0x40] sm:$0xff] 0.0
          %378 = vst [vmem:[#allocation2 + $0x48] sm:$0xff] 0.0
          %379 = vst [vmem:[#allocation2 + $0x50] sm:$0xff] 0.0
          %380 = vst [vmem:[#allocation2 + $0x58] sm:$0xff] 0.0
        $region64: #{tpu_custom_call.1} parent=39 // pred_fallthru
          _
        %v381 = vld [vmem:[#allocation3] sm:$0xff]
        %v382 = vld [vmem:[#allocation3 + $0x8] sm:$0xff]
        %v383 = vld [vmem:[#allocation3 + $0x10] sm:$0xff]
        %v384 = vld [vmem:[#allocation3 + $0x18] sm:$0xff]
        %v385 = vld [vmem:[#allocation3 + $0x20] sm:$0xff]
        %v386 = vld [vmem:[#allocation3 + $0x28] sm:$0xff]
        %v387 = vld [vmem:[%s306] sm:$0xff]
        %v388 = vld [vmem:[%s306 + $0x8] sm:$0xff]
        %v389 = vld [vmem:[%s306 + $0x10] sm:$0xff]
        %v390 = vld [vmem:[%s306 + $0x18] sm:$0xff]
        %v391 = vld [vmem:[%s306 + $0x20] sm:$0xff]
        %v392 = vld [vmem:[%s306 + $0x28] sm:$0xff]
        %v393 = vld [vmem:[%s306 + $0x30] sm:$0xff]
        %v394 = vld [vmem:[%s306 + $0x38] sm:$0xff]
        %v395 = vld [vmem:[%s306 + $0x40] sm:$0xff]
        %v396 = vld [vmem:[%s306 + $0x48] sm:$0xff]
        %v397 = vld [vmem:[%s306 + $0x50] sm:$0xff]
        %v398 = vld [vmem:[%s306 + $0x58] sm:$0xff]
        %v399 = vld [vmem:[%s306 + $0x60] sm:$0xff]
        %v400 = vld [vmem:[%s306 + $0x68] sm:$0xff]
        %v401 = vld [vmem:[%s306 + $0x70] sm:$0xff]
        %v402 = vld [vmem:[%s306 + $0x78] sm:$0xff]
        %v403 = vld [vmem:[%s306 + $0x80] sm:$0xff]
        %v404 = vld [vmem:[%s306 + $0x88] sm:$0xff]
        %v405 = vld [vmem:[%s306 + $0x90] sm:$0xff]
        %v406 = vld [vmem:[%s306 + $0x98] sm:$0xff]
        %v407 = vld [vmem:[%s306 + $0xa0] sm:$0xff]
        %v408 = vld [vmem:[%s306 + $0xa8] sm:$0xff]
        %v409 = vld [vmem:[%s306 + $0xb0] sm:$0xff]
        %v410 = vld [vmem:[%s306 + $0xb8] sm:$0xff]
        %v411 = vld [vmem:[%s306 + $0xc0] sm:$0xff]
        %v412 = vld [vmem:[%s306 + $0xc8] sm:$0xff]
        %v413 = vld [vmem:[%s306 + $0xd0] sm:$0xff]
        %v414 = vld [vmem:[%s306 + $0xd8] sm:$0xff]
        %v415 = vld [vmem:[%s306 + $0xe0] sm:$0xff]
        %v416 = vld [vmem:[%s306 + $0xe8] sm:$0xff]
        %v417 = vld [vmem:[%s306 + $0xf0] sm:$0xff]
        %v418 = vld [vmem:[%s306 + $0xf8] sm:$0xff]
        %v419 = vld [vmem:[%s306 + $0x100] sm:$0xff]
        %v420 = vld [vmem:[%s306 + $0x108] sm:$0xff]
        %v421 = vld [vmem:[%s306 + $0x110] sm:$0xff]
        %v422 = vld [vmem:[%s306 + $0x118] sm:$0xff]
        %v423 = vld [vmem:[%s306 + $0x120] sm:$0xff]
        %v424 = vld [vmem:[%s306 + $0x128] sm:$0xff]
        %v425 = vld [vmem:[%s306 + $0x130] sm:$0xff]
        %v426 = vld [vmem:[%s306 + $0x138] sm:$0xff]
        %v427 = vld [vmem:[%s306 + $0x140] sm:$0xff]
        %v428 = vld [vmem:[%s306 + $0x148] sm:$0xff]
        %v429 = vld [vmem:[%s306 + $0x150] sm:$0xff]
        %v430 = vld [vmem:[%s306 + $0x158] sm:$0xff]
        %v431 = vld [vmem:[%s306 + $0x160] sm:$0xff]
        %v432 = vld [vmem:[%s306 + $0x168] sm:$0xff]
        %v433 = vld [vmem:[%s306 + $0x170] sm:$0xff]
        %v434 = vld [vmem:[%s306 + $0x178] sm:$0xff]
        %v435 = vld [vmem:[%s306 + $0x180] sm:$0xff]
        %v436 = vld [vmem:[%s306 + $0x188] sm:$0xff]
        %v437 = vld [vmem:[%s306 + $0x190] sm:$0xff]
        %v438 = vld [vmem:[%s306 + $0x198] sm:$0xff]
        %v439 = vld [vmem:[%s306 + $0x1a0] sm:$0xff]
        %v440 = vld [vmem:[%s306 + $0x1a8] sm:$0xff]
        %v441 = vld [vmem:[%s306 + $0x1b0] sm:$0xff]
        %v442 = vld [vmem:[%s306 + $0x1b8] sm:$0xff]
        %v443 = vld [vmem:[%s306 + $0x1c0] sm:$0xff]
        %v444 = vld [vmem:[%s306 + $0x1c8] sm:$0xff]
        %v445 = vld [vmem:[%s306 + $0x1d0] sm:$0xff]
        %v446 = vld [vmem:[%s306 + $0x1d8] sm:$0xff]
        %v447 = vld [vmem:[%s306 + $0x1e0] sm:$0xff]
        %v448 = vld [vmem:[%s306 + $0x1e8] sm:$0xff]
        %v449 = vld [vmem:[%s306 + $0x1f0] sm:$0xff]
        %v450 = vld [vmem:[%s306 + $0x1f8] sm:$0xff]
        %v451 = vld [vmem:[%s306 + $0x200] sm:$0xff]
        %v452 = vld [vmem:[%s306 + $0x208] sm:$0xff]
        %v453 = vld [vmem:[%s306 + $0x210] sm:$0xff]
        %v454 = vld [vmem:[%s306 + $0x218] sm:$0xff]
        %v455 = vld [vmem:[%s306 + $0x220] sm:$0xff]
        %v456 = vld [vmem:[%s306 + $0x228] sm:$0xff]
        %v457 = vld [vmem:[%s306 + $0x230] sm:$0xff]
        %v458 = vld [vmem:[%s306 + $0x238] sm:$0xff]
        %v459 = vld [vmem:[%s306 + $0x240] sm:$0xff]
        %v460 = vld [vmem:[%s306 + $0x248] sm:$0xff]
        %v461 = vld [vmem:[%s306 + $0x250] sm:$0xff]
        %v462 = vld [vmem:[%s306 + $0x258] sm:$0xff]
        %v463 = vld [vmem:[%s306 + $0x260] sm:$0xff]
        %v464 = vld [vmem:[%s306 + $0x268] sm:$0xff]
        %v465 = vld [vmem:[%s306 + $0x270] sm:$0xff]
        %v466 = vld [vmem:[%s306 + $0x278] sm:$0xff]
        %v467 = vld [vmem:[%s306 + $0x280] sm:$0xff]
        %v468 = vld [vmem:[%s306 + $0x288] sm:$0xff]
        %v469 = vld [vmem:[%s306 + $0x290] sm:$0xff]
        %v470 = vld [vmem:[%s306 + $0x298] sm:$0xff]
        %v471 = vld [vmem:[%s306 + $0x2a0] sm:$0xff]
        %v472 = vld [vmem:[%s306 + $0x2a8] sm:$0xff]
        %v473 = vld [vmem:[%s306 + $0x2b0] sm:$0xff]
        %v474 = vld [vmem:[%s306 + $0x2b8] sm:$0xff]
        %v475 = vld [vmem:[%s306 + $0x2c0] sm:$0xff]
        %v476 = vld [vmem:[%s306 + $0x2c8] sm:$0xff]
        %v477 = vld [vmem:[%s306 + $0x2d0] sm:$0xff]
        %v478 = vld [vmem:[%s306 + $0x2d8] sm:$0xff]
        %v479 = vld [vmem:[%s306 + $0x2e0] sm:$0xff]
        %v480 = vld [vmem:[%s306 + $0x2e8] sm:$0xff]
        %v481 = vld [vmem:[%s306 + $0x2f0] sm:$0xff]
        %v482 = vld [vmem:[%s306 + $0x2f8] sm:$0xff]
        %v483 = vld [vmem:[%s306 + $0x300] sm:$0xff]
        %v484 = vld [vmem:[%s306 + $0x308] sm:$0xff]
        %v485 = vld [vmem:[%s306 + $0x310] sm:$0xff]
        %v486 = vld [vmem:[%s306 + $0x318] sm:$0xff]
        %v487 = vld [vmem:[%s306 + $0x320] sm:$0xff]
        %v488 = vld [vmem:[%s306 + $0x328] sm:$0xff]
        %v489 = vld [vmem:[%s306 + $0x330] sm:$0xff]
        %v490 = vld [vmem:[%s306 + $0x338] sm:$0xff]
        %v491 = vld [vmem:[%s306 + $0x340] sm:$0xff]
        %v492 = vld [vmem:[%s306 + $0x348] sm:$0xff]
        %v493 = vld [vmem:[%s306 + $0x350] sm:$0xff]
        %v494 = vld [vmem:[%s306 + $0x358] sm:$0xff]
        %v495 = vld [vmem:[%s306 + $0x360] sm:$0xff]
        %v496 = vld [vmem:[%s306 + $0x368] sm:$0xff]
        %v497 = vld [vmem:[%s306 + $0x370] sm:$0xff]
        %v498 = vld [vmem:[%s306 + $0x378] sm:$0xff]
        %v499 = vld [vmem:[%s306 + $0x380] sm:$0xff]
        %v500 = vld [vmem:[%s306 + $0x388] sm:$0xff]
        %v501 = vld [vmem:[%s306 + $0x390] sm:$0xff]
        %v502 = vld [vmem:[%s306 + $0x398] sm:$0xff]
        %v503 = vld [vmem:[%s306 + $0x3a0] sm:$0xff]
        %v504 = vld [vmem:[%s306 + $0x3a8] sm:$0xff]
        %v505 = vld [vmem:[%s306 + $0x3b0] sm:$0xff]
        %v506 = vld [vmem:[%s306 + $0x3b8] sm:$0xff]
        %v507 = vld [vmem:[%s306 + $0x3c0] sm:$0xff]
        %v508 = vld [vmem:[%s306 + $0x3c8] sm:$0xff]
        %v509 = vld [vmem:[%s306 + $0x3d0] sm:$0xff]
        %v510 = vld [vmem:[%s306 + $0x3d8] sm:$0xff]
        %v511 = vld [vmem:[%s306 + $0x3e0] sm:$0xff]
        %v512 = vld [vmem:[%s306 + $0x3e8] sm:$0xff]
        %v513 = vld [vmem:[%s306 + $0x3f0] sm:$0xff]
        %v514 = vld [vmem:[%s306 + $0x3f8] sm:$0xff]
        %v515 = vld [vmem:[%s306 + $0x400] sm:$0xff]
        %v516 = vld [vmem:[%s306 + $0x408] sm:$0xff]
        %v517 = vld [vmem:[%s306 + $0x410] sm:$0xff]
        %v518 = vld [vmem:[%s306 + $0x418] sm:$0xff]
        %v519 = vld [vmem:[%s306 + $0x420] sm:$0xff]
        %v520 = vld [vmem:[%s306 + $0x428] sm:$0xff]
        %v521 = vld [vmem:[%s306 + $0x430] sm:$0xff]
        %v522 = vld [vmem:[%s306 + $0x438] sm:$0xff]
        %v523 = vld [vmem:[%s306 + $0x440] sm:$0xff]
        %v524 = vld [vmem:[%s306 + $0x448] sm:$0xff]
        %v525 = vld [vmem:[%s306 + $0x450] sm:$0xff]
        %v526 = vld [vmem:[%s306 + $0x458] sm:$0xff]
        %v527 = vld [vmem:[%s306 + $0x460] sm:$0xff]
        %v528 = vld [vmem:[%s306 + $0x468] sm:$0xff]
        %v529 = vld [vmem:[%s306 + $0x470] sm:$0xff]
        %v530 = vld [vmem:[%s306 + $0x478] sm:$0xff]
        %v531 = vld [vmem:[%s306 + $0x480] sm:$0xff]
        %v532 = vld [vmem:[%s306 + $0x488] sm:$0xff]
        %v533 = vld [vmem:[%s306 + $0x490] sm:$0xff]
        %v534 = vld [vmem:[%s306 + $0x498] sm:$0xff]
        %v535 = vld [vmem:[%s306 + $0x4a0] sm:$0xff]
        %v536 = vld [vmem:[%s306 + $0x4a8] sm:$0xff]
        %v537 = vld [vmem:[%s306 + $0x4b0] sm:$0xff]
        %v538 = vld [vmem:[%s306 + $0x4b8] sm:$0xff]
        %v539 = vld [vmem:[%s306 + $0x4c0] sm:$0xff]
        %v540 = vld [vmem:[%s306 + $0x4c8] sm:$0xff]
        %v541 = vld [vmem:[%s306 + $0x4d0] sm:$0xff]
        %v542 = vld [vmem:[%s306 + $0x4d8] sm:$0xff]
        %v543 = vld [vmem:[%s306 + $0x4e0] sm:$0xff]
        %v544 = vld [vmem:[%s306 + $0x4e8] sm:$0xff]
        %v545 = vld [vmem:[%s306 + $0x4f0] sm:$0xff]
        %v546 = vld [vmem:[%s306 + $0x4f8] sm:$0xff]
        %v547 = vld [vmem:[%s306 + $0x500] sm:$0xff]
        %v548 = vld [vmem:[%s306 + $0x508] sm:$0xff]
        %v549 = vld [vmem:[%s306 + $0x510] sm:$0xff]
        %v550 = vld [vmem:[%s306 + $0x518] sm:$0xff]
        %v551 = vld [vmem:[%s306 + $0x520] sm:$0xff]
        %v552 = vld [vmem:[%s306 + $0x528] sm:$0xff]
        %v553 = vld [vmem:[%s306 + $0x530] sm:$0xff]
        %v554 = vld [vmem:[%s306 + $0x538] sm:$0xff]
        %v555 = vld [vmem:[%s306 + $0x540] sm:$0xff]
        %v556 = vld [vmem:[%s306 + $0x548] sm:$0xff]
        %v557 = vld [vmem:[%s306 + $0x550] sm:$0xff]
        %v558 = vld [vmem:[%s306 + $0x558] sm:$0xff]
        %v559 = vld [vmem:[%s306 + $0x560] sm:$0xff]
        %v560 = vld [vmem:[%s306 + $0x568] sm:$0xff]
        %v561 = vld [vmem:[%s306 + $0x570] sm:$0xff]
        %v562 = vld [vmem:[%s306 + $0x578] sm:$0xff]
        %v563 = vld [vmem:[%s306 + $0x580] sm:$0xff]
        %v564 = vld [vmem:[%s306 + $0x588] sm:$0xff]
        %v565 = vld [vmem:[%s306 + $0x590] sm:$0xff]
        %v566 = vld [vmem:[%s306 + $0x598] sm:$0xff]
        %v567 = vld [vmem:[%s306 + $0x5a0] sm:$0xff]
        %v568 = vld [vmem:[%s306 + $0x5a8] sm:$0xff]
        %v569 = vld [vmem:[%s306 + $0x5b0] sm:$0xff]
        %v570 = vld [vmem:[%s306 + $0x5b8] sm:$0xff]
        %v571 = vld [vmem:[%s306 + $0x5c0] sm:$0xff]
        %v572 = vld [vmem:[%s306 + $0x5c8] sm:$0xff]
        %v573 = vld [vmem:[%s306 + $0x5d0] sm:$0xff]
        %v574 = vld [vmem:[%s306 + $0x5d8] sm:$0xff]
        %v575 = vld [vmem:[%s306 + $0x5e0] sm:$0xff]
        %v576 = vld [vmem:[%s306 + $0x5e8] sm:$0xff]
        %v577 = vld [vmem:[%s306 + $0x5f0] sm:$0xff]
        %v578 = vld [vmem:[%s306 + $0x5f8] sm:$0xff]
        %v579 = vld [vmem:[%s306 + $0x600] sm:$0xff]
        %v580 = vld [vmem:[%s306 + $0x608] sm:$0xff]
        %v581 = vld [vmem:[%s306 + $0x610] sm:$0xff]
        %v582 = vld [vmem:[%s306 + $0x618] sm:$0xff]
        %v583 = vld [vmem:[%s306 + $0x620] sm:$0xff]
        %v584 = vld [vmem:[%s306 + $0x628] sm:$0xff]
        %v585 = vld [vmem:[%s306 + $0x630] sm:$0xff]
        %v586 = vld [vmem:[%s306 + $0x638] sm:$0xff]
        %v587 = vld [vmem:[%s306 + $0x640] sm:$0xff]
        %v588 = vld [vmem:[%s306 + $0x648] sm:$0xff]
        %v589 = vld [vmem:[%s306 + $0x650] sm:$0xff]
        %v590 = vld [vmem:[%s306 + $0x658] sm:$0xff]
        %v591 = vld [vmem:[%s306 + $0x660] sm:$0xff]
        %v592 = vld [vmem:[%s306 + $0x668] sm:$0xff]
        %v593 = vld [vmem:[%s306 + $0x670] sm:$0xff]
        %v594 = vld [vmem:[%s306 + $0x678] sm:$0xff]
        %v595 = vld [vmem:[%s306 + $0x680] sm:$0xff]
        %v596 = vld [vmem:[%s306 + $0x688] sm:$0xff]
        %v597 = vld [vmem:[%s306 + $0x690] sm:$0xff]
        %v598 = vld [vmem:[%s306 + $0x698] sm:$0xff]
        %v599 = vld [vmem:[%s306 + $0x6a0] sm:$0xff]
        %v600 = vld [vmem:[%s306 + $0x6a8] sm:$0xff]
        %v601 = vld [vmem:[%s306 + $0x6b0] sm:$0xff]
        %v602 = vld [vmem:[%s306 + $0x6b8] sm:$0xff]
        %v603 = vld [vmem:[%s306 + $0x6c0] sm:$0xff]
        %v604 = vld [vmem:[%s306 + $0x6c8] sm:$0xff]
        %v605 = vld [vmem:[%s306 + $0x6d0] sm:$0xff]
        %v606 = vld [vmem:[%s306 + $0x6d8] sm:$0xff]
        %v607 = vld [vmem:[%s306 + $0x6e0] sm:$0xff]
        %v608 = vld [vmem:[%s306 + $0x6e8] sm:$0xff]
        %v609 = vld [vmem:[%s306 + $0x6f0] sm:$0xff]
        %v610 = vld [vmem:[%s306 + $0x6f8] sm:$0xff]
        %v611 = vld [vmem:[%s306 + $0x700] sm:$0xff]
        %v612 = vld [vmem:[%s306 + $0x708] sm:$0xff]
        %v613 = vld [vmem:[%s306 + $0x710] sm:$0xff]
        %v614 = vld [vmem:[%s306 + $0x718] sm:$0xff]
        %v615 = vld [vmem:[%s306 + $0x720] sm:$0xff]
        %v616 = vld [vmem:[%s306 + $0x728] sm:$0xff]
        %v617 = vld [vmem:[%s306 + $0x730] sm:$0xff]
        %v618 = vld [vmem:[%s306 + $0x738] sm:$0xff]
        %v619 = vld [vmem:[%s306 + $0x740] sm:$0xff]
        %v620 = vld [vmem:[%s306 + $0x748] sm:$0xff]
        %v621 = vld [vmem:[%s306 + $0x750] sm:$0xff]
        %v622 = vld [vmem:[%s306 + $0x758] sm:$0xff]
        %v623 = vld [vmem:[%s306 + $0x760] sm:$0xff]
        %v624 = vld [vmem:[%s306 + $0x768] sm:$0xff]
        %v625 = vld [vmem:[%s306 + $0x770] sm:$0xff]
        %v626 = vld [vmem:[%s306 + $0x778] sm:$0xff]
        %v627 = vld [vmem:[%s306 + $0x780] sm:$0xff]
        %v628 = vld [vmem:[%s306 + $0x788] sm:$0xff]
        %v629 = vld [vmem:[%s306 + $0x790] sm:$0xff]
        %v630 = vld [vmem:[%s306 + $0x798] sm:$0xff]
        %v631 = vld [vmem:[%s306 + $0x7a0] sm:$0xff]
        %v632 = vld [vmem:[%s306 + $0x7a8] sm:$0xff]
        %v633 = vld [vmem:[%s306 + $0x7b0] sm:$0xff]
        %v634 = vld [vmem:[%s306 + $0x7b8] sm:$0xff]
        %v635 = vld [vmem:[%s306 + $0x7c0] sm:$0xff]
        %v636 = vld [vmem:[%s306 + $0x7c8] sm:$0xff]
        %v637 = vld [vmem:[%s306 + $0x7d0] sm:$0xff]
        %v638 = vld [vmem:[%s306 + $0x7d8] sm:$0xff]
        %v639 = vld [vmem:[%s306 + $0x7e0] sm:$0xff]
        %v640 = vld [vmem:[%s306 + $0x7e8] sm:$0xff]
        %v641 = vld [vmem:[%s306 + $0x7f0] sm:$0xff]
        %v642 = vld [vmem:[%s306 + $0x7f8] sm:$0xff]
        %v643 = vld [vmem:[%s306 + $0x800] sm:$0xff]
        %v644 = vld [vmem:[%s306 + $0x808] sm:$0xff]
        %v645 = vld [vmem:[%s306 + $0x810] sm:$0xff]
        %v646 = vld [vmem:[%s306 + $0x818] sm:$0xff]
        %v647 = vld [vmem:[%s306 + $0x820] sm:$0xff]
        %v648 = vld [vmem:[%s306 + $0x828] sm:$0xff]
        %v649 = vld [vmem:[%s306 + $0x830] sm:$0xff]
        %v650 = vld [vmem:[%s306 + $0x838] sm:$0xff]
        %v651 = vld [vmem:[%s306 + $0x840] sm:$0xff]
        %v652 = vld [vmem:[%s306 + $0x848] sm:$0xff]
        %v653 = vld [vmem:[%s306 + $0x850] sm:$0xff]
        %v654 = vld [vmem:[%s306 + $0x858] sm:$0xff]
        %v655 = vld [vmem:[%s306 + $0x860] sm:$0xff]
        %v656 = vld [vmem:[%s306 + $0x868] sm:$0xff]
        %v657 = vld [vmem:[%s306 + $0x870] sm:$0xff]
        %v658 = vld [vmem:[%s306 + $0x878] sm:$0xff]
        %v659 = vld [vmem:[%s306 + $0x880] sm:$0xff]
        %v660 = vld [vmem:[%s306 + $0x888] sm:$0xff]
        %v661 = vld [vmem:[%s306 + $0x890] sm:$0xff]
        %v662 = vld [vmem:[%s306 + $0x898] sm:$0xff]
        %v663 = vld [vmem:[%s306 + $0x8a0] sm:$0xff]
        %v664 = vld [vmem:[%s306 + $0x8a8] sm:$0xff]
        %v665 = vld [vmem:[%s306 + $0x8b0] sm:$0xff]
        %v666 = vld [vmem:[%s306 + $0x8b8] sm:$0xff]
        %v667 = vld [vmem:[%s306 + $0x8c0] sm:$0xff]
        %v668 = vld [vmem:[%s306 + $0x8c8] sm:$0xff]
        %v669 = vld [vmem:[%s306 + $0x8d0] sm:$0xff]
        %v670 = vld [vmem:[%s306 + $0x8d8] sm:$0xff]
        %v671 = vld [vmem:[%s306 + $0x8e0] sm:$0xff]
        %v672 = vld [vmem:[%s306 + $0x8e8] sm:$0xff]
        %v673 = vld [vmem:[%s306 + $0x8f0] sm:$0xff]
        %v674 = vld [vmem:[%s306 + $0x8f8] sm:$0xff]
        %v675 = vld [vmem:[%s306 + $0x900] sm:$0xff]
        %v676 = vld [vmem:[%s306 + $0x908] sm:$0xff]
        %v677 = vld [vmem:[%s306 + $0x910] sm:$0xff]
        %v678 = vld [vmem:[%s306 + $0x918] sm:$0xff]
        %v679 = vld [vmem:[%s306 + $0x920] sm:$0xff]
        %v680 = vld [vmem:[%s306 + $0x928] sm:$0xff]
        %v681 = vld [vmem:[%s306 + $0x930] sm:$0xff]
        %v682 = vld [vmem:[%s306 + $0x938] sm:$0xff]
        %v683 = vld [vmem:[%s306 + $0x940] sm:$0xff]
        %v684 = vld [vmem:[%s306 + $0x948] sm:$0xff]
        %v685 = vld [vmem:[%s306 + $0x950] sm:$0xff]
        %v686 = vld [vmem:[%s306 + $0x958] sm:$0xff]
        %v687 = vld [vmem:[%s306 + $0x960] sm:$0xff]
        %v688 = vld [vmem:[%s306 + $0x968] sm:$0xff]
        %v689 = vld [vmem:[%s306 + $0x970] sm:$0xff]
        %v690 = vld [vmem:[%s306 + $0x978] sm:$0xff]
        %v691 = vld [vmem:[%s306 + $0x980] sm:$0xff]
        %v692 = vld [vmem:[%s306 + $0x988] sm:$0xff]
        %v693 = vld [vmem:[%s306 + $0x990] sm:$0xff]
        %v694 = vld [vmem:[%s306 + $0x998] sm:$0xff]
        %v695 = vld [vmem:[%s306 + $0x9a0] sm:$0xff]
        %v696 = vld [vmem:[%s306 + $0x9a8] sm:$0xff]
        %v697 = vld [vmem:[%s306 + $0x9b0] sm:$0xff]
        %v698 = vld [vmem:[%s306 + $0x9b8] sm:$0xff]
        %v699 = vld [vmem:[%s306 + $0x9c0] sm:$0xff]
        %v700 = vld [vmem:[%s306 + $0x9c8] sm:$0xff]
        %v701 = vld [vmem:[%s306 + $0x9d0] sm:$0xff]
        %v702 = vld [vmem:[%s306 + $0x9d8] sm:$0xff]
        %v703 = vld [vmem:[%s306 + $0x9e0] sm:$0xff]
        %v704 = vld [vmem:[%s306 + $0x9e8] sm:$0xff]
        %v705 = vld [vmem:[%s306 + $0x9f0] sm:$0xff]
        %v706 = vld [vmem:[%s306 + $0x9f8] sm:$0xff]
        %v707 = vld [vmem:[%s306 + $0xa00] sm:$0xff]
        %v708 = vld [vmem:[%s306 + $0xa08] sm:$0xff]
        %v709 = vld [vmem:[%s306 + $0xa10] sm:$0xff]
        %v710 = vld [vmem:[%s306 + $0xa18] sm:$0xff]
        %v711 = vld [vmem:[%s306 + $0xa20] sm:$0xff]
        %v712 = vld [vmem:[%s306 + $0xa28] sm:$0xff]
        %v713 = vld [vmem:[%s306 + $0xa30] sm:$0xff]
        %v714 = vld [vmem:[%s306 + $0xa38] sm:$0xff]
        %v715 = vld [vmem:[%s306 + $0xa40] sm:$0xff]
        %v716 = vld [vmem:[%s306 + $0xa48] sm:$0xff]
        %v717 = vld [vmem:[%s306 + $0xa50] sm:$0xff]
        %v718 = vld [vmem:[%s306 + $0xa58] sm:$0xff]
        %v719 = vld [vmem:[%s306 + $0xa60] sm:$0xff]
        %v720 = vld [vmem:[%s306 + $0xa68] sm:$0xff]
        %v721 = vld [vmem:[%s306 + $0xa70] sm:$0xff]
        %v722 = vld [vmem:[%s306 + $0xa78] sm:$0xff]
        %v723 = vld [vmem:[%s306 + $0xa80] sm:$0xff]
        %v724 = vld [vmem:[%s306 + $0xa88] sm:$0xff]
        %v725 = vld [vmem:[%s306 + $0xa90] sm:$0xff]
        %v726 = vld [vmem:[%s306 + $0xa98] sm:$0xff]
        %v727 = vld [vmem:[%s306 + $0xaa0] sm:$0xff]
        %v728 = vld [vmem:[%s306 + $0xaa8] sm:$0xff]
        %v729 = vld [vmem:[%s306 + $0xab0] sm:$0xff]
        %v730 = vld [vmem:[%s306 + $0xab8] sm:$0xff]
        %v731 = vld [vmem:[%s306 + $0xac0] sm:$0xff]
        %v732 = vld [vmem:[%s306 + $0xac8] sm:$0xff]
        %v733 = vld [vmem:[%s306 + $0xad0] sm:$0xff]
        %v734 = vld [vmem:[%s306 + $0xad8] sm:$0xff]
        %v735 = vld [vmem:[%s306 + $0xae0] sm:$0xff]
        %v736 = vld [vmem:[%s306 + $0xae8] sm:$0xff]
        %v737 = vld [vmem:[%s306 + $0xaf0] sm:$0xff]
        %v738 = vld [vmem:[%s306 + $0xaf8] sm:$0xff]
        %v739 = vld [vmem:[%s306 + $0xb00] sm:$0xff]
        %v740 = vld [vmem:[%s306 + $0xb08] sm:$0xff]
        %v741 = vld [vmem:[%s306 + $0xb10] sm:$0xff]
        %v742 = vld [vmem:[%s306 + $0xb18] sm:$0xff]
        %v743 = vld [vmem:[%s306 + $0xb20] sm:$0xff]
        %v744 = vld [vmem:[%s306 + $0xb28] sm:$0xff]
        %v745 = vld [vmem:[%s306 + $0xb30] sm:$0xff]
        %v746 = vld [vmem:[%s306 + $0xb38] sm:$0xff]
        %v747 = vld [vmem:[%s306 + $0xb40] sm:$0xff]
        %v748 = vld [vmem:[%s306 + $0xb48] sm:$0xff]
        %v749 = vld [vmem:[%s306 + $0xb50] sm:$0xff]
        %v750 = vld [vmem:[%s306 + $0xb58] sm:$0xff]
        %v751 = vld [vmem:[%s306 + $0xb60] sm:$0xff]
        %v752 = vld [vmem:[%s306 + $0xb68] sm:$0xff]
        %v753 = vld [vmem:[%s306 + $0xb70] sm:$0xff]
        %v754 = vld [vmem:[%s306 + $0xb78] sm:$0xff]
        %v755 = vld [vmem:[%s306 + $0xb80] sm:$0xff]
        %v756 = vld [vmem:[%s306 + $0xb88] sm:$0xff]
        %v757 = vld [vmem:[%s306 + $0xb90] sm:$0xff]
        %v758 = vld [vmem:[%s306 + $0xb98] sm:$0xff]
        %v759 = vld [vmem:[%s306 + $0xba0] sm:$0xff]
        %v760 = vld [vmem:[%s306 + $0xba8] sm:$0xff]
        %v761 = vld [vmem:[%s306 + $0xbb0] sm:$0xff]
        %v762 = vld [vmem:[%s306 + $0xbb8] sm:$0xff]
        %v763 = vld [vmem:[%s306 + $0xbc0] sm:$0xff]
        %v764 = vld [vmem:[%s306 + $0xbc8] sm:$0xff]
        %v765 = vld [vmem:[%s306 + $0xbd0] sm:$0xff]
        %v766 = vld [vmem:[%s306 + $0xbd8] sm:$0xff]
        %v767 = vld [vmem:[%s306 + $0xbe0] sm:$0xff]
        %v768 = vld [vmem:[%s306 + $0xbe8] sm:$0xff]
        %v769 = vld [vmem:[%s306 + $0xbf0] sm:$0xff]
        %v770 = vld [vmem:[%s306 + $0xbf8] sm:$0xff]
        %v771 = vld [vmem:[%s315] sm:$0xff]
        %v773 = vlaneseq
        %v774 = vshrl.u32 %v773, 7
        %v775 = vsub.s32 0, %v774
        %v776 = vrot.slane %v771, %v775
        %v777 = vlaneseq
        %v778 = vshrl.u32 %v777, 7
        %v779 = vsub.s32 1, %v778
        %v780 = vrot.slane %v771, %v779
        %v781 = vlaneseq
        %v782 = vshrl.u32 %v781, 7
        %v783 = vsub.s32 2, %v782
        %v784 = vrot.slane %v771, %v783
        %v785 = vlaneseq
        %v786 = vshrl.u32 %v785, 7
        %v787 = vsub.s32 3, %v786
        %v788 = vrot.slane %v771, %v787
        %v789 = vlaneseq
        %v790 = vshrl.u32 %v789, 7
        %v791 = vsub.s32 4, %v790
        %v792 = vrot.slane %v771, %v791
        %v793 = vlaneseq
        %v794 = vshrl.u32 %v793, 7
        %v795 = vsub.s32 5, %v794
        %v796 = vrot.slane %v771, %v795
        %v797 = vlaneseq
        %v798 = vshrl.u32 %v797, 7
        %v799 = vsub.s32 6, %v798
        %v800 = vrot.slane %v771, %v799
        %v801 = vlaneseq
        %v802 = vshrl.u32 %v801, 7
        %v803 = vsub.s32 7, %v802
        %v804 = vrot.slane %v771, %v803
        %v819 = vunpack.c.l.b16 %v381
        %v820 = vunpack.c.h.b16 %v381
        %v821 = vunpack.c.l.b16 %v382
        %v822 = vunpack.c.h.b16 %v382
        %v823 = vunpack.c.l.b16 %v383
        %v824 = vunpack.c.h.b16 %v383
        %v825 = vunpack.c.l.b16 %v384
        %v826 = vunpack.c.h.b16 %v384
        %v827 = vunpack.c.l.b16 %v385
        %v828 = vunpack.c.h.b16 %v385
        %v829 = vunpack.c.l.b16 %v386
        %v830 = vunpack.c.h.b16 %v386
        %v831 = vpack.c.b16 %v825, %v819
        %v832 = vpack.c.b16 %v826, %v820
        %v833 = vpack.c.b16 %v827, %v821
        %v834 = vpack.c.b16 %v828, %v822
        %v835 = vpack.c.b16 %v829, %v823
        %v836 = vpack.c.b16 %v830, %v824
        %v1227 = vunpack.c.l.b16 %v387
        %v1228 = vunpack.c.h.b16 %v387
        %v1229 = vunpack.c.l.b16 %v388
        %v1230 = vunpack.c.h.b16 %v388
        %v1231 = vunpack.c.l.b16 %v389
        %v1232 = vunpack.c.h.b16 %v389
        %v1233 = vunpack.c.l.b16 %v390
        %v1234 = vunpack.c.h.b16 %v390
        %v1235 = vunpack.c.l.b16 %v391
        %v1236 = vunpack.c.h.b16 %v391
        %v1237 = vunpack.c.l.b16 %v392
        %v1238 = vunpack.c.h.b16 %v392
        %v1239 = vunpack.c.l.b16 %v393
        %v1240 = vunpack.c.h.b16 %v393
        %v1241 = vunpack.c.l.b16 %v394
        %v1242 = vunpack.c.h.b16 %v394
        %v1243 = vunpack.c.l.b16 %v395
        %v1244 = vunpack.c.h.b16 %v395
        %v1245 = vunpack.c.l.b16 %v396
        %v1246 = vunpack.c.h.b16 %v396
        %v1247 = vunpack.c.l.b16 %v397
        %v1248 = vunpack.c.h.b16 %v397
        %v1249 = vunpack.c.l.b16 %v398
        %v1250 = vunpack.c.h.b16 %v398
        %v1251 = vunpack.c.l.b16 %v399
        %v1252 = vunpack.c.h.b16 %v399
        %v1253 = vunpack.c.l.b16 %v400
        %v1254 = vunpack.c.h.b16 %v400
        %v1255 = vunpack.c.l.b16 %v401
        %v1256 = vunpack.c.h.b16 %v401
        %v1257 = vunpack.c.l.b16 %v402
        %v1258 = vunpack.c.h.b16 %v402
        %v1259 = vunpack.c.l.b16 %v403
        %v1260 = vunpack.c.h.b16 %v403
        %v1261 = vunpack.c.l.b16 %v404
        %v1262 = vunpack.c.h.b16 %v404
        %v1263 = vunpack.c.l.b16 %v405
        %v1264 = vunpack.c.h.b16 %v405
        %v1265 = vunpack.c.l.b16 %v406
        %v1266 = vunpack.c.h.b16 %v406
        %v1267 = vunpack.c.l.b16 %v407
        %v1268 = vunpack.c.h.b16 %v407
        %v1269 = vunpack.c.l.b16 %v408
        %v1270 = vunpack.c.h.b16 %v408
        %v1271 = vunpack.c.l.b16 %v409
        %v1272 = vunpack.c.h.b16 %v409
        %v1273 = vunpack.c.l.b16 %v410
        %v1274 = vunpack.c.h.b16 %v410
        %v1275 = vunpack.c.l.b16 %v411
        %v1276 = vunpack.c.h.b16 %v411
        %v1277 = vunpack.c.l.b16 %v412
        %v1278 = vunpack.c.h.b16 %v412
        %v1279 = vunpack.c.l.b16 %v413
        %v1280 = vunpack.c.h.b16 %v413
        %v1281 = vunpack.c.l.b16 %v414
        %v1282 = vunpack.c.h.b16 %v414
        %v1283 = vunpack.c.l.b16 %v415
        %v1284 = vunpack.c.h.b16 %v415
        %v1285 = vunpack.c.l.b16 %v416
        %v1286 = vunpack.c.h.b16 %v416
        %v1287 = vunpack.c.l.b16 %v417
        %v1288 = vunpack.c.h.b16 %v417
        %v1289 = vunpack.c.l.b16 %v418
        %v1290 = vunpack.c.h.b16 %v418
        %v1291 = vunpack.c.l.b16 %v419
        %v1292 = vunpack.c.h.b16 %v419
        %v1293 = vunpack.c.l.b16 %v420
        %v1294 = vunpack.c.h.b16 %v420
        %v1295 = vunpack.c.l.b16 %v421
        %v1296 = vunpack.c.h.b16 %v421
        %v1297 = vunpack.c.l.b16 %v422
        %v1298 = vunpack.c.h.b16 %v422
        %v1299 = vunpack.c.l.b16 %v423
        %v1300 = vunpack.c.h.b16 %v423
        %v1301 = vunpack.c.l.b16 %v424
        %v1302 = vunpack.c.h.b16 %v424
        %v1303 = vunpack.c.l.b16 %v425
        %v1304 = vunpack.c.h.b16 %v425
        %v1305 = vunpack.c.l.b16 %v426
        %v1306 = vunpack.c.h.b16 %v426
        %v1307 = vunpack.c.l.b16 %v427
        %v1308 = vunpack.c.h.b16 %v427
        %v1309 = vunpack.c.l.b16 %v428
        %v1310 = vunpack.c.h.b16 %v428
        %v1311 = vunpack.c.l.b16 %v429
        %v1312 = vunpack.c.h.b16 %v429
        %v1313 = vunpack.c.l.b16 %v430
        %v1314 = vunpack.c.h.b16 %v430
        %v1315 = vunpack.c.l.b16 %v431
        %v1316 = vunpack.c.h.b16 %v431
        %v1317 = vunpack.c.l.b16 %v432
        %v1318 = vunpack.c.h.b16 %v432
        %v1319 = vunpack.c.l.b16 %v433
        %v1320 = vunpack.c.h.b16 %v433
        %v1321 = vunpack.c.l.b16 %v434
        %v1322 = vunpack.c.h.b16 %v434
        %v1323 = vunpack.c.l.b16 %v435
        %v1324 = vunpack.c.h.b16 %v435
        %v1325 = vunpack.c.l.b16 %v436
        %v1326 = vunpack.c.h.b16 %v436
        %v1327 = vunpack.c.l.b16 %v437
        %v1328 = vunpack.c.h.b16 %v437
        %v1329 = vunpack.c.l.b16 %v438
        %v1330 = vunpack.c.h.b16 %v438
        %v1331 = vunpack.c.l.b16 %v439
        %v1332 = vunpack.c.h.b16 %v439
        %v1333 = vunpack.c.l.b16 %v440
        %v1334 = vunpack.c.h.b16 %v440
        %v1335 = vunpack.c.l.b16 %v441
        %v1336 = vunpack.c.h.b16 %v441
        %v1337 = vunpack.c.l.b16 %v442
        %v1338 = vunpack.c.h.b16 %v442
        %v1339 = vunpack.c.l.b16 %v443
        %v1340 = vunpack.c.h.b16 %v443
        %v1341 = vunpack.c.l.b16 %v444
        %v1342 = vunpack.c.h.b16 %v444
        %v1343 = vunpack.c.l.b16 %v445
        %v1344 = vunpack.c.h.b16 %v445
        %v1345 = vunpack.c.l.b16 %v446
        %v1346 = vunpack.c.h.b16 %v446
        %v1347 = vunpack.c.l.b16 %v447
        %v1348 = vunpack.c.h.b16 %v447
        %v1349 = vunpack.c.l.b16 %v448
        %v1350 = vunpack.c.h.b16 %v448
        %v1351 = vunpack.c.l.b16 %v449
        %v1352 = vunpack.c.h.b16 %v449
        %v1353 = vunpack.c.l.b16 %v450
        %v1354 = vunpack.c.h.b16 %v450
        %v1355 = vunpack.c.l.b16 %v451
        %v1356 = vunpack.c.h.b16 %v451
        %v1357 = vunpack.c.l.b16 %v452
        %v1358 = vunpack.c.h.b16 %v452
        %v1359 = vunpack.c.l.b16 %v453
        %v1360 = vunpack.c.h.b16 %v453
        %v1361 = vunpack.c.l.b16 %v454
        %v1362 = vunpack.c.h.b16 %v454
        %v1363 = vunpack.c.l.b16 %v455
        %v1364 = vunpack.c.h.b16 %v455
        %v1365 = vunpack.c.l.b16 %v456
        %v1366 = vunpack.c.h.b16 %v456
        %v1367 = vunpack.c.l.b16 %v457
        %v1368 = vunpack.c.h.b16 %v457
        %v1369 = vunpack.c.l.b16 %v458
        %v1370 = vunpack.c.h.b16 %v458
        %v1371 = vunpack.c.l.b16 %v459
        %v1372 = vunpack.c.h.b16 %v459
        %v1373 = vunpack.c.l.b16 %v460
        %v1374 = vunpack.c.h.b16 %v460
        %v1375 = vunpack.c.l.b16 %v461
        %v1376 = vunpack.c.h.b16 %v461
        %v1377 = vunpack.c.l.b16 %v462
        %v1378 = vunpack.c.h.b16 %v462
        %v1379 = vunpack.c.l.b16 %v463
        %v1380 = vunpack.c.h.b16 %v463
        %v1381 = vunpack.c.l.b16 %v464
        %v1382 = vunpack.c.h.b16 %v464
        %v1383 = vunpack.c.l.b16 %v465
        %v1384 = vunpack.c.h.b16 %v465
        %v1385 = vunpack.c.l.b16 %v466
        %v1386 = vunpack.c.h.b16 %v466
        %v1387 = vunpack.c.l.b16 %v467
        %v1388 = vunpack.c.h.b16 %v467
        %v1389 = vunpack.c.l.b16 %v468
        %v1390 = vunpack.c.h.b16 %v468
        %v1391 = vunpack.c.l.b16 %v469
        %v1392 = vunpack.c.h.b16 %v469
        %v1393 = vunpack.c.l.b16 %v470
        %v1394 = vunpack.c.h.b16 %v470
        %v1395 = vunpack.c.l.b16 %v471
        %v1396 = vunpack.c.h.b16 %v471
        %v1397 = vunpack.c.l.b16 %v472
        %v1398 = vunpack.c.h.b16 %v472
        %v1399 = vunpack.c.l.b16 %v473
        %v1400 = vunpack.c.h.b16 %v473
        %v1401 = vunpack.c.l.b16 %v474
        %v1402 = vunpack.c.h.b16 %v474
        %v1403 = vunpack.c.l.b16 %v475
        %v1404 = vunpack.c.h.b16 %v475
        %v1405 = vunpack.c.l.b16 %v476
        %v1406 = vunpack.c.h.b16 %v476
        %v1407 = vunpack.c.l.b16 %v477
        %v1408 = vunpack.c.h.b16 %v477
        %v1409 = vunpack.c.l.b16 %v478
        %v1410 = vunpack.c.h.b16 %v478
        %v1411 = vunpack.c.l.b16 %v479
        %v1412 = vunpack.c.h.b16 %v479
        %v1413 = vunpack.c.l.b16 %v480
        %v1414 = vunpack.c.h.b16 %v480
        %v1415 = vunpack.c.l.b16 %v481
        %v1416 = vunpack.c.h.b16 %v481
        %v1417 = vunpack.c.l.b16 %v482
        %v1418 = vunpack.c.h.b16 %v482
        %v1419 = vunpack.c.l.b16 %v483
        %v1420 = vunpack.c.h.b16 %v483
        %v1421 = vunpack.c.l.b16 %v484
        %v1422 = vunpack.c.h.b16 %v484
        %v1423 = vunpack.c.l.b16 %v485
        %v1424 = vunpack.c.h.b16 %v485
        %v1425 = vunpack.c.l.b16 %v486
        %v1426 = vunpack.c.h.b16 %v486
        %v1427 = vunpack.c.l.b16 %v487
        %v1428 = vunpack.c.h.b16 %v487
        %v1429 = vunpack.c.l.b16 %v488
        %v1430 = vunpack.c.h.b16 %v488
        %v1431 = vunpack.c.l.b16 %v489
        %v1432 = vunpack.c.h.b16 %v489
        %v1433 = vunpack.c.l.b16 %v490
        %v1434 = vunpack.c.h.b16 %v490
        %v1435 = vunpack.c.l.b16 %v491
        %v1436 = vunpack.c.h.b16 %v491
        %v1437 = vunpack.c.l.b16 %v492
        %v1438 = vunpack.c.h.b16 %v492
        %v1439 = vunpack.c.l.b16 %v493
        %v1440 = vunpack.c.h.b16 %v493
        %v1441 = vunpack.c.l.b16 %v494
        %v1442 = vunpack.c.h.b16 %v494
        %v1443 = vunpack.c.l.b16 %v495
        %v1444 = vunpack.c.h.b16 %v495
        %v1445 = vunpack.c.l.b16 %v496
        %v1446 = vunpack.c.h.b16 %v496
        %v1447 = vunpack.c.l.b16 %v497
        %v1448 = vunpack.c.h.b16 %v497
        %v1449 = vunpack.c.l.b16 %v498
        %v1450 = vunpack.c.h.b16 %v498
        %v1451 = vunpack.c.l.b16 %v499
        %v1452 = vunpack.c.h.b16 %v499
        %v1453 = vunpack.c.l.b16 %v500
        %v1454 = vunpack.c.h.b16 %v500
        %v1455 = vunpack.c.l.b16 %v501
        %v1456 = vunpack.c.h.b16 %v501
        %v1457 = vunpack.c.l.b16 %v502
        %v1458 = vunpack.c.h.b16 %v502
        %v1459 = vunpack.c.l.b16 %v503
        %v1460 = vunpack.c.h.b16 %v503
        %v1461 = vunpack.c.l.b16 %v504
        %v1462 = vunpack.c.h.b16 %v504
        %v1463 = vunpack.c.l.b16 %v505
        %v1464 = vunpack.c.h.b16 %v505
        %v1465 = vunpack.c.l.b16 %v506
        %v1466 = vunpack.c.h.b16 %v506
        %v1467 = vunpack.c.l.b16 %v507
        %v1468 = vunpack.c.h.b16 %v507
        %v1469 = vunpack.c.l.b16 %v508
        %v1470 = vunpack.c.h.b16 %v508
        %v1471 = vunpack.c.l.b16 %v509
        %v1472 = vunpack.c.h.b16 %v509
        %v1473 = vunpack.c.l.b16 %v510
        %v1474 = vunpack.c.h.b16 %v510
        %v1475 = vunpack.c.l.b16 %v511
        %v1476 = vunpack.c.h.b16 %v511
        %v1477 = vunpack.c.l.b16 %v512
        %v1478 = vunpack.c.h.b16 %v512
        %v1479 = vunpack.c.l.b16 %v513
        %v1480 = vunpack.c.h.b16 %v513
        %v1481 = vunpack.c.l.b16 %v514
        %v1482 = vunpack.c.h.b16 %v514
        %v1483 = vunpack.c.l.b16 %v515
        %v1484 = vunpack.c.h.b16 %v515
        %v1485 = vunpack.c.l.b16 %v516
        %v1486 = vunpack.c.h.b16 %v516
        %v1487 = vunpack.c.l.b16 %v517
        %v1488 = vunpack.c.h.b16 %v517
        %v1489 = vunpack.c.l.b16 %v518
        %v1490 = vunpack.c.h.b16 %v518
        %v1491 = vunpack.c.l.b16 %v519
        %v1492 = vunpack.c.h.b16 %v519
        %v1493 = vunpack.c.l.b16 %v520
        %v1494 = vunpack.c.h.b16 %v520
        %v1495 = vunpack.c.l.b16 %v521
        %v1496 = vunpack.c.h.b16 %v521
        %v1497 = vunpack.c.l.b16 %v522
        %v1498 = vunpack.c.h.b16 %v522
        %v1499 = vunpack.c.l.b16 %v523
        %v1500 = vunpack.c.h.b16 %v523
        %v1501 = vunpack.c.l.b16 %v524
        %v1502 = vunpack.c.h.b16 %v524
        %v1503 = vunpack.c.l.b16 %v525
        %v1504 = vunpack.c.h.b16 %v525
        %v1505 = vunpack.c.l.b16 %v526
        %v1506 = vunpack.c.h.b16 %v526
        %v1507 = vunpack.c.l.b16 %v527
        %v1508 = vunpack.c.h.b16 %v527
        %v1509 = vunpack.c.l.b16 %v528
        %v1510 = vunpack.c.h.b16 %v528
        %v1511 = vunpack.c.l.b16 %v529
        %v1512 = vunpack.c.h.b16 %v529
        %v1513 = vunpack.c.l.b16 %v530
        %v1514 = vunpack.c.h.b16 %v530
        %v1515 = vunpack.c.l.b16 %v531
        %v1516 = vunpack.c.h.b16 %v531
        %v1517 = vunpack.c.l.b16 %v532
        %v1518 = vunpack.c.h.b16 %v532
        %v1519 = vunpack.c.l.b16 %v533
        %v1520 = vunpack.c.h.b16 %v533
        %v1521 = vunpack.c.l.b16 %v534
        %v1522 = vunpack.c.h.b16 %v534
        %v1523 = vunpack.c.l.b16 %v535
        %v1524 = vunpack.c.h.b16 %v535
        %v1525 = vunpack.c.l.b16 %v536
        %v1526 = vunpack.c.h.b16 %v536
        %v1527 = vunpack.c.l.b16 %v537
        %v1528 = vunpack.c.h.b16 %v537
        %v1529 = vunpack.c.l.b16 %v538
        %v1530 = vunpack.c.h.b16 %v538
        %v1531 = vunpack.c.l.b16 %v539
        %v1532 = vunpack.c.h.b16 %v539
        %v1533 = vunpack.c.l.b16 %v540
        %v1534 = vunpack.c.h.b16 %v540
        %v1535 = vunpack.c.l.b16 %v541
        %v1536 = vunpack.c.h.b16 %v541
        %v1537 = vunpack.c.l.b16 %v542
        %v1538 = vunpack.c.h.b16 %v542
        %v1539 = vunpack.c.l.b16 %v543
        %v1540 = vunpack.c.h.b16 %v543
        %v1541 = vunpack.c.l.b16 %v544
        %v1542 = vunpack.c.h.b16 %v544
        %v1543 = vunpack.c.l.b16 %v545
        %v1544 = vunpack.c.h.b16 %v545
        %v1545 = vunpack.c.l.b16 %v546
        %v1546 = vunpack.c.h.b16 %v546
        %v1547 = vunpack.c.l.b16 %v547
        %v1548 = vunpack.c.h.b16 %v547
        %v1549 = vunpack.c.l.b16 %v548
        %v1550 = vunpack.c.h.b16 %v548
        %v1551 = vunpack.c.l.b16 %v549
        %v1552 = vunpack.c.h.b16 %v549
        %v1553 = vunpack.c.l.b16 %v550
        %v1554 = vunpack.c.h.b16 %v550
        %v1555 = vunpack.c.l.b16 %v551
        %v1556 = vunpack.c.h.b16 %v551
        %v1557 = vunpack.c.l.b16 %v552
        %v1558 = vunpack.c.h.b16 %v552
        %v1559 = vunpack.c.l.b16 %v553
        %v1560 = vunpack.c.h.b16 %v553
        %v1561 = vunpack.c.l.b16 %v554
        %v1562 = vunpack.c.h.b16 %v554
        %v1563 = vunpack.c.l.b16 %v555
        %v1564 = vunpack.c.h.b16 %v555
        %v1565 = vunpack.c.l.b16 %v556
        %v1566 = vunpack.c.h.b16 %v556
        %v1567 = vunpack.c.l.b16 %v557
        %v1568 = vunpack.c.h.b16 %v557
        %v1569 = vunpack.c.l.b16 %v558
        %v1570 = vunpack.c.h.b16 %v558
        %v1571 = vunpack.c.l.b16 %v559
        %v1572 = vunpack.c.h.b16 %v559
        %v1573 = vunpack.c.l.b16 %v560
        %v1574 = vunpack.c.h.b16 %v560
        %v1575 = vunpack.c.l.b16 %v561
        %v1576 = vunpack.c.h.b16 %v561
        %v1577 = vunpack.c.l.b16 %v562
        %v1578 = vunpack.c.h.b16 %v562
        %v1579 = vunpack.c.l.b16 %v563
        %v1580 = vunpack.c.h.b16 %v563
        %v1581 = vunpack.c.l.b16 %v564
        %v1582 = vunpack.c.h.b16 %v564
        %v1583 = vunpack.c.l.b16 %v565
        %v1584 = vunpack.c.h.b16 %v565
        %v1585 = vunpack.c.l.b16 %v566
        %v1586 = vunpack.c.h.b16 %v566
        %v1587 = vunpack.c.l.b16 %v567
        %v1588 = vunpack.c.h.b16 %v567
        %v1589 = vunpack.c.l.b16 %v568
        %v1590 = vunpack.c.h.b16 %v568
        %v1591 = vunpack.c.l.b16 %v569
        %v1592 = vunpack.c.h.b16 %v569
        %v1593 = vunpack.c.l.b16 %v570
        %v1594 = vunpack.c.h.b16 %v570
        %v1595 = vunpack.c.l.b16 %v571
        %v1596 = vunpack.c.h.b16 %v571
        %v1597 = vunpack.c.l.b16 %v572
        %v1598 = vunpack.c.h.b16 %v572
        %v1599 = vunpack.c.l.b16 %v573
        %v1600 = vunpack.c.h.b16 %v573
        %v1601 = vunpack.c.l.b16 %v574
        %v1602 = vunpack.c.h.b16 %v574
        %v1603 = vunpack.c.l.b16 %v575
        %v1604 = vunpack.c.h.b16 %v575
        %v1605 = vunpack.c.l.b16 %v576
        %v1606 = vunpack.c.h.b16 %v576
        %v1607 = vunpack.c.l.b16 %v577
        %v1608 = vunpack.c.h.b16 %v577
        %v1609 = vunpack.c.l.b16 %v578
        %v1610 = vunpack.c.h.b16 %v578
        %v1611 = vunpack.c.l.b16 %v579
        %v1612 = vunpack.c.h.b16 %v579
        %v1613 = vunpack.c.l.b16 %v580
        %v1614 = vunpack.c.h.b16 %v580
        %v1615 = vunpack.c.l.b16 %v581
        %v1616 = vunpack.c.h.b16 %v581
        %v1617 = vunpack.c.l.b16 %v582
        %v1618 = vunpack.c.h.b16 %v582
        %v1619 = vunpack.c.l.b16 %v583
        %v1620 = vunpack.c.h.b16 %v583
        %v1621 = vunpack.c.l.b16 %v584
        %v1622 = vunpack.c.h.b16 %v584
        %v1623 = vunpack.c.l.b16 %v585
        %v1624 = vunpack.c.h.b16 %v585
        %v1625 = vunpack.c.l.b16 %v586
        %v1626 = vunpack.c.h.b16 %v586
        %v1627 = vunpack.c.l.b16 %v587
        %v1628 = vunpack.c.h.b16 %v587
        %v1629 = vunpack.c.l.b16 %v588
        %v1630 = vunpack.c.h.b16 %v588
        %v1631 = vunpack.c.l.b16 %v589
        %v1632 = vunpack.c.h.b16 %v589
        %v1633 = vunpack.c.l.b16 %v590
        %v1634 = vunpack.c.h.b16 %v590
        %v1635 = vunpack.c.l.b16 %v591
        %v1636 = vunpack.c.h.b16 %v591
        %v1637 = vunpack.c.l.b16 %v592
        %v1638 = vunpack.c.h.b16 %v592
        %v1639 = vunpack.c.l.b16 %v593
        %v1640 = vunpack.c.h.b16 %v593
        %v1641 = vunpack.c.l.b16 %v594
        %v1642 = vunpack.c.h.b16 %v594
        %v1643 = vunpack.c.l.b16 %v595
        %v1644 = vunpack.c.h.b16 %v595
        %v1645 = vunpack.c.l.b16 %v596
        %v1646 = vunpack.c.h.b16 %v596
        %v1647 = vunpack.c.l.b16 %v597
        %v1648 = vunpack.c.h.b16 %v597
        %v1649 = vunpack.c.l.b16 %v598
        %v1650 = vunpack.c.h.b16 %v598
        %v1651 = vunpack.c.l.b16 %v599
        %v1652 = vunpack.c.h.b16 %v599
        %v1653 = vunpack.c.l.b16 %v600
        %v1654 = vunpack.c.h.b16 %v600
        %v1655 = vunpack.c.l.b16 %v601
        %v1656 = vunpack.c.h.b16 %v601
        %v1657 = vunpack.c.l.b16 %v602
        %v1658 = vunpack.c.h.b16 %v602
        %v1659 = vunpack.c.l.b16 %v603
        %v1660 = vunpack.c.h.b16 %v603
        %v1661 = vunpack.c.l.b16 %v604
        %v1662 = vunpack.c.h.b16 %v604
        %v1663 = vunpack.c.l.b16 %v605
        %v1664 = vunpack.c.h.b16 %v605
        %v1665 = vunpack.c.l.b16 %v606
        %v1666 = vunpack.c.h.b16 %v606
        %v1667 = vunpack.c.l.b16 %v607
        %v1668 = vunpack.c.h.b16 %v607
        %v1669 = vunpack.c.l.b16 %v608
        %v1670 = vunpack.c.h.b16 %v608
        %v1671 = vunpack.c.l.b16 %v609
        %v1672 = vunpack.c.h.b16 %v609
        %v1673 = vunpack.c.l.b16 %v610
        %v1674 = vunpack.c.h.b16 %v610
        %v1675 = vunpack.c.l.b16 %v611
        %v1676 = vunpack.c.h.b16 %v611
        %v1677 = vunpack.c.l.b16 %v612
        %v1678 = vunpack.c.h.b16 %v612
        %v1679 = vunpack.c.l.b16 %v613
        %v1680 = vunpack.c.h.b16 %v613
        %v1681 = vunpack.c.l.b16 %v614
        %v1682 = vunpack.c.h.b16 %v614
        %v1683 = vunpack.c.l.b16 %v615
        %v1684 = vunpack.c.h.b16 %v615
        %v1685 = vunpack.c.l.b16 %v616
        %v1686 = vunpack.c.h.b16 %v616
        %v1687 = vunpack.c.l.b16 %v617
        %v1688 = vunpack.c.h.b16 %v617
        %v1689 = vunpack.c.l.b16 %v618
        %v1690 = vunpack.c.h.b16 %v618
        %v1691 = vunpack.c.l.b16 %v619
        %v1692 = vunpack.c.h.b16 %v619
        %v1693 = vunpack.c.l.b16 %v620
        %v1694 = vunpack.c.h.b16 %v620
        %v1695 = vunpack.c.l.b16 %v621
        %v1696 = vunpack.c.h.b16 %v621
        %v1697 = vunpack.c.l.b16 %v622
        %v1698 = vunpack.c.h.b16 %v622
        %v1699 = vunpack.c.l.b16 %v623
        %v1700 = vunpack.c.h.b16 %v623
        %v1701 = vunpack.c.l.b16 %v624
        %v1702 = vunpack.c.h.b16 %v624
        %v1703 = vunpack.c.l.b16 %v625
        %v1704 = vunpack.c.h.b16 %v625
        %v1705 = vunpack.c.l.b16 %v626
        %v1706 = vunpack.c.h.b16 %v626
        %v1707 = vunpack.c.l.b16 %v627
        %v1708 = vunpack.c.h.b16 %v627
        %v1709 = vunpack.c.l.b16 %v628
        %v1710 = vunpack.c.h.b16 %v628
        %v1711 = vunpack.c.l.b16 %v629
        %v1712 = vunpack.c.h.b16 %v629
        %v1713 = vunpack.c.l.b16 %v630
        %v1714 = vunpack.c.h.b16 %v630
        %v1715 = vunpack.c.l.b16 %v631
        %v1716 = vunpack.c.h.b16 %v631
        %v1717 = vunpack.c.l.b16 %v632
        %v1718 = vunpack.c.h.b16 %v632
        %v1719 = vunpack.c.l.b16 %v633
        %v1720 = vunpack.c.h.b16 %v633
        %v1721 = vunpack.c.l.b16 %v634
        %v1722 = vunpack.c.h.b16 %v634
        %v1723 = vunpack.c.l.b16 %v635
        %v1724 = vunpack.c.h.b16 %v635
        %v1725 = vunpack.c.l.b16 %v636
        %v1726 = vunpack.c.h.b16 %v636
        %v1727 = vunpack.c.l.b16 %v637
        %v1728 = vunpack.c.h.b16 %v637
        %v1729 = vunpack.c.l.b16 %v638
        %v1730 = vunpack.c.h.b16 %v638
        %v1731 = vunpack.c.l.b16 %v639
        %v1732 = vunpack.c.h.b16 %v639
        %v1733 = vunpack.c.l.b16 %v640
        %v1734 = vunpack.c.h.b16 %v640
        %v1735 = vunpack.c.l.b16 %v641
        %v1736 = vunpack.c.h.b16 %v641
        %v1737 = vunpack.c.l.b16 %v642
        %v1738 = vunpack.c.h.b16 %v642
        %v1739 = vunpack.c.l.b16 %v643
        %v1740 = vunpack.c.h.b16 %v643
        %v1741 = vunpack.c.l.b16 %v644
        %v1742 = vunpack.c.h.b16 %v644
        %v1743 = vunpack.c.l.b16 %v645
        %v1744 = vunpack.c.h.b16 %v645
        %v1745 = vunpack.c.l.b16 %v646
        %v1746 = vunpack.c.h.b16 %v646
        %v1747 = vunpack.c.l.b16 %v647
        %v1748 = vunpack.c.h.b16 %v647
        %v1749 = vunpack.c.l.b16 %v648
        %v1750 = vunpack.c.h.b16 %v648
        %v1751 = vunpack.c.l.b16 %v649
        %v1752 = vunpack.c.h.b16 %v649
        %v1753 = vunpack.c.l.b16 %v650
        %v1754 = vunpack.c.h.b16 %v650
        %v1755 = vunpack.c.l.b16 %v651
        %v1756 = vunpack.c.h.b16 %v651
        %v1757 = vunpack.c.l.b16 %v652
        %v1758 = vunpack.c.h.b16 %v652
        %v1759 = vunpack.c.l.b16 %v653
        %v1760 = vunpack.c.h.b16 %v653
        %v1761 = vunpack.c.l.b16 %v654
        %v1762 = vunpack.c.h.b16 %v654
        %v1763 = vunpack.c.l.b16 %v655
        %v1764 = vunpack.c.h.b16 %v655
        %v1765 = vunpack.c.l.b16 %v656
        %v1766 = vunpack.c.h.b16 %v656
        %v1767 = vunpack.c.l.b16 %v657
        %v1768 = vunpack.c.h.b16 %v657
        %v1769 = vunpack.c.l.b16 %v658
        %v1770 = vunpack.c.h.b16 %v658
        %v1771 = vunpack.c.l.b16 %v659
        %v1772 = vunpack.c.h.b16 %v659
        %v1773 = vunpack.c.l.b16 %v660
        %v1774 = vunpack.c.h.b16 %v660
        %v1775 = vunpack.c.l.b16 %v661
        %v1776 = vunpack.c.h.b16 %v661
        %v1777 = vunpack.c.l.b16 %v662
        %v1778 = vunpack.c.h.b16 %v662
        %v1779 = vunpack.c.l.b16 %v663
        %v1780 = vunpack.c.h.b16 %v663
        %v1781 = vunpack.c.l.b16 %v664
        %v1782 = vunpack.c.h.b16 %v664
        %v1783 = vunpack.c.l.b16 %v665
        %v1784 = vunpack.c.h.b16 %v665
        %v1785 = vunpack.c.l.b16 %v666
        %v1786 = vunpack.c.h.b16 %v666
        %v1787 = vunpack.c.l.b16 %v667
        %v1788 = vunpack.c.h.b16 %v667
        %v1789 = vunpack.c.l.b16 %v668
        %v1790 = vunpack.c.h.b16 %v668
        %v1791 = vunpack.c.l.b16 %v669
        %v1792 = vunpack.c.h.b16 %v669
        %v1793 = vunpack.c.l.b16 %v670
        %v1794 = vunpack.c.h.b16 %v670
        %v1795 = vunpack.c.l.b16 %v671
        %v1796 = vunpack.c.h.b16 %v671
        %v1797 = vunpack.c.l.b16 %v672
        %v1798 = vunpack.c.h.b16 %v672
        %v1799 = vunpack.c.l.b16 %v673
        %v1800 = vunpack.c.h.b16 %v673
        %v1801 = vunpack.c.l.b16 %v674
        %v1802 = vunpack.c.h.b16 %v674
        %v1803 = vunpack.c.l.b16 %v675
        %v1804 = vunpack.c.h.b16 %v675
        %v1805 = vunpack.c.l.b16 %v676
        %v1806 = vunpack.c.h.b16 %v676
        %v1807 = vunpack.c.l.b16 %v677
        %v1808 = vunpack.c.h.b16 %v677
        %v1809 = vunpack.c.l.b16 %v678
        %v1810 = vunpack.c.h.b16 %v678
        %v1811 = vunpack.c.l.b16 %v679
        %v1812 = vunpack.c.h.b16 %v679
        %v1813 = vunpack.c.l.b16 %v680
        %v1814 = vunpack.c.h.b16 %v680
        %v1815 = vunpack.c.l.b16 %v681
        %v1816 = vunpack.c.h.b16 %v681
        %v1817 = vunpack.c.l.b16 %v682
        %v1818 = vunpack.c.h.b16 %v682
        %v1819 = vunpack.c.l.b16 %v683
        %v1820 = vunpack.c.h.b16 %v683
        %v1821 = vunpack.c.l.b16 %v684
        %v1822 = vunpack.c.h.b16 %v684
        %v1823 = vunpack.c.l.b16 %v685
        %v1824 = vunpack.c.h.b16 %v685
        %v1825 = vunpack.c.l.b16 %v686
        %v1826 = vunpack.c.h.b16 %v686
        %v1827 = vunpack.c.l.b16 %v687
        %v1828 = vunpack.c.h.b16 %v687
        %v1829 = vunpack.c.l.b16 %v688
        %v1830 = vunpack.c.h.b16 %v688
        %v1831 = vunpack.c.l.b16 %v689
        %v1832 = vunpack.c.h.b16 %v689
        %v1833 = vunpack.c.l.b16 %v690
        %v1834 = vunpack.c.h.b16 %v690
        %v1835 = vunpack.c.l.b16 %v691
        %v1836 = vunpack.c.h.b16 %v691
        %v1837 = vunpack.c.l.b16 %v692
        %v1838 = vunpack.c.h.b16 %v692
        %v1839 = vunpack.c.l.b16 %v693
        %v1840 = vunpack.c.h.b16 %v693
        %v1841 = vunpack.c.l.b16 %v694
        %v1842 = vunpack.c.h.b16 %v694
        %v1843 = vunpack.c.l.b16 %v695
        %v1844 = vunpack.c.h.b16 %v695
        %v1845 = vunpack.c.l.b16 %v696
        %v1846 = vunpack.c.h.b16 %v696
        %v1847 = vunpack.c.l.b16 %v697
        %v1848 = vunpack.c.h.b16 %v697
        %v1849 = vunpack.c.l.b16 %v698
        %v1850 = vunpack.c.h.b16 %v698
        %v1851 = vunpack.c.l.b16 %v699
        %v1852 = vunpack.c.h.b16 %v699
        %v1853 = vunpack.c.l.b16 %v700
        %v1854 = vunpack.c.h.b16 %v700
        %v1855 = vunpack.c.l.b16 %v701
        %v1856 = vunpack.c.h.b16 %v701
        %v1857 = vunpack.c.l.b16 %v702
        %v1858 = vunpack.c.h.b16 %v702
        %v1859 = vunpack.c.l.b16 %v703
        %v1860 = vunpack.c.h.b16 %v703
        %v1861 = vunpack.c.l.b16 %v704
        %v1862 = vunpack.c.h.b16 %v704
        %v1863 = vunpack.c.l.b16 %v705
        %v1864 = vunpack.c.h.b16 %v705
        %v1865 = vunpack.c.l.b16 %v706
        %v1866 = vunpack.c.h.b16 %v706
        %v1867 = vunpack.c.l.b16 %v707
        %v1868 = vunpack.c.h.b16 %v707
        %v1869 = vunpack.c.l.b16 %v708
        %v1870 = vunpack.c.h.b16 %v708
        %v1871 = vunpack.c.l.b16 %v709
        %v1872 = vunpack.c.h.b16 %v709
        %v1873 = vunpack.c.l.b16 %v710
        %v1874 = vunpack.c.h.b16 %v710
        %v1875 = vunpack.c.l.b16 %v711
        %v1876 = vunpack.c.h.b16 %v711
        %v1877 = vunpack.c.l.b16 %v712
        %v1878 = vunpack.c.h.b16 %v712
        %v1879 = vunpack.c.l.b16 %v713
        %v1880 = vunpack.c.h.b16 %v713
        %v1881 = vunpack.c.l.b16 %v714
        %v1882 = vunpack.c.h.b16 %v714
        %v1883 = vunpack.c.l.b16 %v715
        %v1884 = vunpack.c.h.b16 %v715
        %v1885 = vunpack.c.l.b16 %v716
        %v1886 = vunpack.c.h.b16 %v716
        %v1887 = vunpack.c.l.b16 %v717
        %v1888 = vunpack.c.h.b16 %v717
        %v1889 = vunpack.c.l.b16 %v718
        %v1890 = vunpack.c.h.b16 %v718
        %v1891 = vunpack.c.l.b16 %v719
        %v1892 = vunpack.c.h.b16 %v719
        %v1893 = vunpack.c.l.b16 %v720
        %v1894 = vunpack.c.h.b16 %v720
        %v1895 = vunpack.c.l.b16 %v721
        %v1896 = vunpack.c.h.b16 %v721
        %v1897 = vunpack.c.l.b16 %v722
        %v1898 = vunpack.c.h.b16 %v722
        %v1899 = vunpack.c.l.b16 %v723
        %v1900 = vunpack.c.h.b16 %v723
        %v1901 = vunpack.c.l.b16 %v724
        %v1902 = vunpack.c.h.b16 %v724
        %v1903 = vunpack.c.l.b16 %v725
        %v1904 = vunpack.c.h.b16 %v725
        %v1905 = vunpack.c.l.b16 %v726
        %v1906 = vunpack.c.h.b16 %v726
        %v1907 = vunpack.c.l.b16 %v727
        %v1908 = vunpack.c.h.b16 %v727
        %v1909 = vunpack.c.l.b16 %v728
        %v1910 = vunpack.c.h.b16 %v728
        %v1911 = vunpack.c.l.b16 %v729
        %v1912 = vunpack.c.h.b16 %v729
        %v1913 = vunpack.c.l.b16 %v730
        %v1914 = vunpack.c.h.b16 %v730
        %v1915 = vunpack.c.l.b16 %v731
        %v1916 = vunpack.c.h.b16 %v731
        %v1917 = vunpack.c.l.b16 %v732
        %v1918 = vunpack.c.h.b16 %v732
        %v1919 = vunpack.c.l.b16 %v733
        %v1920 = vunpack.c.h.b16 %v733
        %v1921 = vunpack.c.l.b16 %v734
        %v1922 = vunpack.c.h.b16 %v734
        %v1923 = vunpack.c.l.b16 %v735
        %v1924 = vunpack.c.h.b16 %v735
        %v1925 = vunpack.c.l.b16 %v736
        %v1926 = vunpack.c.h.b16 %v736
        %v1927 = vunpack.c.l.b16 %v737
        %v1928 = vunpack.c.h.b16 %v737
        %v1929 = vunpack.c.l.b16 %v738
        %v1930 = vunpack.c.h.b16 %v738
        %v1931 = vunpack.c.l.b16 %v739
        %v1932 = vunpack.c.h.b16 %v739
        %v1933 = vunpack.c.l.b16 %v740
        %v1934 = vunpack.c.h.b16 %v740
        %v1935 = vunpack.c.l.b16 %v741
        %v1936 = vunpack.c.h.b16 %v741
        %v1937 = vunpack.c.l.b16 %v742
        %v1938 = vunpack.c.h.b16 %v742
        %v1939 = vunpack.c.l.b16 %v743
        %v1940 = vunpack.c.h.b16 %v743
        %v1941 = vunpack.c.l.b16 %v744
        %v1942 = vunpack.c.h.b16 %v744
        %v1943 = vunpack.c.l.b16 %v745
        %v1944 = vunpack.c.h.b16 %v745
        %v1945 = vunpack.c.l.b16 %v746
        %v1946 = vunpack.c.h.b16 %v746
        %v1947 = vunpack.c.l.b16 %v747
        %v1948 = vunpack.c.h.b16 %v747
        %v1949 = vunpack.c.l.b16 %v748
        %v1950 = vunpack.c.h.b16 %v748
        %v1951 = vunpack.c.l.b16 %v749
        %v1952 = vunpack.c.h.b16 %v749
        %v1953 = vunpack.c.l.b16 %v750
        %v1954 = vunpack.c.h.b16 %v750
        %v1955 = vunpack.c.l.b16 %v751
        %v1956 = vunpack.c.h.b16 %v751
        %v1957 = vunpack.c.l.b16 %v752
        %v1958 = vunpack.c.h.b16 %v752
        %v1959 = vunpack.c.l.b16 %v753
        %v1960 = vunpack.c.h.b16 %v753
        %v1961 = vunpack.c.l.b16 %v754
        %v1962 = vunpack.c.h.b16 %v754
        %v1963 = vunpack.c.l.b16 %v755
        %v1964 = vunpack.c.h.b16 %v755
        %v1965 = vunpack.c.l.b16 %v756
        %v1966 = vunpack.c.h.b16 %v756
        %v1967 = vunpack.c.l.b16 %v757
        %v1968 = vunpack.c.h.b16 %v757
        %v1969 = vunpack.c.l.b16 %v758
        %v1970 = vunpack.c.h.b16 %v758
        %v1971 = vunpack.c.l.b16 %v759
        %v1972 = vunpack.c.h.b16 %v759
        %v1973 = vunpack.c.l.b16 %v760
        %v1974 = vunpack.c.h.b16 %v760
        %v1975 = vunpack.c.l.b16 %v761
        %v1976 = vunpack.c.h.b16 %v761
        %v1977 = vunpack.c.l.b16 %v762
        %v1978 = vunpack.c.h.b16 %v762
        %v1979 = vunpack.c.l.b16 %v763
        %v1980 = vunpack.c.h.b16 %v763
        %v1981 = vunpack.c.l.b16 %v764
        %v1982 = vunpack.c.h.b16 %v764
        %v1983 = vunpack.c.l.b16 %v765
        %v1984 = vunpack.c.h.b16 %v765
        %v1985 = vunpack.c.l.b16 %v766
        %v1986 = vunpack.c.h.b16 %v766
        %v1987 = vunpack.c.l.b16 %v767
        %v1988 = vunpack.c.h.b16 %v767
        %v1989 = vunpack.c.l.b16 %v768
        %v1990 = vunpack.c.h.b16 %v768
        %v1991 = vunpack.c.l.b16 %v769
        %v1992 = vunpack.c.h.b16 %v769
        %v1993 = vunpack.c.l.b16 %v770
        %v1994 = vunpack.c.h.b16 %v770
        %v1995 = vpack.c.b16 %v1235, %v1227
        %v1996 = vpack.c.b16 %v1236, %v1228
        %v1997 = vpack.c.b16 %v1237, %v1229
        %v1998 = vpack.c.b16 %v1238, %v1230
        %v1999 = vpack.c.b16 %v1239, %v1231
        %v2000 = vpack.c.b16 %v1240, %v1232
        %v2001 = vpack.c.b16 %v1241, %v1233
        %v2002 = vpack.c.b16 %v1242, %v1234
        %v2003 = vpack.c.b16 %v1251, %v1243
        %v2004 = vpack.c.b16 %v1252, %v1244
        %v2005 = vpack.c.b16 %v1253, %v1245
        %v2006 = vpack.c.b16 %v1254, %v1246
        %v2007 = vpack.c.b16 %v1255, %v1247
        %v2008 = vpack.c.b16 %v1256, %v1248
        %v2009 = vpack.c.b16 %v1257, %v1249
        %v2010 = vpack.c.b16 %v1258, %v1250
        %v2011 = vpack.c.b16 %v1267, %v1259
        %v2012 = vpack.c.b16 %v1268, %v1260
        %v2013 = vpack.c.b16 %v1269, %v1261
        %v2014 = vpack.c.b16 %v1270, %v1262
        %v2015 = vpack.c.b16 %v1271, %v1263
        %v2016 = vpack.c.b16 %v1272, %v1264
        %v2017 = vpack.c.b16 %v1273, %v1265
        %v2018 = vpack.c.b16 %v1274, %v1266
        %v2019 = vpack.c.b16 %v1283, %v1275
        %v2020 = vpack.c.b16 %v1284, %v1276
        %v2021 = vpack.c.b16 %v1285, %v1277
        %v2022 = vpack.c.b16 %v1286, %v1278
        %v2023 = vpack.c.b16 %v1287, %v1279
        %v2024 = vpack.c.b16 %v1288, %v1280
        %v2025 = vpack.c.b16 %v1289, %v1281
        %v2026 = vpack.c.b16 %v1290, %v1282
        %v2027 = vpack.c.b16 %v1299, %v1291
        %v2028 = vpack.c.b16 %v1300, %v1292
        %v2029 = vpack.c.b16 %v1301, %v1293
        %v2030 = vpack.c.b16 %v1302, %v1294
        %v2031 = vpack.c.b16 %v1303, %v1295
        %v2032 = vpack.c.b16 %v1304, %v1296
        %v2033 = vpack.c.b16 %v1305, %v1297
        %v2034 = vpack.c.b16 %v1306, %v1298
        %v2035 = vpack.c.b16 %v1315, %v1307
        %v2036 = vpack.c.b16 %v1316, %v1308
        %v2037 = vpack.c.b16 %v1317, %v1309
        %v2038 = vpack.c.b16 %v1318, %v1310
        %v2039 = vpack.c.b16 %v1319, %v1311
        %v2040 = vpack.c.b16 %v1320, %v1312
        %v2041 = vpack.c.b16 %v1321, %v1313
        %v2042 = vpack.c.b16 %v1322, %v1314
        %v2043 = vpack.c.b16 %v1331, %v1323
        %v2044 = vpack.c.b16 %v1332, %v1324
        %v2045 = vpack.c.b16 %v1333, %v1325
        %v2046 = vpack.c.b16 %v1334, %v1326
        %v2047 = vpack.c.b16 %v1335, %v1327
        %v2048 = vpack.c.b16 %v1336, %v1328
        %v2049 = vpack.c.b16 %v1337, %v1329
        %v2050 = vpack.c.b16 %v1338, %v1330
        %v2051 = vpack.c.b16 %v1347, %v1339
        %v2052 = vpack.c.b16 %v1348, %v1340
        %v2053 = vpack.c.b16 %v1349, %v1341
        %v2054 = vpack.c.b16 %v1350, %v1342
        %v2055 = vpack.c.b16 %v1351, %v1343
        %v2056 = vpack.c.b16 %v1352, %v1344
        %v2057 = vpack.c.b16 %v1353, %v1345
        %v2058 = vpack.c.b16 %v1354, %v1346
        %v2059 = vpack.c.b16 %v1363, %v1355
        %v2060 = vpack.c.b16 %v1364, %v1356
        %v2061 = vpack.c.b16 %v1365, %v1357
        %v2062 = vpack.c.b16 %v1366, %v1358
        %v2063 = vpack.c.b16 %v1367, %v1359
        %v2064 = vpack.c.b16 %v1368, %v1360
        %v2065 = vpack.c.b16 %v1369, %v1361
        %v2066 = vpack.c.b16 %v1370, %v1362
        %v2067 = vpack.c.b16 %v1379, %v1371
        %v2068 = vpack.c.b16 %v1380, %v1372
        %v2069 = vpack.c.b16 %v1381, %v1373
        %v2070 = vpack.c.b16 %v1382, %v1374
        %v2071 = vpack.c.b16 %v1383, %v1375
        %v2072 = vpack.c.b16 %v1384, %v1376
        %v2073 = vpack.c.b16 %v1385, %v1377
        %v2074 = vpack.c.b16 %v1386, %v1378
        %v2075 = vpack.c.b16 %v1395, %v1387
        %v2076 = vpack.c.b16 %v1396, %v1388
        %v2077 = vpack.c.b16 %v1397, %v1389
        %v2078 = vpack.c.b16 %v1398, %v1390
        %v2079 = vpack.c.b16 %v1399, %v1391
        %v2080 = vpack.c.b16 %v1400, %v1392
        %v2081 = vpack.c.b16 %v1401, %v1393
        %v2082 = vpack.c.b16 %v1402, %v1394
        %v2083 = vpack.c.b16 %v1411, %v1403
        %v2084 = vpack.c.b16 %v1412, %v1404
        %v2085 = vpack.c.b16 %v1413, %v1405
        %v2086 = vpack.c.b16 %v1414, %v1406
        %v2087 = vpack.c.b16 %v1415, %v1407
        %v2088 = vpack.c.b16 %v1416, %v1408
        %v2089 = vpack.c.b16 %v1417, %v1409
        %v2090 = vpack.c.b16 %v1418, %v1410
        %v2091 = vpack.c.b16 %v1427, %v1419
        %v2092 = vpack.c.b16 %v1428, %v1420
        %v2093 = vpack.c.b16 %v1429, %v1421
        %v2094 = vpack.c.b16 %v1430, %v1422
        %v2095 = vpack.c.b16 %v1431, %v1423
        %v2096 = vpack.c.b16 %v1432, %v1424
        %v2097 = vpack.c.b16 %v1433, %v1425
        %v2098 = vpack.c.b16 %v1434, %v1426
        %v2099 = vpack.c.b16 %v1443, %v1435
        %v2100 = vpack.c.b16 %v1444, %v1436
        %v2101 = vpack.c.b16 %v1445, %v1437
        %v2102 = vpack.c.b16 %v1446, %v1438
        %v2103 = vpack.c.b16 %v1447, %v1439
        %v2104 = vpack.c.b16 %v1448, %v1440
        %v2105 = vpack.c.b16 %v1449, %v1441
        %v2106 = vpack.c.b16 %v1450, %v1442
        %v2107 = vpack.c.b16 %v1459, %v1451
        %v2108 = vpack.c.b16 %v1460, %v1452
        %v2109 = vpack.c.b16 %v1461, %v1453
        %v2110 = vpack.c.b16 %v1462, %v1454
        %v2111 = vpack.c.b16 %v1463, %v1455
        %v2112 = vpack.c.b16 %v1464, %v1456
        %v2113 = vpack.c.b16 %v1465, %v1457
        %v2114 = vpack.c.b16 %v1466, %v1458
        %v2115 = vpack.c.b16 %v1475, %v1467
        %v2116 = vpack.c.b16 %v1476, %v1468
        %v2117 = vpack.c.b16 %v1477, %v1469
        %v2118 = vpack.c.b16 %v1478, %v1470
        %v2119 = vpack.c.b16 %v1479, %v1471
        %v2120 = vpack.c.b16 %v1480, %v1472
        %v2121 = vpack.c.b16 %v1481, %v1473
        %v2122 = vpack.c.b16 %v1482, %v1474
        %v2123 = vpack.c.b16 %v1491, %v1483
        %v2124 = vpack.c.b16 %v1492, %v1484
        %v2125 = vpack.c.b16 %v1493, %v1485
        %v2126 = vpack.c.b16 %v1494, %v1486
        %v2127 = vpack.c.b16 %v1495, %v1487
        %v2128 = vpack.c.b16 %v1496, %v1488
        %v2129 = vpack.c.b16 %v1497, %v1489
        %v2130 = vpack.c.b16 %v1498, %v1490
        %v2131 = vpack.c.b16 %v1507, %v1499
        %v2132 = vpack.c.b16 %v1508, %v1500
        %v2133 = vpack.c.b16 %v1509, %v1501
        %v2134 = vpack.c.b16 %v1510, %v1502
        %v2135 = vpack.c.b16 %v1511, %v1503
        %v2136 = vpack.c.b16 %v1512, %v1504
        %v2137 = vpack.c.b16 %v1513, %v1505
        %v2138 = vpack.c.b16 %v1514, %v1506
        %v2139 = vpack.c.b16 %v1523, %v1515
        %v2140 = vpack.c.b16 %v1524, %v1516
        %v2141 = vpack.c.b16 %v1525, %v1517
        %v2142 = vpack.c.b16 %v1526, %v1518
        %v2143 = vpack.c.b16 %v1527, %v1519
        %v2144 = vpack.c.b16 %v1528, %v1520
        %v2145 = vpack.c.b16 %v1529, %v1521
        %v2146 = vpack.c.b16 %v1530, %v1522
        %v2147 = vpack.c.b16 %v1539, %v1531
        %v2148 = vpack.c.b16 %v1540, %v1532
        %v2149 = vpack.c.b16 %v1541, %v1533
        %v2150 = vpack.c.b16 %v1542, %v1534
        %v2151 = vpack.c.b16 %v1543, %v1535
        %v2152 = vpack.c.b16 %v1544, %v1536
        %v2153 = vpack.c.b16 %v1545, %v1537
        %v2154 = vpack.c.b16 %v1546, %v1538
        %v2155 = vpack.c.b16 %v1555, %v1547
        %v2156 = vpack.c.b16 %v1556, %v1548
        %v2157 = vpack.c.b16 %v1557, %v1549
        %v2158 = vpack.c.b16 %v1558, %v1550
        %v2159 = vpack.c.b16 %v1559, %v1551
        %v2160 = vpack.c.b16 %v1560, %v1552
        %v2161 = vpack.c.b16 %v1561, %v1553
        %v2162 = vpack.c.b16 %v1562, %v1554
        %v2163 = vpack.c.b16 %v1571, %v1563
        %v2164 = vpack.c.b16 %v1572, %v1564
        %v2165 = vpack.c.b16 %v1573, %v1565
        %v2166 = vpack.c.b16 %v1574, %v1566
        %v2167 = vpack.c.b16 %v1575, %v1567
        %v2168 = vpack.c.b16 %v1576, %v1568
        %v2169 = vpack.c.b16 %v1577, %v1569
        %v2170 = vpack.c.b16 %v1578, %v1570
        %v2171 = vpack.c.b16 %v1587, %v1579
        %v2172 = vpack.c.b16 %v1588, %v1580
        %v2173 = vpack.c.b16 %v1589, %v1581
        %v2174 = vpack.c.b16 %v1590, %v1582
        %v2175 = vpack.c.b16 %v1591, %v1583
        %v2176 = vpack.c.b16 %v1592, %v1584
        %v2177 = vpack.c.b16 %v1593, %v1585
        %v2178 = vpack.c.b16 %v1594, %v1586
        %v2179 = vpack.c.b16 %v1603, %v1595
        %v2180 = vpack.c.b16 %v1604, %v1596
        %v2181 = vpack.c.b16 %v1605, %v1597
        %v2182 = vpack.c.b16 %v1606, %v1598
        %v2183 = vpack.c.b16 %v1607, %v1599
        %v2184 = vpack.c.b16 %v1608, %v1600
        %v2185 = vpack.c.b16 %v1609, %v1601
        %v2186 = vpack.c.b16 %v1610, %v1602
        %v2187 = vpack.c.b16 %v1619, %v1611
        %v2188 = vpack.c.b16 %v1620, %v1612
        %v2189 = vpack.c.b16 %v1621, %v1613
        %v2190 = vpack.c.b16 %v1622, %v1614
        %v2191 = vpack.c.b16 %v1623, %v1615
        %v2192 = vpack.c.b16 %v1624, %v1616
        %v2193 = vpack.c.b16 %v1625, %v1617
        %v2194 = vpack.c.b16 %v1626, %v1618
        %v2195 = vpack.c.b16 %v1635, %v1627
        %v2196 = vpack.c.b16 %v1636, %v1628
        %v2197 = vpack.c.b16 %v1637, %v1629
        %v2198 = vpack.c.b16 %v1638, %v1630
        %v2199 = vpack.c.b16 %v1639, %v1631
        %v2200 = vpack.c.b16 %v1640, %v1632
        %v2201 = vpack.c.b16 %v1641, %v1633
        %v2202 = vpack.c.b16 %v1642, %v1634
        %v2203 = vpack.c.b16 %v1651, %v1643
        %v2204 = vpack.c.b16 %v1652, %v1644
        %v2205 = vpack.c.b16 %v1653, %v1645
        %v2206 = vpack.c.b16 %v1654, %v1646
        %v2207 = vpack.c.b16 %v1655, %v1647
        %v2208 = vpack.c.b16 %v1656, %v1648
        %v2209 = vpack.c.b16 %v1657, %v1649
        %v2210 = vpack.c.b16 %v1658, %v1650
        %v2211 = vpack.c.b16 %v1667, %v1659
        %v2212 = vpack.c.b16 %v1668, %v1660
        %v2213 = vpack.c.b16 %v1669, %v1661
        %v2214 = vpack.c.b16 %v1670, %v1662
        %v2215 = vpack.c.b16 %v1671, %v1663
        %v2216 = vpack.c.b16 %v1672, %v1664
        %v2217 = vpack.c.b16 %v1673, %v1665
        %v2218 = vpack.c.b16 %v1674, %v1666
        %v2219 = vpack.c.b16 %v1683, %v1675
        %v2220 = vpack.c.b16 %v1684, %v1676
        %v2221 = vpack.c.b16 %v1685, %v1677
        %v2222 = vpack.c.b16 %v1686, %v1678
        %v2223 = vpack.c.b16 %v1687, %v1679
        %v2224 = vpack.c.b16 %v1688, %v1680
        %v2225 = vpack.c.b16 %v1689, %v1681
        %v2226 = vpack.c.b16 %v1690, %v1682
        %v2227 = vpack.c.b16 %v1699, %v1691
        %v2228 = vpack.c.b16 %v1700, %v1692
        %v2229 = vpack.c.b16 %v1701, %v1693
        %v2230 = vpack.c.b16 %v1702, %v1694
        %v2231 = vpack.c.b16 %v1703, %v1695
        %v2232 = vpack.c.b16 %v1704, %v1696
        %v2233 = vpack.c.b16 %v1705, %v1697
        %v2234 = vpack.c.b16 %v1706, %v1698
        %v2235 = vpack.c.b16 %v1715, %v1707
        %v2236 = vpack.c.b16 %v1716, %v1708
        %v2237 = vpack.c.b16 %v1717, %v1709
        %v2238 = vpack.c.b16 %v1718, %v1710
        %v2239 = vpack.c.b16 %v1719, %v1711
        %v2240 = vpack.c.b16 %v1720, %v1712
        %v2241 = vpack.c.b16 %v1721, %v1713
        %v2242 = vpack.c.b16 %v1722, %v1714
        %v2243 = vpack.c.b16 %v1731, %v1723
        %v2244 = vpack.c.b16 %v1732, %v1724
        %v2245 = vpack.c.b16 %v1733, %v1725
        %v2246 = vpack.c.b16 %v1734, %v1726
        %v2247 = vpack.c.b16 %v1735, %v1727
        %v2248 = vpack.c.b16 %v1736, %v1728
        %v2249 = vpack.c.b16 %v1737, %v1729
        %v2250 = vpack.c.b16 %v1738, %v1730
        %v2251 = vpack.c.b16 %v1747, %v1739
        %v2252 = vpack.c.b16 %v1748, %v1740
        %v2253 = vpack.c.b16 %v1749, %v1741
        %v2254 = vpack.c.b16 %v1750, %v1742
        %v2255 = vpack.c.b16 %v1751, %v1743
        %v2256 = vpack.c.b16 %v1752, %v1744
        %v2257 = vpack.c.b16 %v1753, %v1745
        %v2258 = vpack.c.b16 %v1754, %v1746
        %v2259 = vpack.c.b16 %v1763, %v1755
        %v2260 = vpack.c.b16 %v1764, %v1756
        %v2261 = vpack.c.b16 %v1765, %v1757
        %v2262 = vpack.c.b16 %v1766, %v1758
        %v2263 = vpack.c.b16 %v1767, %v1759
        %v2264 = vpack.c.b16 %v1768, %v1760
        %v2265 = vpack.c.b16 %v1769, %v1761
        %v2266 = vpack.c.b16 %v1770, %v1762
        %v2267 = vpack.c.b16 %v1779, %v1771
        %v2268 = vpack.c.b16 %v1780, %v1772
        %v2269 = vpack.c.b16 %v1781, %v1773
        %v2270 = vpack.c.b16 %v1782, %v1774
        %v2271 = vpack.c.b16 %v1783, %v1775
        %v2272 = vpack.c.b16 %v1784, %v1776
        %v2273 = vpack.c.b16 %v1785, %v1777
        %v2274 = vpack.c.b16 %v1786, %v1778
        %v2275 = vpack.c.b16 %v1795, %v1787
        %v2276 = vpack.c.b16 %v1796, %v1788
        %v2277 = vpack.c.b16 %v1797, %v1789
        %v2278 = vpack.c.b16 %v1798, %v1790
        %v2279 = vpack.c.b16 %v1799, %v1791
        %v2280 = vpack.c.b16 %v1800, %v1792
        %v2281 = vpack.c.b16 %v1801, %v1793
        %v2282 = vpack.c.b16 %v1802, %v1794
        %v2283 = vpack.c.b16 %v1811, %v1803
        %v2284 = vpack.c.b16 %v1812, %v1804
        %v2285 = vpack.c.b16 %v1813, %v1805
        %v2286 = vpack.c.b16 %v1814, %v1806
        %v2287 = vpack.c.b16 %v1815, %v1807
        %v2288 = vpack.c.b16 %v1816, %v1808
        %v2289 = vpack.c.b16 %v1817, %v1809
        %v2290 = vpack.c.b16 %v1818, %v1810
        %v2291 = vpack.c.b16 %v1827, %v1819
        %v2292 = vpack.c.b16 %v1828, %v1820
        %v2293 = vpack.c.b16 %v1829, %v1821
        %v2294 = vpack.c.b16 %v1830, %v1822
        %v2295 = vpack.c.b16 %v1831, %v1823
        %v2296 = vpack.c.b16 %v1832, %v1824
        %v2297 = vpack.c.b16 %v1833, %v1825
        %v2298 = vpack.c.b16 %v1834, %v1826
        %v2299 = vpack.c.b16 %v1843, %v1835
        %v2300 = vpack.c.b16 %v1844, %v1836
        %v2301 = vpack.c.b16 %v1845, %v1837
        %v2302 = vpack.c.b16 %v1846, %v1838
        %v2303 = vpack.c.b16 %v1847, %v1839
        %v2304 = vpack.c.b16 %v1848, %v1840
        %v2305 = vpack.c.b16 %v1849, %v1841
        %v2306 = vpack.c.b16 %v1850, %v1842
        %v2307 = vpack.c.b16 %v1859, %v1851
        %v2308 = vpack.c.b16 %v1860, %v1852
        %v2309 = vpack.c.b16 %v1861, %v1853
        %v2310 = vpack.c.b16 %v1862, %v1854
        %v2311 = vpack.c.b16 %v1863, %v1855
        %v2312 = vpack.c.b16 %v1864, %v1856
        %v2313 = vpack.c.b16 %v1865, %v1857
        %v2314 = vpack.c.b16 %v1866, %v1858
        %v2315 = vpack.c.b16 %v1875, %v1867
        %v2316 = vpack.c.b16 %v1876, %v1868
        %v2317 = vpack.c.b16 %v1877, %v1869
        %v2318 = vpack.c.b16 %v1878, %v1870
        %v2319 = vpack.c.b16 %v1879, %v1871
        %v2320 = vpack.c.b16 %v1880, %v1872
        %v2321 = vpack.c.b16 %v1881, %v1873
        %v2322 = vpack.c.b16 %v1882, %v1874
        %v2323 = vpack.c.b16 %v1891, %v1883
        %v2324 = vpack.c.b16 %v1892, %v1884
        %v2325 = vpack.c.b16 %v1893, %v1885
        %v2326 = vpack.c.b16 %v1894, %v1886
        %v2327 = vpack.c.b16 %v1895, %v1887
        %v2328 = vpack.c.b16 %v1896, %v1888
        %v2329 = vpack.c.b16 %v1897, %v1889
        %v2330 = vpack.c.b16 %v1898, %v1890
        %v2331 = vpack.c.b16 %v1907, %v1899
        %v2332 = vpack.c.b16 %v1908, %v1900
        %v2333 = vpack.c.b16 %v1909, %v1901
        %v2334 = vpack.c.b16 %v1910, %v1902
        %v2335 = vpack.c.b16 %v1911, %v1903
        %v2336 = vpack.c.b16 %v1912, %v1904
        %v2337 = vpack.c.b16 %v1913, %v1905
        %v2338 = vpack.c.b16 %v1914, %v1906
        %v2339 = vpack.c.b16 %v1923, %v1915
        %v2340 = vpack.c.b16 %v1924, %v1916
        %v2341 = vpack.c.b16 %v1925, %v1917
        %v2342 = vpack.c.b16 %v1926, %v1918
        %v2343 = vpack.c.b16 %v1927, %v1919
        %v2344 = vpack.c.b16 %v1928, %v1920
        %v2345 = vpack.c.b16 %v1929, %v1921
        %v2346 = vpack.c.b16 %v1930, %v1922
        %v2347 = vpack.c.b16 %v1939, %v1931
        %v2348 = vpack.c.b16 %v1940, %v1932
        %v2349 = vpack.c.b16 %v1941, %v1933
        %v2350 = vpack.c.b16 %v1942, %v1934
        %v2351 = vpack.c.b16 %v1943, %v1935
        %v2352 = vpack.c.b16 %v1944, %v1936
        %v2353 = vpack.c.b16 %v1945, %v1937
        %v2354 = vpack.c.b16 %v1946, %v1938
        %v2355 = vpack.c.b16 %v1955, %v1947
        %v2356 = vpack.c.b16 %v1956, %v1948
        %v2357 = vpack.c.b16 %v1957, %v1949
        %v2358 = vpack.c.b16 %v1958, %v1950
        %v2359 = vpack.c.b16 %v1959, %v1951
        %v2360 = vpack.c.b16 %v1960, %v1952
        %v2361 = vpack.c.b16 %v1961, %v1953
        %v2362 = vpack.c.b16 %v1962, %v1954
        %v2363 = vpack.c.b16 %v1971, %v1963
        %v2364 = vpack.c.b16 %v1972, %v1964
        %v2365 = vpack.c.b16 %v1973, %v1965
        %v2366 = vpack.c.b16 %v1974, %v1966
        %v2367 = vpack.c.b16 %v1975, %v1967
        %v2368 = vpack.c.b16 %v1976, %v1968
        %v2369 = vpack.c.b16 %v1977, %v1969
        %v2370 = vpack.c.b16 %v1978, %v1970
        %v2371 = vpack.c.b16 %v1987, %v1979
        %v2372 = vpack.c.b16 %v1988, %v1980
        %v2373 = vpack.c.b16 %v1989, %v1981
        %v2374 = vpack.c.b16 %v1990, %v1982
        %v2375 = vpack.c.b16 %v1991, %v1983
        %v2376 = vpack.c.b16 %v1992, %v1984
        %v2377 = vpack.c.b16 %v1993, %v1985
        %v2378 = vpack.c.b16 %v1994, %v1986
        %2763 = vmatprep.subr.bf16.mxu0 %v1996
        %2764 = vmatpush1.bf16.msra.mxu0 %v1995
        %2765 = vmatprep.subr.bf16.mxu0 %v2004
        %2766 = vmatpush1.bf16.msra.mxu0 %v2003
        %2767 = vmatprep.subr.bf16.mxu0 %v2012
        %2768 = vmatpush1.bf16.msra.mxu0 %v2011
        %2769 = vmatprep.subr.bf16.mxu0 %v2020
        %2770 = vmatpush1.bf16.msra.mxu0 %v2019
        %2771 = vmatprep.subr.bf16.mxu0 %v2028
        %2772 = vmatpush1.bf16.msra.mxu0 %v2027
        %2773 = vmatprep.subr.bf16.mxu0 %v2036
        %2774 = vmatpush1.bf16.msra.mxu0 %v2035
        %2775 = vmatprep.subr.bf16.mxu0 %v2044
        %2776 = vmatpush1.bf16.msra.mxu0 %v2043
        %2777 = vmatprep.subr.bf16.mxu0 %v2052
        %2778 = vmatpush1.bf16.msra.mxu0 %v2051
        %2779 = vmatprep.subr.bf16.mxu0 %v2060
        %2780 = vmatpush1.bf16.msra.mxu0 %v2059
        %2781 = vmatprep.subr.bf16.mxu0 %v2068
        %2782 = vmatpush1.bf16.msra.mxu0 %v2067
        %2783 = vmatprep.subr.bf16.mxu0 %v2076
        %2784 = vmatpush1.bf16.msra.mxu0 %v2075
        %2785 = vmatprep.subr.bf16.mxu0 %v2084
        %2786 = vmatpush1.bf16.msra.mxu0 %v2083
        %2787 = vmatprep.subr.bf16.mxu0 %v2092
        %2788 = vmatpush1.bf16.msra.mxu0 %v2091
        %2789 = vmatprep.subr.bf16.mxu0 %v2100
        %2790 = vmatpush1.bf16.msra.mxu0 %v2099
        %2791 = vmatprep.subr.bf16.mxu0 %v2108
        %2792 = vmatpush1.bf16.msra.mxu0 %v2107
        %2793 = vmatprep.subr.bf16.mxu0 %v2116
        %2794 = vmatpush1.bf16.msra.mxu0 %v2115
        %2795 = vmatprep.mubr.bf16.mxu0 %v832
        %2796 = vmatmul.mubr.bf16.gmra.mrb[0].mxu0 %v831
        %v2797 = vpop.f32.mrb[0].mxu0
        %v2798 = vadd.f32 %v776, %v2797
        %v2799 = vpop.f32.mrb[0].mxu0
        %v2800 = vadd.f32 %v780, %v2799
        %v2801 = vpop.f32.mrb[0].mxu0
        %v2802 = vadd.f32 %v776, %v2801
        %v2803 = vpop.f32.mrb[0].mxu0
        %v2804 = vadd.f32 %v780, %v2803
        %2805 = vdwg.mxu0
        %2806 = vmatprep.subr.bf16.mxu0 %v2124
        %2807 = vmatpush1.bf16.msra.mxu0 %v2123
        %2808 = vmatprep.subr.bf16.mxu0 %v2132
        %2809 = vmatpush1.bf16.msra.mxu0 %v2131
        %2810 = vmatprep.subr.bf16.mxu0 %v2140
        %2811 = vmatpush1.bf16.msra.mxu0 %v2139
        %2812 = vmatprep.subr.bf16.mxu0 %v2148
        %2813 = vmatpush1.bf16.msra.mxu0 %v2147
        %2814 = vmatprep.subr.bf16.mxu0 %v2156
        %2815 = vmatpush1.bf16.msra.mxu0 %v2155
        %2816 = vmatprep.subr.bf16.mxu0 %v2164
        %2817 = vmatpush1.bf16.msra.mxu0 %v2163
        %2818 = vmatprep.subr.bf16.mxu0 %v2172
        %2819 = vmatpush1.bf16.msra.mxu0 %v2171
        %2820 = vmatprep.subr.bf16.mxu0 %v2180
        %2821 = vmatpush1.bf16.msra.mxu0 %v2179
        %2822 = vmatprep.subr.bf16.mxu0 %v2188
        %2823 = vmatpush1.bf16.msra.mxu0 %v2187
        %2824 = vmatprep.subr.bf16.mxu0 %v2196
        %2825 = vmatpush1.bf16.msra.mxu0 %v2195
        %2826 = vmatprep.subr.bf16.mxu0 %v2204
        %2827 = vmatpush1.bf16.msra.mxu0 %v2203
        %2828 = vmatprep.subr.bf16.mxu0 %v2212
        %2829 = vmatpush1.bf16.msra.mxu0 %v2211
        %2830 = vmatprep.subr.bf16.mxu0 %v2220
        %2831 = vmatpush1.bf16.msra.mxu0 %v2219
        %2832 = vmatprep.subr.bf16.mxu0 %v2228
        %2833 = vmatpush1.bf16.msra.mxu0 %v2227
        %2834 = vmatprep.subr.bf16.mxu0 %v2236
        %2835 = vmatpush1.bf16.msra.mxu0 %v2235
        %2836 = vmatprep.subr.bf16.mxu0 %v2244
        %2837 = vmatpush1.bf16.msra.mxu0 %v2243
        %2838 = vmatprep.mubr.bf16.mxu0 %v834
        %2839 = vmatmul.mubr.bf16.gmra.mrb[0].mxu0 %v833
        %v2840 = vpop.f32.mrb[0].mxu0
        %v2841 = vadd.f32 %v2798, %v2840
        %v2842 = vpop.f32.mrb[0].mxu0
        %v2843 = vadd.f32 %v2800, %v2842
        %v2844 = vpop.f32.mrb[0].mxu0
        %v2845 = vadd.f32 %v2802, %v2844
        %v2846 = vpop.f32.mrb[0].mxu0
        %v2847 = vadd.f32 %v2804, %v2846
        %2848 = vdwg.mxu0
        %2849 = vmatprep.subr.bf16.mxu0 %v2252
        %2850 = vmatpush1.bf16.msra.mxu0 %v2251
        %2851 = vmatprep.subr.bf16.mxu0 %v2260
        %2852 = vmatpush1.bf16.msra.mxu0 %v2259
        %2853 = vmatprep.subr.bf16.mxu0 %v2268
        %2854 = vmatpush1.bf16.msra.mxu0 %v2267
        %2855 = vmatprep.subr.bf16.mxu0 %v2276
        %2856 = vmatpush1.bf16.msra.mxu0 %v2275
        %2857 = vmatprep.subr.bf16.mxu0 %v2284
        %2858 = vmatpush1.bf16.msra.mxu0 %v2283
        %2859 = vmatprep.subr.bf16.mxu0 %v2292
        %2860 = vmatpush1.bf16.msra.mxu0 %v2291
        %2861 = vmatprep.subr.bf16.mxu0 %v2300
        %2862 = vmatpush1.bf16.msra.mxu0 %v2299
        %2863 = vmatprep.subr.bf16.mxu0 %v2308
        %2864 = vmatpush1.bf16.msra.mxu0 %v2307
        %2865 = vmatprep.subr.bf16.mxu0 %v2316
        %2866 = vmatpush1.bf16.msra.mxu0 %v2315
        %2867 = vmatprep.subr.bf16.mxu0 %v2324
        %2868 = vmatpush1.bf16.msra.mxu0 %v2323
        %2869 = vmatprep.subr.bf16.mxu0 %v2332
        %2870 = vmatpush1.bf16.msra.mxu0 %v2331
        %2871 = vmatprep.subr.bf16.mxu0 %v2340
        %2872 = vmatpush1.bf16.msra.mxu0 %v2339
        %2873 = vmatprep.subr.bf16.mxu0 %v2348
        %2874 = vmatpush1.bf16.msra.mxu0 %v2347
        %2875 = vmatprep.subr.bf16.mxu0 %v2356
        %2876 = vmatpush1.bf16.msra.mxu0 %v2355
        %2877 = vmatprep.subr.bf16.mxu0 %v2364
        %2878 = vmatpush1.bf16.msra.mxu0 %v2363
        %2879 = vmatprep.subr.bf16.mxu0 %v2372
        %2880 = vmatpush1.bf16.msra.mxu0 %v2371
        %2881 = vmatprep.mubr.bf16.mxu0 %v836
        %2882 = vmatmul.mubr.bf16.gmra.mrb[0].mxu0 %v835
        %v2883 = vpop.f32.mrb[0].mxu0
        %v2884 = vadd.f32 %v2841, %v2883
        %v2885 = vpop.f32.mrb[0].mxu0
        %v2886 = vadd.f32 %v2843, %v2885
        %v2887 = vpop.f32.mrb[0].mxu0
        %v2888 = vadd.f32 %v2845, %v2887
        %v2889 = vpop.f32.mrb[0].mxu0
        %v2890 = vadd.f32 %v2847, %v2889
        %2891 = vdwg.mxu0
        %2892 = vmatprep.subr.bf16.mxu0 %v1998
        %2893 = vmatpush1.bf16.msra.mxu0 %v1997
        %2894 = vmatprep.subr.bf16.mxu0 %v2006
        %2895 = vmatpush1.bf16.msra.mxu0 %v2005
        %2896 = vmatprep.subr.bf16.mxu0 %v2014
        %2897 = vmatpush1.bf16.msra.mxu0 %v2013
        %2898 = vmatprep.subr.bf16.mxu0 %v2022
        %2899 = vmatpush1.bf16.msra.mxu0 %v2021
        %2900 = vmatprep.subr.bf16.mxu0 %v2030
        %2901 = vmatpush1.bf16.msra.mxu0 %v2029
        %2902 = vmatprep.subr.bf16.mxu0 %v2038
        %2903 = vmatpush1.bf16.msra.mxu0 %v2037
        %2904 = vmatprep.subr.bf16.mxu0 %v2046
        %2905 = vmatpush1.bf16.msra.mxu0 %v2045
        %2906 = vmatprep.subr.bf16.mxu0 %v2054
        %2907 = vmatpush1.bf16.msra.mxu0 %v2053
        %2908 = vmatprep.subr.bf16.mxu0 %v2062
        %2909 = vmatpush1.bf16.msra.mxu0 %v2061
        %2910 = vmatprep.subr.bf16.mxu0 %v2070
        %2911 = vmatpush1.bf16.msra.mxu0 %v2069
        %2912 = vmatprep.subr.bf16.mxu0 %v2078
        %2913 = vmatpush1.bf16.msra.mxu0 %v2077
        %2914 = vmatprep.subr.bf16.mxu0 %v2086
        %2915 = vmatpush1.bf16.msra.mxu0 %v2085
        %2916 = vmatprep.subr.bf16.mxu0 %v2094
        %2917 = vmatpush1.bf16.msra.mxu0 %v2093
        %2918 = vmatprep.subr.bf16.mxu0 %v2102
        %2919 = vmatpush1.bf16.msra.mxu0 %v2101
        %2920 = vmatprep.subr.bf16.mxu0 %v2110
        %2921 = vmatpush1.bf16.msra.mxu0 %v2109
        %2922 = vmatprep.subr.bf16.mxu0 %v2118
        %2923 = vmatpush1.bf16.msra.mxu0 %v2117
        %2924 = vmatprep.mubr.bf16.mxu0 %v832
        %2925 = vmatmul.mubr.bf16.gmra.mrb[0].mxu0 %v831
        %v2926 = vpop.f32.mrb[0].mxu0
        %v2927 = vadd.f32 %v784, %v2926
        %v2928 = vpop.f32.mrb[0].mxu0
        %v2929 = vadd.f32 %v788, %v2928
        %v2930 = vpop.f32.mrb[0].mxu0
        %v2931 = vadd.f32 %v784, %v2930
        %v2932 = vpop.f32.mrb[0].mxu0
        %v2933 = vadd.f32 %v788, %v2932
        %2934 = vdwg.mxu0
        %2935 = vmatprep.subr.bf16.mxu0 %v2126
        %2936 = vmatpush1.bf16.msra.mxu0 %v2125
        %2937 = vmatprep.subr.bf16.mxu0 %v2134
        %2938 = vmatpush1.bf16.msra.mxu0 %v2133
        %2939 = vmatprep.subr.bf16.mxu0 %v2142
        %2940 = vmatpush1.bf16.msra.mxu0 %v2141
        %2941 = vmatprep.subr.bf16.mxu0 %v2150
        %2942 = vmatpush1.bf16.msra.mxu0 %v2149
        %2943 = vmatprep.subr.bf16.mxu0 %v2158
        %2944 = vmatpush1.bf16.msra.mxu0 %v2157
        %2945 = vmatprep.subr.bf16.mxu0 %v2166
        %2946 = vmatpush1.bf16.msra.mxu0 %v2165
        %2947 = vmatprep.subr.bf16.mxu0 %v2174
        %2948 = vmatpush1.bf16.msra.mxu0 %v2173
        %2949 = vmatprep.subr.bf16.mxu0 %v2182
        %2950 = vmatpush1.bf16.msra.mxu0 %v2181
        %2951 = vmatprep.subr.bf16.mxu0 %v2190
        %2952 = vmatpush1.bf16.msra.mxu0 %v2189
        %2953 = vmatprep.subr.bf16.mxu0 %v2198
        %2954 = vmatpush1.bf16.msra.mxu0 %v2197
        %2955 = vmatprep.subr.bf16.mxu0 %v2206
        %2956 = vmatpush1.bf16.msra.mxu0 %v2205
        %2957 = vmatprep.subr.bf16.mxu0 %v2214
        %2958 = vmatpush1.bf16.msra.mxu0 %v2213
        %2959 = vmatprep.subr.bf16.mxu0 %v2222
        %2960 = vmatpush1.bf16.msra.mxu0 %v2221
        %2961 = vmatprep.subr.bf16.mxu0 %v2230
        %2962 = vmatpush1.bf16.msra.mxu0 %v2229
        %2963 = vmatprep.subr.bf16.mxu0 %v2238
        %2964 = vmatpush1.bf16.msra.mxu0 %v2237
        %2965 = vmatprep.subr.bf16.mxu0 %v2246
        %2966 = vmatpush1.bf16.msra.mxu0 %v2245
        %2967 = vmatprep.mubr.bf16.mxu0 %v834
        %2968 = vmatmul.mubr.bf16.gmra.mrb[0].mxu0 %v833
        %v2969 = vpop.f32.mrb[0].mxu0
        %v2970 = vadd.f32 %v2927, %v2969
        %v2971 = vpop.f32.mrb[0].mxu0
        %v2972 = vadd.f32 %v2929, %v2971
        %v2973 = vpop.f32.mrb[0].mxu0
        %v2974 = vadd.f32 %v2931, %v2973
        %v2975 = vpop.f32.mrb[0].mxu0
        %v2976 = vadd.f32 %v2933, %v2975
        %2977 = vdwg.mxu0
        %2978 = vmatprep.subr.bf16.mxu0 %v2254
        %2979 = vmatpush1.bf16.msra.mxu0 %v2253
        %2980 = vmatprep.subr.bf16.mxu0 %v2262
        %2981 = vmatpush1.bf16.msra.mxu0 %v2261
        %2982 = vmatprep.subr.bf16.mxu0 %v2270
        %2983 = vmatpush1.bf16.msra.mxu0 %v2269
        %2984 = vmatprep.subr.bf16.mxu0 %v2278
        %2985 = vmatpush1.bf16.msra.mxu0 %v2277
        %2986 = vmatprep.subr.bf16.mxu0 %v2286
        %2987 = vmatpush1.bf16.msra.mxu0 %v2285
        %2988 = vmatprep.subr.bf16.mxu0 %v2294
        %2989 = vmatpush1.bf16.msra.mxu0 %v2293
        %2990 = vmatprep.subr.bf16.mxu0 %v2302
        %2991 = vmatpush1.bf16.msra.mxu0 %v2301
        %2992 = vmatprep.subr.bf16.mxu0 %v2310
        %2993 = vmatpush1.bf16.msra.mxu0 %v2309
        %2994 = vmatprep.subr.bf16.mxu0 %v2318
        %2995 = vmatpush1.bf16.msra.mxu0 %v2317
        %2996 = vmatprep.subr.bf16.mxu0 %v2326
        %2997 = vmatpush1.bf16.msra.mxu0 %v2325
        %2998 = vmatprep.subr.bf16.mxu0 %v2334
        %2999 = vmatpush1.bf16.msra.mxu0 %v2333
        %3000 = vmatprep.subr.bf16.mxu0 %v2342
        %3001 = vmatpush1.bf16.msra.mxu0 %v2341
        %3002 = vmatprep.subr.bf16.mxu0 %v2350
        %3003 = vmatpush1.bf16.msra.mxu0 %v2349
        %3004 = vmatprep.subr.bf16.mxu0 %v2358
        %3005 = vmatpush1.bf16.msra.mxu0 %v2357
        %3006 = vmatprep.subr.bf16.mxu0 %v2366
        %3007 = vmatpush1.bf16.msra.mxu0 %v2365
        %3008 = vmatprep.subr.bf16.mxu0 %v2374
        %3009 = vmatpush1.bf16.msra.mxu0 %v2373
        %3010 = vmatprep.mubr.bf16.mxu0 %v836
        %3011 = vmatmul.mubr.bf16.gmra.mrb[0].mxu0 %v835
        %v3012 = vpop.f32.mrb[0].mxu0
        %v3013 = vadd.f32 %v2970, %v3012
        %v3014 = vpop.f32.mrb[0].mxu0
        %v3015 = vadd.f32 %v2972, %v3014
        %v3016 = vpop.f32.mrb[0].mxu0
        %v3017 = vadd.f32 %v2974, %v3016
        %v3018 = vpop.f32.mrb[0].mxu0
        %v3019 = vadd.f32 %v2976, %v3018
        %3020 = vdwg.mxu0
        %3021 = vmatprep.subr.bf16.mxu0 %v2000
        %3022 = vmatpush1.bf16.msra.mxu0 %v1999
        %3023 = vmatprep.subr.bf16.mxu0 %v2008
        %3024 = vmatpush1.bf16.msra.mxu0 %v2007
        %3025 = vmatprep.subr.bf16.mxu0 %v2016
        %3026 = vmatpush1.bf16.msra.mxu0 %v2015
        %3027 = vmatprep.subr.bf16.mxu0 %v2024
        %3028 = vmatpush1.bf16.msra.mxu0 %v2023
        %3029 = vmatprep.subr.bf16.mxu0 %v2032
        %3030 = vmatpush1.bf16.msra.mxu0 %v2031
        %3031 = vmatprep.subr.bf16.mxu0 %v2040
        %3032 = vmatpush1.bf16.msra.mxu0 %v2039
        %3033 = vmatprep.subr.bf16.mxu0 %v2048
        %3034 = vmatpush1.bf16.msra.mxu0 %v2047
        %3035 = vmatprep.subr.bf16.mxu0 %v2056
        %3036 = vmatpush1.bf16.msra.mxu0 %v2055
        %3037 = vmatprep.subr.bf16.mxu0 %v2064
        %3038 = vmatpush1.bf16.msra.mxu0 %v2063
        %3039 = vmatprep.subr.bf16.mxu0 %v2072
        %3040 = vmatpush1.bf16.msra.mxu0 %v2071
        %3041 = vmatprep.subr.bf16.mxu0 %v2080
        %3042 = vmatpush1.bf16.msra.mxu0 %v2079
        %3043 = vmatprep.subr.bf16.mxu0 %v2088
        %3044 = vmatpush1.bf16.msra.mxu0 %v2087
        %3045 = vmatprep.subr.bf16.mxu0 %v2096
        %3046 = vmatpush1.bf16.msra.mxu0 %v2095
        %3047 = vmatprep.subr.bf16.mxu0 %v2104
        %3048 = vmatpush1.bf16.msra.mxu0 %v2103
        %3049 = vmatprep.subr.bf16.mxu0 %v2112
        %3050 = vmatpush1.bf16.msra.mxu0 %v2111
        %3051 = vmatprep.subr.bf16.mxu0 %v2120
        %3052 = vmatpush1.bf16.msra.mxu0 %v2119
        %3053 = vmatprep.mubr.bf16.mxu0 %v832
        %3054 = vmatmul.mubr.bf16.gmra.mrb[0].mxu0 %v831
        %v3055 = vpop.f32.mrb[0].mxu0
        %v3056 = vadd.f32 %v792, %v3055
        %v3057 = vpop.f32.mrb[0].mxu0
        %v3058 = vadd.f32 %v796, %v3057
        %v3059 = vpop.f32.mrb[0].mxu0
        %v3060 = vadd.f32 %v792, %v3059
        %v3061 = vpop.f32.mrb[0].mxu0
        %v3062 = vadd.f32 %v796, %v3061
        %3063 = vdwg.mxu0
        %3064 = vmatprep.subr.bf16.mxu0 %v2128
        %3065 = vmatpush1.bf16.msra.mxu0 %v2127
        %3066 = vmatprep.subr.bf16.mxu0 %v2136
        %3067 = vmatpush1.bf16.msra.mxu0 %v2135
        %3068 = vmatprep.subr.bf16.mxu0 %v2144
        %3069 = vmatpush1.bf16.msra.mxu0 %v2143
        %3070 = vmatprep.subr.bf16.mxu0 %v2152
        %3071 = vmatpush1.bf16.msra.mxu0 %v2151
        %3072 = vmatprep.subr.bf16.mxu0 %v2160
        %3073 = vmatpush1.bf16.msra.mxu0 %v2159
        %3074 = vmatprep.subr.bf16.mxu0 %v2168
        %3075 = vmatpush1.bf16.msra.mxu0 %v2167
        %3076 = vmatprep.subr.bf16.mxu0 %v2176
        %3077 = vmatpush1.bf16.msra.mxu0 %v2175
        %3078 = vmatprep.subr.bf16.mxu0 %v2184
        %3079 = vmatpush1.bf16.msra.mxu0 %v2183
        %3080 = vmatprep.subr.bf16.mxu0 %v2192
        %3081 = vmatpush1.bf16.msra.mxu0 %v2191
        %3082 = vmatprep.subr.bf16.mxu0 %v2200
        %3083 = vmatpush1.bf16.msra.mxu0 %v2199
        %3084 = vmatprep.subr.bf16.mxu0 %v2208
        %3085 = vmatpush1.bf16.msra.mxu0 %v2207
        %3086 = vmatprep.subr.bf16.mxu0 %v2216
        %3087 = vmatpush1.bf16.msra.mxu0 %v2215
        %3088 = vmatprep.subr.bf16.mxu0 %v2224
        %3089 = vmatpush1.bf16.msra.mxu0 %v2223
        %3090 = vmatprep.subr.bf16.mxu0 %v2232
        %3091 = vmatpush1.bf16.msra.mxu0 %v2231
        %3092 = vmatprep.subr.bf16.mxu0 %v2240
        %3093 = vmatpush1.bf16.msra.mxu0 %v2239
        %3094 = vmatprep.subr.bf16.mxu0 %v2248
        %3095 = vmatpush1.bf16.msra.mxu0 %v2247
        %3096 = vmatprep.mubr.bf16.mxu0 %v834
        %3097 = vmatmul.mubr.bf16.gmra.mrb[0].mxu0 %v833
        %v3098 = vpop.f32.mrb[0].mxu0
        %v3099 = vadd.f32 %v3056, %v3098
        %v3100 = vpop.f32.mrb[0].mxu0
        %v3101 = vadd.f32 %v3058, %v3100
        %v3102 = vpop.f32.mrb[0].mxu0
        %v3103 = vadd.f32 %v3060, %v3102
        %v3104 = vpop.f32.mrb[0].mxu0
        %v3105 = vadd.f32 %v3062, %v3104
        %3106 = vdwg.mxu0
        %3107 = vmatprep.subr.bf16.mxu0 %v2256
        %3108 = vmatpush1.bf16.msra.mxu0 %v2255
        %3109 = vmatprep.subr.bf16.mxu0 %v2264
        %3110 = vmatpush1.bf16.msra.mxu0 %v2263
        %3111 = vmatprep.subr.bf16.mxu0 %v2272
        %3112 = vmatpush1.bf16.msra.mxu0 %v2271
        %3113 = vmatprep.subr.bf16.mxu0 %v2280
        %3114 = vmatpush1.bf16.msra.mxu0 %v2279
        %3115 = vmatprep.subr.bf16.mxu0 %v2288
        %3116 = vmatpush1.bf16.msra.mxu0 %v2287
        %3117 = vmatprep.subr.bf16.mxu0 %v2296
        %3118 = vmatpush1.bf16.msra.mxu0 %v2295
        %3119 = vmatprep.subr.bf16.mxu0 %v2304
        %3120 = vmatpush1.bf16.msra.mxu0 %v2303
        %3121 = vmatprep.subr.bf16.mxu0 %v2312
        %3122 = vmatpush1.bf16.msra.mxu0 %v2311
        %3123 = vmatprep.subr.bf16.mxu0 %v2320
        %3124 = vmatpush1.bf16.msra.mxu0 %v2319
        %3125 = vmatprep.subr.bf16.mxu0 %v2328
        %3126 = vmatpush1.bf16.msra.mxu0 %v2327
        %3127 = vmatprep.subr.bf16.mxu0 %v2336
        %3128 = vmatpush1.bf16.msra.mxu0 %v2335
        %3129 = vmatprep.subr.bf16.mxu0 %v2344
        %3130 = vmatpush1.bf16.msra.mxu0 %v2343
        %3131 = vmatprep.subr.bf16.mxu0 %v2352
        %3132 = vmatpush1.bf16.msra.mxu0 %v2351
        %3133 = vmatprep.subr.bf16.mxu0 %v2360
        %3134 = vmatpush1.bf16.msra.mxu0 %v2359
        %3135 = vmatprep.subr.bf16.mxu0 %v2368
        %3136 = vmatpush1.bf16.msra.mxu0 %v2367
        %3137 = vmatprep.subr.bf16.mxu0 %v2376
        %3138 = vmatpush1.bf16.msra.mxu0 %v2375
        %3139 = vmatprep.mubr.bf16.mxu0 %v836
        %3140 = vmatmul.mubr.bf16.gmra.mrb[0].mxu0 %v835
        %v3141 = vpop.f32.mrb[0].mxu0
        %v3142 = vadd.f32 %v3099, %v3141
        %v3143 = vpop.f32.mrb[0].mxu0
        %v3144 = vadd.f32 %v3101, %v3143
        %v3145 = vpop.f32.mrb[0].mxu0
        %v3146 = vadd.f32 %v3103, %v3145
        %v3147 = vpop.f32.mrb[0].mxu0
        %v3148 = vadd.f32 %v3105, %v3147
        %3149 = vdwg.mxu0
        %3150 = vmatprep.subr.bf16.mxu0 %v2002
        %3151 = vmatpush1.bf16.msra.mxu0 %v2001
        %3152 = vmatprep.subr.bf16.mxu0 %v2010
        %3153 = vmatpush1.bf16.msra.mxu0 %v2009
        %3154 = vmatprep.subr.bf16.mxu0 %v2018
        %3155 = vmatpush1.bf16.msra.mxu0 %v2017
        %3156 = vmatprep.subr.bf16.mxu0 %v2026
        %3157 = vmatpush1.bf16.msra.mxu0 %v2025
        %3158 = vmatprep.subr.bf16.mxu0 %v2034
        %3159 = vmatpush1.bf16.msra.mxu0 %v2033
        %3160 = vmatprep.subr.bf16.mxu0 %v2042
        %3161 = vmatpush1.bf16.msra.mxu0 %v2041
        %3162 = vmatprep.subr.bf16.mxu0 %v2050
        %3163 = vmatpush1.bf16.msra.mxu0 %v2049
        %3164 = vmatprep.subr.bf16.mxu0 %v2058
        %3165 = vmatpush1.bf16.msra.mxu0 %v2057
        %3166 = vmatprep.subr.bf16.mxu0 %v2066
        %3167 = vmatpush1.bf16.msra.mxu0 %v2065
        %3168 = vmatprep.subr.bf16.mxu0 %v2074
        %3169 = vmatpush1.bf16.msra.mxu0 %v2073
        %3170 = vmatprep.subr.bf16.mxu0 %v2082
        %3171 = vmatpush1.bf16.msra.mxu0 %v2081
        %3172 = vmatprep.subr.bf16.mxu0 %v2090
        %3173 = vmatpush1.bf16.msra.mxu0 %v2089
        %3174 = vmatprep.subr.bf16.mxu0 %v2098
        %3175 = vmatpush1.bf16.msra.mxu0 %v2097
        %3176 = vmatprep.subr.bf16.mxu0 %v2106
        %3177 = vmatpush1.bf16.msra.mxu0 %v2105
        %3178 = vmatprep.subr.bf16.mxu0 %v2114
        %3179 = vmatpush1.bf16.msra.mxu0 %v2113
        %3180 = vmatprep.subr.bf16.mxu0 %v2122
        %3181 = vmatpush1.bf16.msra.mxu0 %v2121
        %3182 = vmatprep.mubr.bf16.mxu0 %v832
        %3183 = vmatmul.mubr.bf16.gmra.mrb[0].mxu0 %v831
        %v3184 = vpop.f32.mrb[0].mxu0
        %v3185 = vadd.f32 %v800, %v3184
        %v3186 = vpop.f32.mrb[0].mxu0
        %v3187 = vadd.f32 %v804, %v3186
        %v3188 = vpop.f32.mrb[0].mxu0
        %v3189 = vadd.f32 %v800, %v3188
        %v3190 = vpop.f32.mrb[0].mxu0
        %v3191 = vadd.f32 %v804, %v3190
        %3192 = vdwg.mxu0
        %3193 = vmatprep.subr.bf16.mxu0 %v2130
        %3194 = vmatpush1.bf16.msra.mxu0 %v2129
        %3195 = vmatprep.subr.bf16.mxu0 %v2138
        %3196 = vmatpush1.bf16.msra.mxu0 %v2137
        %3197 = vmatprep.subr.bf16.mxu0 %v2146
        %3198 = vmatpush1.bf16.msra.mxu0 %v2145
        %3199 = vmatprep.subr.bf16.mxu0 %v2154
        %3200 = vmatpush1.bf16.msra.mxu0 %v2153
        %3201 = vmatprep.subr.bf16.mxu0 %v2162
        %3202 = vmatpush1.bf16.msra.mxu0 %v2161
        %3203 = vmatprep.subr.bf16.mxu0 %v2170
        %3204 = vmatpush1.bf16.msra.mxu0 %v2169
        %3205 = vmatprep.subr.bf16.mxu0 %v2178
        %3206 = vmatpush1.bf16.msra.mxu0 %v2177
        %3207 = vmatprep.subr.bf16.mxu0 %v2186
        %3208 = vmatpush1.bf16.msra.mxu0 %v2185
        %3209 = vmatprep.subr.bf16.mxu0 %v2194
        %3210 = vmatpush1.bf16.msra.mxu0 %v2193
        %3211 = vmatprep.subr.bf16.mxu0 %v2202
        %3212 = vmatpush1.bf16.msra.mxu0 %v2201
        %3213 = vmatprep.subr.bf16.mxu0 %v2210
        %3214 = vmatpush1.bf16.msra.mxu0 %v2209
        %3215 = vmatprep.subr.bf16.mxu0 %v2218
        %3216 = vmatpush1.bf16.msra.mxu0 %v2217
        %3217 = vmatprep.subr.bf16.mxu0 %v2226
        %3218 = vmatpush1.bf16.msra.mxu0 %v2225
        %3219 = vmatprep.subr.bf16.mxu0 %v2234
        %3220 = vmatpush1.bf16.msra.mxu0 %v2233
        %3221 = vmatprep.subr.bf16.mxu0 %v2242
        %3222 = vmatpush1.bf16.msra.mxu0 %v2241
        %3223 = vmatprep.subr.bf16.mxu0 %v2250
        %3224 = vmatpush1.bf16.msra.mxu0 %v2249
        %3225 = vmatprep.mubr.bf16.mxu0 %v834
        %3226 = vmatmul.mubr.bf16.gmra.mrb[0].mxu0 %v833
        %v3227 = vpop.f32.mrb[0].mxu0
        %v3228 = vadd.f32 %v3185, %v3227
        %v3229 = vpop.f32.mrb[0].mxu0
        %v3230 = vadd.f32 %v3187, %v3229
        %v3231 = vpop.f32.mrb[0].mxu0
        %v3232 = vadd.f32 %v3189, %v3231
        %v3233 = vpop.f32.mrb[0].mxu0
        %v3234 = vadd.f32 %v3191, %v3233
        %3235 = vdwg.mxu0
        %3236 = vmatprep.subr.bf16.mxu0 %v2258
        %3237 = vmatpush1.bf16.msra.mxu0 %v2257
        %3238 = vmatprep.subr.bf16.mxu0 %v2266
        %3239 = vmatpush1.bf16.msra.mxu0 %v2265
        %3240 = vmatprep.subr.bf16.mxu0 %v2274
        %3241 = vmatpush1.bf16.msra.mxu0 %v2273
        %3242 = vmatprep.subr.bf16.mxu0 %v2282
        %3243 = vmatpush1.bf16.msra.mxu0 %v2281
        %3244 = vmatprep.subr.bf16.mxu0 %v2290
        %3245 = vmatpush1.bf16.msra.mxu0 %v2289
        %3246 = vmatprep.subr.bf16.mxu0 %v2298
        %3247 = vmatpush1.bf16.msra.mxu0 %v2297
        %3248 = vmatprep.subr.bf16.mxu0 %v2306
        %3249 = vmatpush1.bf16.msra.mxu0 %v2305
        %3250 = vmatprep.subr.bf16.mxu0 %v2314
        %3251 = vmatpush1.bf16.msra.mxu0 %v2313
        %3252 = vmatprep.subr.bf16.mxu0 %v2322
        %3253 = vmatpush1.bf16.msra.mxu0 %v2321
        %3254 = vmatprep.subr.bf16.mxu0 %v2330
        %3255 = vmatpush1.bf16.msra.mxu0 %v2329
        %3256 = vmatprep.subr.bf16.mxu0 %v2338
        %3257 = vmatpush1.bf16.msra.mxu0 %v2337
        %3258 = vmatprep.subr.bf16.mxu0 %v2346
        %3259 = vmatpush1.bf16.msra.mxu0 %v2345
        %3260 = vmatprep.subr.bf16.mxu0 %v2354
        %3261 = vmatpush1.bf16.msra.mxu0 %v2353
        %3262 = vmatprep.subr.bf16.mxu0 %v2362
        %3263 = vmatpush1.bf16.msra.mxu0 %v2361
        %3264 = vmatprep.subr.bf16.mxu0 %v2370
        %3265 = vmatpush1.bf16.msra.mxu0 %v2369
        %3266 = vmatprep.subr.bf16.mxu0 %v2378
        %3267 = vmatpush1.bf16.msra.mxu0 %v2377
        %3268 = vmatprep.mubr.bf16.mxu0 %v836
        %3269 = vmatmul.mubr.bf16.gmra.mrb[0].mxu0 %v835
        %v3270 = vpop.f32.mrb[0].mxu0
        %v3271 = vadd.f32 %v3228, %v3270
        %v3272 = vpop.f32.mrb[0].mxu0
        %v3273 = vadd.f32 %v3230, %v3272
        %v3274 = vpop.f32.mrb[0].mxu0
        %v3275 = vadd.f32 %v3232, %v3274
        %v3276 = vpop.f32.mrb[0].mxu0
        %v3277 = vadd.f32 %v3234, %v3276
        %3278 = vdwg.mxu0
        %v3279 = vmul.f32 %v2884, 0.5
        %v3280 = vmul.f32 %v2886, 0.5
        %v3281 = vmul.f32 %v3013, 0.5
        %v3282 = vmul.f32 %v3015, 0.5
        %v3283 = vmul.f32 %v3142, 0.5
        %v3284 = vmul.f32 %v3144, 0.5
        %v3285 = vmul.f32 %v3271, 0.5
        %v3286 = vmul.f32 %v3273, 0.5
        %v3287 = vmul.f32 %v2888, 0.5
        %v3288 = vmul.f32 %v2890, 0.5
        %v3289 = vmul.f32 %v3017, 0.5
        %v3290 = vmul.f32 %v3019, 0.5
        %v3291 = vmul.f32 %v3146, 0.5
        %v3292 = vmul.f32 %v3148, 0.5
        %v3293 = vmul.f32 %v3275, 0.5
        %v3294 = vmul.f32 %v3277, 0.5
        %v3295 = vmul.f32 %v2884, 0.70710677
        %v3296 = vmul.f32 %v2886, 0.70710677
        %v3297 = vmul.f32 %v3013, 0.70710677
        %v3298 = vmul.f32 %v3015, 0.70710677
        %v3299 = vmul.f32 %v3142, 0.70710677
        %v3300 = vmul.f32 %v3144, 0.70710677
        %v3301 = vmul.f32 %v3271, 0.70710677
        %v3302 = vmul.f32 %v3273, 0.70710677
        %v3303 = vmul.f32 %v2888, 0.70710677
        %v3304 = vmul.f32 %v2890, 0.70710677
        %v3305 = vmul.f32 %v3017, 0.70710677
        %v3306 = vmul.f32 %v3019, 0.70710677
        %v3307 = vmul.f32 %v3146, 0.70710677
        %v3308 = vmul.f32 %v3148, 0.70710677
        %v3309 = vmul.f32 %v3275, 0.70710677
        %v3310 = vmul.f32 %v3277, 0.70710677
        %v3311 = verf.f32.pop %v3295
        %v3312 = verf.f32.pop %v3296
        %v3313 = verf.f32.pop %v3297
        %v3314 = verf.f32.pop %v3298
        %v3315 = verf.f32.pop %v3299
        %v3316 = verf.f32.pop %v3300
        %v3317 = verf.f32.pop %v3301
        %v3318 = verf.f32.pop %v3302
        %v3319 = verf.f32.pop %v3303
        %v3320 = verf.f32.pop %v3304
        %v3321 = verf.f32.pop %v3305
        %v3322 = verf.f32.pop %v3306
        %v3323 = verf.f32.pop %v3307
        %v3324 = verf.f32.pop %v3308
        %v3325 = verf.f32.pop %v3309
        %v3326 = verf.f32.pop %v3310
        %v3327 = vadd.f32 %v3311, 1.0
        %v3328 = vadd.f32 %v3312, 1.0
        %v3329 = vadd.f32 %v3313, 1.0
        %v3330 = vadd.f32 %v3314, 1.0
        %v3331 = vadd.f32 %v3315, 1.0
        %v3332 = vadd.f32 %v3316, 1.0
        %v3333 = vadd.f32 %v3317, 1.0
        %v3334 = vadd.f32 %v3318, 1.0
        %v3335 = vadd.f32 %v3319, 1.0
        %v3336 = vadd.f32 %v3320, 1.0
        %v3337 = vadd.f32 %v3321, 1.0
        %v3338 = vadd.f32 %v3322, 1.0
        %v3339 = vadd.f32 %v3323, 1.0
        %v3340 = vadd.f32 %v3324, 1.0
        %v3341 = vadd.f32 %v3325, 1.0
        %v3342 = vadd.f32 %v3326, 1.0
        %v3343 = vmul.f32 %v3279, %v3327
        %v3344 = vmul.f32 %v3280, %v3328
        %v3345 = vmul.f32 %v3281, %v3329
        %v3346 = vmul.f32 %v3282, %v3330
        %v3347 = vmul.f32 %v3283, %v3331
        %v3348 = vmul.f32 %v3284, %v3332
        %v3349 = vmul.f32 %v3285, %v3333
        %v3350 = vmul.f32 %v3286, %v3334
        %v3351 = vmul.f32 %v3287, %v3335
        %v3352 = vmul.f32 %v3288, %v3336
        %v3353 = vmul.f32 %v3289, %v3337
        %v3354 = vmul.f32 %v3290, %v3338
        %v3355 = vmul.f32 %v3291, %v3339
        %v3356 = vmul.f32 %v3292, %v3340
        %v3357 = vmul.f32 %v3293, %v3341
        %v3358 = vmul.f32 %v3294, %v3342
        %v3359 = vld [vmem:[#allocation2] sm:$0xff]
        %v3360 = vld [vmem:[#allocation2 + $0x8] sm:$0xff]
        %v3361 = vld [vmem:[#allocation2 + $0x10] sm:$0xff]
        %v3362 = vld [vmem:[#allocation2 + $0x18] sm:$0xff]
        %v3363 = vld [vmem:[#allocation2 + $0x20] sm:$0xff]
        %v3364 = vld [vmem:[#allocation2 + $0x28] sm:$0xff]
        %v3365 = vld [vmem:[#allocation2 + $0x30] sm:$0xff]
        %v3366 = vld [vmem:[#allocation2 + $0x38] sm:$0xff]
        %v3367 = vld [vmem:[#allocation2 + $0x40] sm:$0xff]
        %v3368 = vld [vmem:[#allocation2 + $0x48] sm:$0xff]
        %v3369 = vld [vmem:[#allocation2 + $0x50] sm:$0xff]
        %v3370 = vld [vmem:[#allocation2 + $0x58] sm:$0xff]
        %v3371 = vpack.c.bf16 %v3351, %v3343
        %v3372 = vpack.c.bf16 %v3352, %v3344
        %v3373 = vpack.c.bf16 %v3353, %v3345
        %v3374 = vpack.c.bf16 %v3354, %v3346
        %v3375 = vpack.c.bf16 %v3355, %v3347
        %v3376 = vpack.c.bf16 %v3356, %v3348
        %v3377 = vpack.c.bf16 %v3357, %v3349
        %v3378 = vpack.c.bf16 %v3358, %v3350
        %v3379 = vld [vmem:[%s324] sm:$0xff]
        %v3380 = vld [vmem:[%s324 + $0x8] sm:$0xff]
        %v3381 = vld [vmem:[%s324 + $0x10] sm:$0xff]
        %v3382 = vld [vmem:[%s324 + $0x18] sm:$0xff]
        %v3383 = vld [vmem:[%s324 + $0x20] sm:$0xff]
        %v3384 = vld [vmem:[%s324 + $0x28] sm:$0xff]
        %v3385 = vld [vmem:[%s324 + $0x30] sm:$0xff]
        %v3386 = vld [vmem:[%s324 + $0x38] sm:$0xff]
        %v3387 = vld [vmem:[%s324 + $0x40] sm:$0xff]
        %v3388 = vld [vmem:[%s324 + $0x48] sm:$0xff]
        %v3389 = vld [vmem:[%s324 + $0x50] sm:$0xff]
        %v3390 = vld [vmem:[%s324 + $0x58] sm:$0xff]
        %v3391 = vld [vmem:[%s324 + $0x60] sm:$0xff]
        %v3392 = vld [vmem:[%s324 + $0x68] sm:$0xff]
        %v3393 = vld [vmem:[%s324 + $0x70] sm:$0xff]
        %v3394 = vld [vmem:[%s324 + $0x78] sm:$0xff]
        %v3395 = vld [vmem:[%s324 + $0x80] sm:$0xff]
        %v3396 = vld [vmem:[%s324 + $0x88] sm:$0xff]
        %v3397 = vld [vmem:[%s324 + $0x90] sm:$0xff]
        %v3398 = vld [vmem:[%s324 + $0x98] sm:$0xff]
        %v3399 = vld [vmem:[%s324 + $0xa0] sm:$0xff]
        %v3400 = vld [vmem:[%s324 + $0xa8] sm:$0xff]
        %v3401 = vld [vmem:[%s324 + $0xb0] sm:$0xff]
        %v3402 = vld [vmem:[%s324 + $0xb8] sm:$0xff]
        %v3403 = vld [vmem:[%s324 + $0xc0] sm:$0xff]
        %v3404 = vld [vmem:[%s324 + $0xc8] sm:$0xff]
        %v3405 = vld [vmem:[%s324 + $0xd0] sm:$0xff]
        %v3406 = vld [vmem:[%s324 + $0xd8] sm:$0xff]
        %v3407 = vld [vmem:[%s324 + $0xe0] sm:$0xff]
        %v3408 = vld [vmem:[%s324 + $0xe8] sm:$0xff]
        %v3409 = vld [vmem:[%s324 + $0xf0] sm:$0xff]
        %v3410 = vld [vmem:[%s324 + $0xf8] sm:$0xff]
        %v3411 = vld [vmem:[%s324 + $0x100] sm:$0xff]
        %v3412 = vld [vmem:[%s324 + $0x108] sm:$0xff]
        %v3413 = vld [vmem:[%s324 + $0x110] sm:$0xff]
        %v3414 = vld [vmem:[%s324 + $0x118] sm:$0xff]
        %v3415 = vld [vmem:[%s324 + $0x120] sm:$0xff]
        %v3416 = vld [vmem:[%s324 + $0x128] sm:$0xff]
        %v3417 = vld [vmem:[%s324 + $0x130] sm:$0xff]
        %v3418 = vld [vmem:[%s324 + $0x138] sm:$0xff]
        %v3419 = vld [vmem:[%s324 + $0x140] sm:$0xff]
        %v3420 = vld [vmem:[%s324 + $0x148] sm:$0xff]
        %v3421 = vld [vmem:[%s324 + $0x150] sm:$0xff]
        %v3422 = vld [vmem:[%s324 + $0x158] sm:$0xff]
        %v3423 = vld [vmem:[%s324 + $0x160] sm:$0xff]
        %v3424 = vld [vmem:[%s324 + $0x168] sm:$0xff]
        %v3425 = vld [vmem:[%s324 + $0x170] sm:$0xff]
        %v3426 = vld [vmem:[%s324 + $0x178] sm:$0xff]
        %v3427 = vld [vmem:[%s324 + $0x180] sm:$0xff]
        %v3428 = vld [vmem:[%s324 + $0x188] sm:$0xff]
        %v3429 = vld [vmem:[%s324 + $0x190] sm:$0xff]
        %v3430 = vld [vmem:[%s324 + $0x198] sm:$0xff]
        %v3431 = vld [vmem:[%s324 + $0x1a0] sm:$0xff]
        %v3432 = vld [vmem:[%s324 + $0x1a8] sm:$0xff]
        %v3433 = vld [vmem:[%s324 + $0x1b0] sm:$0xff]
        %v3434 = vld [vmem:[%s324 + $0x1b8] sm:$0xff]
        %v3435 = vld [vmem:[%s324 + $0x1c0] sm:$0xff]
        %v3436 = vld [vmem:[%s324 + $0x1c8] sm:$0xff]
        %v3437 = vld [vmem:[%s324 + $0x1d0] sm:$0xff]
        %v3438 = vld [vmem:[%s324 + $0x1d8] sm:$0xff]
        %v3439 = vld [vmem:[%s324 + $0x1e0] sm:$0xff]
        %v3440 = vld [vmem:[%s324 + $0x1e8] sm:$0xff]
        %v3441 = vld [vmem:[%s324 + $0x1f0] sm:$0xff]
        %v3442 = vld [vmem:[%s324 + $0x1f8] sm:$0xff]
        %v3443 = vld [vmem:[%s324 + $0x200] sm:$0xff]
        %v3444 = vld [vmem:[%s324 + $0x208] sm:$0xff]
        %v3445 = vld [vmem:[%s324 + $0x210] sm:$0xff]
        %v3446 = vld [vmem:[%s324 + $0x218] sm:$0xff]
        %v3447 = vld [vmem:[%s324 + $0x220] sm:$0xff]
        %v3448 = vld [vmem:[%s324 + $0x228] sm:$0xff]
        %v3449 = vld [vmem:[%s324 + $0x230] sm:$0xff]
        %v3450 = vld [vmem:[%s324 + $0x238] sm:$0xff]
        %v3451 = vld [vmem:[%s324 + $0x240] sm:$0xff]
        %v3452 = vld [vmem:[%s324 + $0x248] sm:$0xff]
        %v3453 = vld [vmem:[%s324 + $0x250] sm:$0xff]
        %v3454 = vld [vmem:[%s324 + $0x258] sm:$0xff]
        %v3455 = vld [vmem:[%s324 + $0x260] sm:$0xff]
        %v3456 = vld [vmem:[%s324 + $0x268] sm:$0xff]
        %v3457 = vld [vmem:[%s324 + $0x270] sm:$0xff]
        %v3458 = vld [vmem:[%s324 + $0x278] sm:$0xff]
        %v3459 = vld [vmem:[%s324 + $0x280] sm:$0xff]
        %v3460 = vld [vmem:[%s324 + $0x288] sm:$0xff]
        %v3461 = vld [vmem:[%s324 + $0x290] sm:$0xff]
        %v3462 = vld [vmem:[%s324 + $0x298] sm:$0xff]
        %v3463 = vld [vmem:[%s324 + $0x2a0] sm:$0xff]
        %v3464 = vld [vmem:[%s324 + $0x2a8] sm:$0xff]
        %v3465 = vld [vmem:[%s324 + $0x2b0] sm:$0xff]
        %v3466 = vld [vmem:[%s324 + $0x2b8] sm:$0xff]
        %v3467 = vld [vmem:[%s324 + $0x2c0] sm:$0xff]
        %v3468 = vld [vmem:[%s324 + $0x2c8] sm:$0xff]
        %v3469 = vld [vmem:[%s324 + $0x2d0] sm:$0xff]
        %v3470 = vld [vmem:[%s324 + $0x2d8] sm:$0xff]
        %v3471 = vld [vmem:[%s324 + $0x2e0] sm:$0xff]
        %v3472 = vld [vmem:[%s324 + $0x2e8] sm:$0xff]
        %v3473 = vld [vmem:[%s324 + $0x2f0] sm:$0xff]
        %v3474 = vld [vmem:[%s324 + $0x2f8] sm:$0xff]
        %v3475 = vld [vmem:[%s324 + $0x300] sm:$0xff]
        %v3476 = vld [vmem:[%s324 + $0x308] sm:$0xff]
        %v3477 = vld [vmem:[%s324 + $0x310] sm:$0xff]
        %v3478 = vld [vmem:[%s324 + $0x318] sm:$0xff]
        %v3479 = vld [vmem:[%s324 + $0x320] sm:$0xff]
        %v3480 = vld [vmem:[%s324 + $0x328] sm:$0xff]
        %v3481 = vld [vmem:[%s324 + $0x330] sm:$0xff]
        %v3482 = vld [vmem:[%s324 + $0x338] sm:$0xff]
        %v3483 = vld [vmem:[%s324 + $0x340] sm:$0xff]
        %v3484 = vld [vmem:[%s324 + $0x348] sm:$0xff]
        %v3485 = vld [vmem:[%s324 + $0x350] sm:$0xff]
        %v3486 = vld [vmem:[%s324 + $0x358] sm:$0xff]
        %v3487 = vld [vmem:[%s324 + $0x360] sm:$0xff]
        %v3488 = vld [vmem:[%s324 + $0x368] sm:$0xff]
        %v3489 = vld [vmem:[%s324 + $0x370] sm:$0xff]
        %v3490 = vld [vmem:[%s324 + $0x378] sm:$0xff]
        %v3491 = vld [vmem:[%s324 + $0x380] sm:$0xff]
        %v3492 = vld [vmem:[%s324 + $0x388] sm:$0xff]
        %v3493 = vld [vmem:[%s324 + $0x390] sm:$0xff]
        %v3494 = vld [vmem:[%s324 + $0x398] sm:$0xff]
        %v3495 = vld [vmem:[%s324 + $0x3a0] sm:$0xff]
        %v3496 = vld [vmem:[%s324 + $0x3a8] sm:$0xff]
        %v3497 = vld [vmem:[%s324 + $0x3b0] sm:$0xff]
        %v3498 = vld [vmem:[%s324 + $0x3b8] sm:$0xff]
        %v3499 = vld [vmem:[%s324 + $0x3c0] sm:$0xff]
        %v3500 = vld [vmem:[%s324 + $0x3c8] sm:$0xff]
        %v3501 = vld [vmem:[%s324 + $0x3d0] sm:$0xff]
        %v3502 = vld [vmem:[%s324 + $0x3d8] sm:$0xff]
        %v3503 = vld [vmem:[%s324 + $0x3e0] sm:$0xff]
        %v3504 = vld [vmem:[%s324 + $0x3e8] sm:$0xff]
        %v3505 = vld [vmem:[%s324 + $0x3f0] sm:$0xff]
        %v3506 = vld [vmem:[%s324 + $0x3f8] sm:$0xff]
        %v3507 = vld [vmem:[%s324 + $0x400] sm:$0xff]
        %v3508 = vld [vmem:[%s324 + $0x408] sm:$0xff]
        %v3509 = vld [vmem:[%s324 + $0x410] sm:$0xff]
        %v3510 = vld [vmem:[%s324 + $0x418] sm:$0xff]
        %v3511 = vld [vmem:[%s324 + $0x420] sm:$0xff]
        %v3512 = vld [vmem:[%s324 + $0x428] sm:$0xff]
        %v3513 = vld [vmem:[%s324 + $0x430] sm:$0xff]
        %v3514 = vld [vmem:[%s324 + $0x438] sm:$0xff]
        %v3515 = vld [vmem:[%s324 + $0x440] sm:$0xff]
        %v3516 = vld [vmem:[%s324 + $0x448] sm:$0xff]
        %v3517 = vld [vmem:[%s324 + $0x450] sm:$0xff]
        %v3518 = vld [vmem:[%s324 + $0x458] sm:$0xff]
        %v3519 = vld [vmem:[%s324 + $0x460] sm:$0xff]
        %v3520 = vld [vmem:[%s324 + $0x468] sm:$0xff]
        %v3521 = vld [vmem:[%s324 + $0x470] sm:$0xff]
        %v3522 = vld [vmem:[%s324 + $0x478] sm:$0xff]
        %v3523 = vld [vmem:[%s324 + $0x480] sm:$0xff]
        %v3524 = vld [vmem:[%s324 + $0x488] sm:$0xff]
        %v3525 = vld [vmem:[%s324 + $0x490] sm:$0xff]
        %v3526 = vld [vmem:[%s324 + $0x498] sm:$0xff]
        %v3527 = vld [vmem:[%s324 + $0x4a0] sm:$0xff]
        %v3528 = vld [vmem:[%s324 + $0x4a8] sm:$0xff]
        %v3529 = vld [vmem:[%s324 + $0x4b0] sm:$0xff]
        %v3530 = vld [vmem:[%s324 + $0x4b8] sm:$0xff]
        %v3531 = vld [vmem:[%s324 + $0x4c0] sm:$0xff]
        %v3532 = vld [vmem:[%s324 + $0x4c8] sm:$0xff]
        %v3533 = vld [vmem:[%s324 + $0x4d0] sm:$0xff]
        %v3534 = vld [vmem:[%s324 + $0x4d8] sm:$0xff]
        %v3535 = vld [vmem:[%s324 + $0x4e0] sm:$0xff]
        %v3536 = vld [vmem:[%s324 + $0x4e8] sm:$0xff]
        %v3537 = vld [vmem:[%s324 + $0x4f0] sm:$0xff]
        %v3538 = vld [vmem:[%s324 + $0x4f8] sm:$0xff]
        %v3539 = vld [vmem:[%s324 + $0x500] sm:$0xff]
        %v3540 = vld [vmem:[%s324 + $0x508] sm:$0xff]
        %v3541 = vld [vmem:[%s324 + $0x510] sm:$0xff]
        %v3542 = vld [vmem:[%s324 + $0x518] sm:$0xff]
        %v3543 = vld [vmem:[%s324 + $0x520] sm:$0xff]
        %v3544 = vld [vmem:[%s324 + $0x528] sm:$0xff]
        %v3545 = vld [vmem:[%s324 + $0x530] sm:$0xff]
        %v3546 = vld [vmem:[%s324 + $0x538] sm:$0xff]
        %v3547 = vld [vmem:[%s324 + $0x540] sm:$0xff]
        %v3548 = vld [vmem:[%s324 + $0x548] sm:$0xff]
        %v3549 = vld [vmem:[%s324 + $0x550] sm:$0xff]
        %v3550 = vld [vmem:[%s324 + $0x558] sm:$0xff]
        %v3551 = vld [vmem:[%s324 + $0x560] sm:$0xff]
        %v3552 = vld [vmem:[%s324 + $0x568] sm:$0xff]
        %v3553 = vld [vmem:[%s324 + $0x570] sm:$0xff]
        %v3554 = vld [vmem:[%s324 + $0x578] sm:$0xff]
        %v3555 = vld [vmem:[%s324 + $0x580] sm:$0xff]
        %v3556 = vld [vmem:[%s324 + $0x588] sm:$0xff]
        %v3557 = vld [vmem:[%s324 + $0x590] sm:$0xff]
        %v3558 = vld [vmem:[%s324 + $0x598] sm:$0xff]
        %v3559 = vld [vmem:[%s324 + $0x5a0] sm:$0xff]
        %v3560 = vld [vmem:[%s324 + $0x5a8] sm:$0xff]
        %v3561 = vld [vmem:[%s324 + $0x5b0] sm:$0xff]
        %v3562 = vld [vmem:[%s324 + $0x5b8] sm:$0xff]
        %v3563 = vld [vmem:[%s324 + $0x5c0] sm:$0xff]
        %v3564 = vld [vmem:[%s324 + $0x5c8] sm:$0xff]
        %v3565 = vld [vmem:[%s324 + $0x5d0] sm:$0xff]
        %v3566 = vld [vmem:[%s324 + $0x5d8] sm:$0xff]
        %v3567 = vld [vmem:[%s324 + $0x5e0] sm:$0xff]
        %v3568 = vld [vmem:[%s324 + $0x5e8] sm:$0xff]
        %v3569 = vld [vmem:[%s324 + $0x5f0] sm:$0xff]
        %v3570 = vld [vmem:[%s324 + $0x5f8] sm:$0xff]
        %v3571 = vld [vmem:[%s324 + $0x600] sm:$0xff]
        %v3572 = vld [vmem:[%s324 + $0x608] sm:$0xff]
        %v3573 = vld [vmem:[%s324 + $0x610] sm:$0xff]
        %v3574 = vld [vmem:[%s324 + $0x618] sm:$0xff]
        %v3575 = vld [vmem:[%s324 + $0x620] sm:$0xff]
        %v3576 = vld [vmem:[%s324 + $0x628] sm:$0xff]
        %v3577 = vld [vmem:[%s324 + $0x630] sm:$0xff]
        %v3578 = vld [vmem:[%s324 + $0x638] sm:$0xff]
        %v3579 = vld [vmem:[%s324 + $0x640] sm:$0xff]
        %v3580 = vld [vmem:[%s324 + $0x648] sm:$0xff]
        %v3581 = vld [vmem:[%s324 + $0x650] sm:$0xff]
        %v3582 = vld [vmem:[%s324 + $0x658] sm:$0xff]
        %v3583 = vld [vmem:[%s324 + $0x660] sm:$0xff]
        %v3584 = vld [vmem:[%s324 + $0x668] sm:$0xff]
        %v3585 = vld [vmem:[%s324 + $0x670] sm:$0xff]
        %v3586 = vld [vmem:[%s324 + $0x678] sm:$0xff]
        %v3587 = vld [vmem:[%s324 + $0x680] sm:$0xff]
        %v3588 = vld [vmem:[%s324 + $0x688] sm:$0xff]
        %v3589 = vld [vmem:[%s324 + $0x690] sm:$0xff]
        %v3590 = vld [vmem:[%s324 + $0x698] sm:$0xff]
        %v3591 = vld [vmem:[%s324 + $0x6a0] sm:$0xff]
        %v3592 = vld [vmem:[%s324 + $0x6a8] sm:$0xff]
        %v3593 = vld [vmem:[%s324 + $0x6b0] sm:$0xff]
        %v3594 = vld [vmem:[%s324 + $0x6b8] sm:$0xff]
        %v3595 = vld [vmem:[%s324 + $0x6c0] sm:$0xff]
        %v3596 = vld [vmem:[%s324 + $0x6c8] sm:$0xff]
        %v3597 = vld [vmem:[%s324 + $0x6d0] sm:$0xff]
        %v3598 = vld [vmem:[%s324 + $0x6d8] sm:$0xff]
        %v3599 = vld [vmem:[%s324 + $0x6e0] sm:$0xff]
        %v3600 = vld [vmem:[%s324 + $0x6e8] sm:$0xff]
        %v3601 = vld [vmem:[%s324 + $0x6f0] sm:$0xff]
        %v3602 = vld [vmem:[%s324 + $0x6f8] sm:$0xff]
        %v3603 = vld [vmem:[%s324 + $0x700] sm:$0xff]
        %v3604 = vld [vmem:[%s324 + $0x708] sm:$0xff]
        %v3605 = vld [vmem:[%s324 + $0x710] sm:$0xff]
        %v3606 = vld [vmem:[%s324 + $0x718] sm:$0xff]
        %v3607 = vld [vmem:[%s324 + $0x720] sm:$0xff]
        %v3608 = vld [vmem:[%s324 + $0x728] sm:$0xff]
        %v3609 = vld [vmem:[%s324 + $0x730] sm:$0xff]
        %v3610 = vld [vmem:[%s324 + $0x738] sm:$0xff]
        %v3611 = vld [vmem:[%s324 + $0x740] sm:$0xff]
        %v3612 = vld [vmem:[%s324 + $0x748] sm:$0xff]
        %v3613 = vld [vmem:[%s324 + $0x750] sm:$0xff]
        %v3614 = vld [vmem:[%s324 + $0x758] sm:$0xff]
        %v3615 = vld [vmem:[%s324 + $0x760] sm:$0xff]
        %v3616 = vld [vmem:[%s324 + $0x768] sm:$0xff]
        %v3617 = vld [vmem:[%s324 + $0x770] sm:$0xff]
        %v3618 = vld [vmem:[%s324 + $0x778] sm:$0xff]
        %v3619 = vld [vmem:[%s324 + $0x780] sm:$0xff]
        %v3620 = vld [vmem:[%s324 + $0x788] sm:$0xff]
        %v3621 = vld [vmem:[%s324 + $0x790] sm:$0xff]
        %v3622 = vld [vmem:[%s324 + $0x798] sm:$0xff]
        %v3623 = vld [vmem:[%s324 + $0x7a0] sm:$0xff]
        %v3624 = vld [vmem:[%s324 + $0x7a8] sm:$0xff]
        %v3625 = vld [vmem:[%s324 + $0x7b0] sm:$0xff]
        %v3626 = vld [vmem:[%s324 + $0x7b8] sm:$0xff]
        %v3627 = vld [vmem:[%s324 + $0x7c0] sm:$0xff]
        %v3628 = vld [vmem:[%s324 + $0x7c8] sm:$0xff]
        %v3629 = vld [vmem:[%s324 + $0x7d0] sm:$0xff]
        %v3630 = vld [vmem:[%s324 + $0x7d8] sm:$0xff]
        %v3631 = vld [vmem:[%s324 + $0x7e0] sm:$0xff]
        %v3632 = vld [vmem:[%s324 + $0x7e8] sm:$0xff]
        %v3633 = vld [vmem:[%s324 + $0x7f0] sm:$0xff]
        %v3634 = vld [vmem:[%s324 + $0x7f8] sm:$0xff]
        %v3635 = vld [vmem:[%s324 + $0x800] sm:$0xff]
        %v3636 = vld [vmem:[%s324 + $0x808] sm:$0xff]
        %v3637 = vld [vmem:[%s324 + $0x810] sm:$0xff]
        %v3638 = vld [vmem:[%s324 + $0x818] sm:$0xff]
        %v3639 = vld [vmem:[%s324 + $0x820] sm:$0xff]
        %v3640 = vld [vmem:[%s324 + $0x828] sm:$0xff]
        %v3641 = vld [vmem:[%s324 + $0x830] sm:$0xff]
        %v3642 = vld [vmem:[%s324 + $0x838] sm:$0xff]
        %v3643 = vld [vmem:[%s324 + $0x840] sm:$0xff]
        %v3644 = vld [vmem:[%s324 + $0x848] sm:$0xff]
        %v3645 = vld [vmem:[%s324 + $0x850] sm:$0xff]
        %v3646 = vld [vmem:[%s324 + $0x858] sm:$0xff]
        %v3647 = vld [vmem:[%s324 + $0x860] sm:$0xff]
        %v3648 = vld [vmem:[%s324 + $0x868] sm:$0xff]
        %v3649 = vld [vmem:[%s324 + $0x870] sm:$0xff]
        %v3650 = vld [vmem:[%s324 + $0x878] sm:$0xff]
        %v3651 = vld [vmem:[%s324 + $0x880] sm:$0xff]
        %v3652 = vld [vmem:[%s324 + $0x888] sm:$0xff]
        %v3653 = vld [vmem:[%s324 + $0x890] sm:$0xff]
        %v3654 = vld [vmem:[%s324 + $0x898] sm:$0xff]
        %v3655 = vld [vmem:[%s324 + $0x8a0] sm:$0xff]
        %v3656 = vld [vmem:[%s324 + $0x8a8] sm:$0xff]
        %v3657 = vld [vmem:[%s324 + $0x8b0] sm:$0xff]
        %v3658 = vld [vmem:[%s324 + $0x8b8] sm:$0xff]
        %v3659 = vld [vmem:[%s324 + $0x8c0] sm:$0xff]
        %v3660 = vld [vmem:[%s324 + $0x8c8] sm:$0xff]
        %v3661 = vld [vmem:[%s324 + $0x8d0] sm:$0xff]
        %v3662 = vld [vmem:[%s324 + $0x8d8] sm:$0xff]
        %v3663 = vld [vmem:[%s324 + $0x8e0] sm:$0xff]
        %v3664 = vld [vmem:[%s324 + $0x8e8] sm:$0xff]
        %v3665 = vld [vmem:[%s324 + $0x8f0] sm:$0xff]
        %v3666 = vld [vmem:[%s324 + $0x8f8] sm:$0xff]
        %v3667 = vld [vmem:[%s324 + $0x900] sm:$0xff]
        %v3668 = vld [vmem:[%s324 + $0x908] sm:$0xff]
        %v3669 = vld [vmem:[%s324 + $0x910] sm:$0xff]
        %v3670 = vld [vmem:[%s324 + $0x918] sm:$0xff]
        %v3671 = vld [vmem:[%s324 + $0x920] sm:$0xff]
        %v3672 = vld [vmem:[%s324 + $0x928] sm:$0xff]
        %v3673 = vld [vmem:[%s324 + $0x930] sm:$0xff]
        %v3674 = vld [vmem:[%s324 + $0x938] sm:$0xff]
        %v3675 = vld [vmem:[%s324 + $0x940] sm:$0xff]
        %v3676 = vld [vmem:[%s324 + $0x948] sm:$0xff]
        %v3677 = vld [vmem:[%s324 + $0x950] sm:$0xff]
        %v3678 = vld [vmem:[%s324 + $0x958] sm:$0xff]
        %v3679 = vld [vmem:[%s324 + $0x960] sm:$0xff]
        %v3680 = vld [vmem:[%s324 + $0x968] sm:$0xff]
        %v3681 = vld [vmem:[%s324 + $0x970] sm:$0xff]
        %v3682 = vld [vmem:[%s324 + $0x978] sm:$0xff]
        %v3683 = vld [vmem:[%s324 + $0x980] sm:$0xff]
        %v3684 = vld [vmem:[%s324 + $0x988] sm:$0xff]
        %v3685 = vld [vmem:[%s324 + $0x990] sm:$0xff]
        %v3686 = vld [vmem:[%s324 + $0x998] sm:$0xff]
        %v3687 = vld [vmem:[%s324 + $0x9a0] sm:$0xff]
        %v3688 = vld [vmem:[%s324 + $0x9a8] sm:$0xff]
        %v3689 = vld [vmem:[%s324 + $0x9b0] sm:$0xff]
        %v3690 = vld [vmem:[%s324 + $0x9b8] sm:$0xff]
        %v3691 = vld [vmem:[%s324 + $0x9c0] sm:$0xff]
        %v3692 = vld [vmem:[%s324 + $0x9c8] sm:$0xff]
        %v3693 = vld [vmem:[%s324 + $0x9d0] sm:$0xff]
        %v3694 = vld [vmem:[%s324 + $0x9d8] sm:$0xff]
        %v3695 = vld [vmem:[%s324 + $0x9e0] sm:$0xff]
        %v3696 = vld [vmem:[%s324 + $0x9e8] sm:$0xff]
        %v3697 = vld [vmem:[%s324 + $0x9f0] sm:$0xff]
        %v3698 = vld [vmem:[%s324 + $0x9f8] sm:$0xff]
        %v3699 = vld [vmem:[%s324 + $0xa00] sm:$0xff]
        %v3700 = vld [vmem:[%s324 + $0xa08] sm:$0xff]
        %v3701 = vld [vmem:[%s324 + $0xa10] sm:$0xff]
        %v3702 = vld [vmem:[%s324 + $0xa18] sm:$0xff]
        %v3703 = vld [vmem:[%s324 + $0xa20] sm:$0xff]
        %v3704 = vld [vmem:[%s324 + $0xa28] sm:$0xff]
        %v3705 = vld [vmem:[%s324 + $0xa30] sm:$0xff]
        %v3706 = vld [vmem:[%s324 + $0xa38] sm:$0xff]
        %v3707 = vld [vmem:[%s324 + $0xa40] sm:$0xff]
        %v3708 = vld [vmem:[%s324 + $0xa48] sm:$0xff]
        %v3709 = vld [vmem:[%s324 + $0xa50] sm:$0xff]
        %v3710 = vld [vmem:[%s324 + $0xa58] sm:$0xff]
        %v3711 = vld [vmem:[%s324 + $0xa60] sm:$0xff]
        %v3712 = vld [vmem:[%s324 + $0xa68] sm:$0xff]
        %v3713 = vld [vmem:[%s324 + $0xa70] sm:$0xff]
        %v3714 = vld [vmem:[%s324 + $0xa78] sm:$0xff]
        %v3715 = vld [vmem:[%s324 + $0xa80] sm:$0xff]
        %v3716 = vld [vmem:[%s324 + $0xa88] sm:$0xff]
        %v3717 = vld [vmem:[%s324 + $0xa90] sm:$0xff]
        %v3718 = vld [vmem:[%s324 + $0xa98] sm:$0xff]
        %v3719 = vld [vmem:[%s324 + $0xaa0] sm:$0xff]
        %v3720 = vld [vmem:[%s324 + $0xaa8] sm:$0xff]
        %v3721 = vld [vmem:[%s324 + $0xab0] sm:$0xff]
        %v3722 = vld [vmem:[%s324 + $0xab8] sm:$0xff]
        %v3723 = vld [vmem:[%s324 + $0xac0] sm:$0xff]
        %v3724 = vld [vmem:[%s324 + $0xac8] sm:$0xff]
        %v3725 = vld [vmem:[%s324 + $0xad0] sm:$0xff]
        %v3726 = vld [vmem:[%s324 + $0xad8] sm:$0xff]
        %v3727 = vld [vmem:[%s324 + $0xae0] sm:$0xff]
        %v3728 = vld [vmem:[%s324 + $0xae8] sm:$0xff]
        %v3729 = vld [vmem:[%s324 + $0xaf0] sm:$0xff]
        %v3730 = vld [vmem:[%s324 + $0xaf8] sm:$0xff]
        %v3731 = vld [vmem:[%s324 + $0xb00] sm:$0xff]
        %v3732 = vld [vmem:[%s324 + $0xb08] sm:$0xff]
        %v3733 = vld [vmem:[%s324 + $0xb10] sm:$0xff]
        %v3734 = vld [vmem:[%s324 + $0xb18] sm:$0xff]
        %v3735 = vld [vmem:[%s324 + $0xb20] sm:$0xff]
        %v3736 = vld [vmem:[%s324 + $0xb28] sm:$0xff]
        %v3737 = vld [vmem:[%s324 + $0xb30] sm:$0xff]
        %v3738 = vld [vmem:[%s324 + $0xb38] sm:$0xff]
        %v3739 = vld [vmem:[%s324 + $0xb40] sm:$0xff]
        %v3740 = vld [vmem:[%s324 + $0xb48] sm:$0xff]
        %v3741 = vld [vmem:[%s324 + $0xb50] sm:$0xff]
        %v3742 = vld [vmem:[%s324 + $0xb58] sm:$0xff]
        %v3743 = vld [vmem:[%s324 + $0xb60] sm:$0xff]
        %v3744 = vld [vmem:[%s324 + $0xb68] sm:$0xff]
        %v3745 = vld [vmem:[%s324 + $0xb70] sm:$0xff]
        %v3746 = vld [vmem:[%s324 + $0xb78] sm:$0xff]
        %v3747 = vld [vmem:[%s324 + $0xb80] sm:$0xff]
        %v3748 = vld [vmem:[%s324 + $0xb88] sm:$0xff]
        %v3749 = vld [vmem:[%s324 + $0xb90] sm:$0xff]
        %v3750 = vld [vmem:[%s324 + $0xb98] sm:$0xff]
        %v3751 = vld [vmem:[%s324 + $0xba0] sm:$0xff]
        %v3752 = vld [vmem:[%s324 + $0xba8] sm:$0xff]
        %v3753 = vld [vmem:[%s324 + $0xbb0] sm:$0xff]
        %v3754 = vld [vmem:[%s324 + $0xbb8] sm:$0xff]
        %v3755 = vld [vmem:[%s324 + $0xbc0] sm:$0xff]
        %v3756 = vld [vmem:[%s324 + $0xbc8] sm:$0xff]
        %v3757 = vld [vmem:[%s324 + $0xbd0] sm:$0xff]
        %v3758 = vld [vmem:[%s324 + $0xbd8] sm:$0xff]
        %v3759 = vld [vmem:[%s324 + $0xbe0] sm:$0xff]
        %v3760 = vld [vmem:[%s324 + $0xbe8] sm:$0xff]
        %v3761 = vld [vmem:[%s324 + $0xbf0] sm:$0xff]
        %v3762 = vld [vmem:[%s324 + $0xbf8] sm:$0xff]
        %v4147 = vunpack.c.l.b16 %v3379
        %v4148 = vunpack.c.h.b16 %v3379
        %v4149 = vunpack.c.l.b16 %v3380
        %v4150 = vunpack.c.h.b16 %v3380
        %v4151 = vunpack.c.l.b16 %v3381
        %v4152 = vunpack.c.h.b16 %v3381
        %v4153 = vunpack.c.l.b16 %v3382
        %v4154 = vunpack.c.h.b16 %v3382
        %v4155 = vunpack.c.l.b16 %v3383
        %v4156 = vunpack.c.h.b16 %v3383
        %v4157 = vunpack.c.l.b16 %v3384
        %v4158 = vunpack.c.h.b16 %v3384
        %v4159 = vunpack.c.l.b16 %v3385
        %v4160 = vunpack.c.h.b16 %v3385
        %v4161 = vunpack.c.l.b16 %v3386
        %v4162 = vunpack.c.h.b16 %v3386
        %v4163 = vunpack.c.l.b16 %v3387
        %v4164 = vunpack.c.h.b16 %v3387
        %v4165 = vunpack.c.l.b16 %v3388
        %v4166 = vunpack.c.h.b16 %v3388
        %v4167 = vunpack.c.l.b16 %v3389
        %v4168 = vunpack.c.h.b16 %v3389
        %v4169 = vunpack.c.l.b16 %v3390
        %v4170 = vunpack.c.h.b16 %v3390
        %v4171 = vunpack.c.l.b16 %v3391
        %v4172 = vunpack.c.h.b16 %v3391
        %v4173 = vunpack.c.l.b16 %v3392
        %v4174 = vunpack.c.h.b16 %v3392
        %v4175 = vunpack.c.l.b16 %v3393
        %v4176 = vunpack.c.h.b16 %v3393
        %v4177 = vunpack.c.l.b16 %v3394
        %v4178 = vunpack.c.h.b16 %v3394
        %v4179 = vunpack.c.l.b16 %v3395
        %v4180 = vunpack.c.h.b16 %v3395
        %v4181 = vunpack.c.l.b16 %v3396
        %v4182 = vunpack.c.h.b16 %v3396
        %v4183 = vunpack.c.l.b16 %v3397
        %v4184 = vunpack.c.h.b16 %v3397
        %v4185 = vunpack.c.l.b16 %v3398
        %v4186 = vunpack.c.h.b16 %v3398
        %v4187 = vunpack.c.l.b16 %v3399
        %v4188 = vunpack.c.h.b16 %v3399
        %v4189 = vunpack.c.l.b16 %v3400
        %v4190 = vunpack.c.h.b16 %v3400
        %v4191 = vunpack.c.l.b16 %v3401
        %v4192 = vunpack.c.h.b16 %v3401
        %v4193 = vunpack.c.l.b16 %v3402
        %v4194 = vunpack.c.h.b16 %v3402
        %v4195 = vunpack.c.l.b16 %v3403
        %v4196 = vunpack.c.h.b16 %v3403
        %v4197 = vunpack.c.l.b16 %v3404
        %v4198 = vunpack.c.h.b16 %v3404
        %v4199 = vunpack.c.l.b16 %v3405
        %v4200 = vunpack.c.h.b16 %v3405
        %v4201 = vunpack.c.l.b16 %v3406
        %v4202 = vunpack.c.h.b16 %v3406
        %v4203 = vunpack.c.l.b16 %v3407
        %v4204 = vunpack.c.h.b16 %v3407
        %v4205 = vunpack.c.l.b16 %v3408
        %v4206 = vunpack.c.h.b16 %v3408
        %v4207 = vunpack.c.l.b16 %v3409
        %v4208 = vunpack.c.h.b16 %v3409
        %v4209 = vunpack.c.l.b16 %v3410
        %v4210 = vunpack.c.h.b16 %v3410
        %v4211 = vunpack.c.l.b16 %v3411
        %v4212 = vunpack.c.h.b16 %v3411
        %v4213 = vunpack.c.l.b16 %v3412
        %v4214 = vunpack.c.h.b16 %v3412
        %v4215 = vunpack.c.l.b16 %v3413
        %v4216 = vunpack.c.h.b16 %v3413
        %v4217 = vunpack.c.l.b16 %v3414
        %v4218 = vunpack.c.h.b16 %v3414
        %v4219 = vunpack.c.l.b16 %v3415
        %v4220 = vunpack.c.h.b16 %v3415
        %v4221 = vunpack.c.l.b16 %v3416
        %v4222 = vunpack.c.h.b16 %v3416
        %v4223 = vunpack.c.l.b16 %v3417
        %v4224 = vunpack.c.h.b16 %v3417
        %v4225 = vunpack.c.l.b16 %v3418
        %v4226 = vunpack.c.h.b16 %v3418
        %v4227 = vunpack.c.l.b16 %v3419
        %v4228 = vunpack.c.h.b16 %v3419
        %v4229 = vunpack.c.l.b16 %v3420
        %v4230 = vunpack.c.h.b16 %v3420
        %v4231 = vunpack.c.l.b16 %v3421
        %v4232 = vunpack.c.h.b16 %v3421
        %v4233 = vunpack.c.l.b16 %v3422
        %v4234 = vunpack.c.h.b16 %v3422
        %v4235 = vunpack.c.l.b16 %v3423
        %v4236 = vunpack.c.h.b16 %v3423
        %v4237 = vunpack.c.l.b16 %v3424
        %v4238 = vunpack.c.h.b16 %v3424
        %v4239 = vunpack.c.l.b16 %v3425
        %v4240 = vunpack.c.h.b16 %v3425
        %v4241 = vunpack.c.l.b16 %v3426
        %v4242 = vunpack.c.h.b16 %v3426
        %v4243 = vunpack.c.l.b16 %v3427
        %v4244 = vunpack.c.h.b16 %v3427
        %v4245 = vunpack.c.l.b16 %v3428
        %v4246 = vunpack.c.h.b16 %v3428
        %v4247 = vunpack.c.l.b16 %v3429
        %v4248 = vunpack.c.h.b16 %v3429
        %v4249 = vunpack.c.l.b16 %v3430
        %v4250 = vunpack.c.h.b16 %v3430
        %v4251 = vunpack.c.l.b16 %v3431
        %v4252 = vunpack.c.h.b16 %v3431
        %v4253 = vunpack.c.l.b16 %v3432
        %v4254 = vunpack.c.h.b16 %v3432
        %v4255 = vunpack.c.l.b16 %v3433
        %v4256 = vunpack.c.h.b16 %v3433
        %v4257 = vunpack.c.l.b16 %v3434
        %v4258 = vunpack.c.h.b16 %v3434
        %v4259 = vunpack.c.l.b16 %v3435
        %v4260 = vunpack.c.h.b16 %v3435
        %v4261 = vunpack.c.l.b16 %v3436
        %v4262 = vunpack.c.h.b16 %v3436
        %v4263 = vunpack.c.l.b16 %v3437
        %v4264 = vunpack.c.h.b16 %v3437
        %v4265 = vunpack.c.l.b16 %v3438
        %v4266 = vunpack.c.h.b16 %v3438
        %v4267 = vunpack.c.l.b16 %v3439
        %v4268 = vunpack.c.h.b16 %v3439
        %v4269 = vunpack.c.l.b16 %v3440
        %v4270 = vunpack.c.h.b16 %v3440
        %v4271 = vunpack.c.l.b16 %v3441
        %v4272 = vunpack.c.h.b16 %v3441
        %v4273 = vunpack.c.l.b16 %v3442
        %v4274 = vunpack.c.h.b16 %v3442
        %v4275 = vunpack.c.l.b16 %v3443
        %v4276 = vunpack.c.h.b16 %v3443
        %v4277 = vunpack.c.l.b16 %v3444
        %v4278 = vunpack.c.h.b16 %v3444
        %v4279 = vunpack.c.l.b16 %v3445
        %v4280 = vunpack.c.h.b16 %v3445
        %v4281 = vunpack.c.l.b16 %v3446
        %v4282 = vunpack.c.h.b16 %v3446
        %v4283 = vunpack.c.l.b16 %v3447
        %v4284 = vunpack.c.h.b16 %v3447
        %v4285 = vunpack.c.l.b16 %v3448
        %v4286 = vunpack.c.h.b16 %v3448
        %v4287 = vunpack.c.l.b16 %v3449
        %v4288 = vunpack.c.h.b16 %v3449
        %v4289 = vunpack.c.l.b16 %v3450
        %v4290 = vunpack.c.h.b16 %v3450
        %v4291 = vunpack.c.l.b16 %v3451
        %v4292 = vunpack.c.h.b16 %v3451
        %v4293 = vunpack.c.l.b16 %v3452
        %v4294 = vunpack.c.h.b16 %v3452
        %v4295 = vunpack.c.l.b16 %v3453
        %v4296 = vunpack.c.h.b16 %v3453
        %v4297 = vunpack.c.l.b16 %v3454
        %v4298 = vunpack.c.h.b16 %v3454
        %v4299 = vunpack.c.l.b16 %v3455
        %v4300 = vunpack.c.h.b16 %v3455
        %v4301 = vunpack.c.l.b16 %v3456
        %v4302 = vunpack.c.h.b16 %v3456
        %v4303 = vunpack.c.l.b16 %v3457
        %v4304 = vunpack.c.h.b16 %v3457
        %v4305 = vunpack.c.l.b16 %v3458
        %v4306 = vunpack.c.h.b16 %v3458
        %v4307 = vunpack.c.l.b16 %v3459
        %v4308 = vunpack.c.h.b16 %v3459
        %v4309 = vunpack.c.l.b16 %v3460
        %v4310 = vunpack.c.h.b16 %v3460
        %v4311 = vunpack.c.l.b16 %v3461
        %v4312 = vunpack.c.h.b16 %v3461
        %v4313 = vunpack.c.l.b16 %v3462
        %v4314 = vunpack.c.h.b16 %v3462
        %v4315 = vunpack.c.l.b16 %v3463
        %v4316 = vunpack.c.h.b16 %v3463
        %v4317 = vunpack.c.l.b16 %v3464
        %v4318 = vunpack.c.h.b16 %v3464
        %v4319 = vunpack.c.l.b16 %v3465
        %v4320 = vunpack.c.h.b16 %v3465
        %v4321 = vunpack.c.l.b16 %v3466
        %v4322 = vunpack.c.h.b16 %v3466
        %v4323 = vunpack.c.l.b16 %v3467
        %v4324 = vunpack.c.h.b16 %v3467
        %v4325 = vunpack.c.l.b16 %v3468
        %v4326 = vunpack.c.h.b16 %v3468
        %v4327 = vunpack.c.l.b16 %v3469
        %v4328 = vunpack.c.h.b16 %v3469
        %v4329 = vunpack.c.l.b16 %v3470
        %v4330 = vunpack.c.h.b16 %v3470
        %v4331 = vunpack.c.l.b16 %v3471
        %v4332 = vunpack.c.h.b16 %v3471
        %v4333 = vunpack.c.l.b16 %v3472
        %v4334 = vunpack.c.h.b16 %v3472
        %v4335 = vunpack.c.l.b16 %v3473
        %v4336 = vunpack.c.h.b16 %v3473
        %v4337 = vunpack.c.l.b16 %v3474
        %v4338 = vunpack.c.h.b16 %v3474
        %v4339 = vunpack.c.l.b16 %v3475
        %v4340 = vunpack.c.h.b16 %v3475
        %v4341 = vunpack.c.l.b16 %v3476
        %v4342 = vunpack.c.h.b16 %v3476
        %v4343 = vunpack.c.l.b16 %v3477
        %v4344 = vunpack.c.h.b16 %v3477
        %v4345 = vunpack.c.l.b16 %v3478
        %v4346 = vunpack.c.h.b16 %v3478
        %v4347 = vunpack.c.l.b16 %v3479
        %v4348 = vunpack.c.h.b16 %v3479
        %v4349 = vunpack.c.l.b16 %v3480
        %v4350 = vunpack.c.h.b16 %v3480
        %v4351 = vunpack.c.l.b16 %v3481
        %v4352 = vunpack.c.h.b16 %v3481
        %v4353 = vunpack.c.l.b16 %v3482
        %v4354 = vunpack.c.h.b16 %v3482
        %v4355 = vunpack.c.l.b16 %v3483
        %v4356 = vunpack.c.h.b16 %v3483
        %v4357 = vunpack.c.l.b16 %v3484
        %v4358 = vunpack.c.h.b16 %v3484
        %v4359 = vunpack.c.l.b16 %v3485
        %v4360 = vunpack.c.h.b16 %v3485
        %v4361 = vunpack.c.l.b16 %v3486
        %v4362 = vunpack.c.h.b16 %v3486
        %v4363 = vunpack.c.l.b16 %v3487
        %v4364 = vunpack.c.h.b16 %v3487
        %v4365 = vunpack.c.l.b16 %v3488
        %v4366 = vunpack.c.h.b16 %v3488
        %v4367 = vunpack.c.l.b16 %v3489
        %v4368 = vunpack.c.h.b16 %v3489
        %v4369 = vunpack.c.l.b16 %v3490
        %v4370 = vunpack.c.h.b16 %v3490
        %v4371 = vunpack.c.l.b16 %v3491
        %v4372 = vunpack.c.h.b16 %v3491
        %v4373 = vunpack.c.l.b16 %v3492
        %v4374 = vunpack.c.h.b16 %v3492
        %v4375 = vunpack.c.l.b16 %v3493
        %v4376 = vunpack.c.h.b16 %v3493
        %v4377 = vunpack.c.l.b16 %v3494
        %v4378 = vunpack.c.h.b16 %v3494
        %v4379 = vunpack.c.l.b16 %v3495
        %v4380 = vunpack.c.h.b16 %v3495
        %v4381 = vunpack.c.l.b16 %v3496
        %v4382 = vunpack.c.h.b16 %v3496
        %v4383 = vunpack.c.l.b16 %v3497
        %v4384 = vunpack.c.h.b16 %v3497
        %v4385 = vunpack.c.l.b16 %v3498
        %v4386 = vunpack.c.h.b16 %v3498
        %v4387 = vunpack.c.l.b16 %v3499
        %v4388 = vunpack.c.h.b16 %v3499
        %v4389 = vunpack.c.l.b16 %v3500
        %v4390 = vunpack.c.h.b16 %v3500
        %v4391 = vunpack.c.l.b16 %v3501
        %v4392 = vunpack.c.h.b16 %v3501
        %v4393 = vunpack.c.l.b16 %v3502
        %v4394 = vunpack.c.h.b16 %v3502
        %v4395 = vunpack.c.l.b16 %v3503
        %v4396 = vunpack.c.h.b16 %v3503
        %v4397 = vunpack.c.l.b16 %v3504
        %v4398 = vunpack.c.h.b16 %v3504
        %v4399 = vunpack.c.l.b16 %v3505
        %v4400 = vunpack.c.h.b16 %v3505
        %v4401 = vunpack.c.l.b16 %v3506
        %v4402 = vunpack.c.h.b16 %v3506
        %v4403 = vunpack.c.l.b16 %v3507
        %v4404 = vunpack.c.h.b16 %v3507
        %v4405 = vunpack.c.l.b16 %v3508
        %v4406 = vunpack.c.h.b16 %v3508
        %v4407 = vunpack.c.l.b16 %v3509
        %v4408 = vunpack.c.h.b16 %v3509
        %v4409 = vunpack.c.l.b16 %v3510
        %v4410 = vunpack.c.h.b16 %v3510
        %v4411 = vunpack.c.l.b16 %v3511
        %v4412 = vunpack.c.h.b16 %v3511
        %v4413 = vunpack.c.l.b16 %v3512
        %v4414 = vunpack.c.h.b16 %v3512
        %v4415 = vunpack.c.l.b16 %v3513
        %v4416 = vunpack.c.h.b16 %v3513
        %v4417 = vunpack.c.l.b16 %v3514
        %v4418 = vunpack.c.h.b16 %v3514
        %v4419 = vunpack.c.l.b16 %v3515
        %v4420 = vunpack.c.h.b16 %v3515
        %v4421 = vunpack.c.l.b16 %v3516
        %v4422 = vunpack.c.h.b16 %v3516
        %v4423 = vunpack.c.l.b16 %v3517
        %v4424 = vunpack.c.h.b16 %v3517
        %v4425 = vunpack.c.l.b16 %v3518
        %v4426 = vunpack.c.h.b16 %v3518
        %v4427 = vunpack.c.l.b16 %v3519
        %v4428 = vunpack.c.h.b16 %v3519
        %v4429 = vunpack.c.l.b16 %v3520
        %v4430 = vunpack.c.h.b16 %v3520
        %v4431 = vunpack.c.l.b16 %v3521
        %v4432 = vunpack.c.h.b16 %v3521
        %v4433 = vunpack.c.l.b16 %v3522
        %v4434 = vunpack.c.h.b16 %v3522
        %v4435 = vunpack.c.l.b16 %v3523
        %v4436 = vunpack.c.h.b16 %v3523
        %v4437 = vunpack.c.l.b16 %v3524
        %v4438 = vunpack.c.h.b16 %v3524
        %v4439 = vunpack.c.l.b16 %v3525
        %v4440 = vunpack.c.h.b16 %v3525
        %v4441 = vunpack.c.l.b16 %v3526
        %v4442 = vunpack.c.h.b16 %v3526
        %v4443 = vunpack.c.l.b16 %v3527
        %v4444 = vunpack.c.h.b16 %v3527
        %v4445 = vunpack.c.l.b16 %v3528
        %v4446 = vunpack.c.h.b16 %v3528
        %v4447 = vunpack.c.l.b16 %v3529
        %v4448 = vunpack.c.h.b16 %v3529
        %v4449 = vunpack.c.l.b16 %v3530
        %v4450 = vunpack.c.h.b16 %v3530
        %v4451 = vunpack.c.l.b16 %v3531
        %v4452 = vunpack.c.h.b16 %v3531
        %v4453 = vunpack.c.l.b16 %v3532
        %v4454 = vunpack.c.h.b16 %v3532
        %v4455 = vunpack.c.l.b16 %v3533
        %v4456 = vunpack.c.h.b16 %v3533
        %v4457 = vunpack.c.l.b16 %v3534
        %v4458 = vunpack.c.h.b16 %v3534
        %v4459 = vunpack.c.l.b16 %v3535
        %v4460 = vunpack.c.h.b16 %v3535
        %v4461 = vunpack.c.l.b16 %v3536
        %v4462 = vunpack.c.h.b16 %v3536
        %v4463 = vunpack.c.l.b16 %v3537
        %v4464 = vunpack.c.h.b16 %v3537
        %v4465 = vunpack.c.l.b16 %v3538
        %v4466 = vunpack.c.h.b16 %v3538
        %v4467 = vunpack.c.l.b16 %v3539
        %v4468 = vunpack.c.h.b16 %v3539
        %v4469 = vunpack.c.l.b16 %v3540
        %v4470 = vunpack.c.h.b16 %v3540
        %v4471 = vunpack.c.l.b16 %v3541
        %v4472 = vunpack.c.h.b16 %v3541
        %v4473 = vunpack.c.l.b16 %v3542
        %v4474 = vunpack.c.h.b16 %v3542
        %v4475 = vunpack.c.l.b16 %v3543
        %v4476 = vunpack.c.h.b16 %v3543
        %v4477 = vunpack.c.l.b16 %v3544
        %v4478 = vunpack.c.h.b16 %v3544
        %v4479 = vunpack.c.l.b16 %v3545
        %v4480 = vunpack.c.h.b16 %v3545
        %v4481 = vunpack.c.l.b16 %v3546
        %v4482 = vunpack.c.h.b16 %v3546
        %v4483 = vunpack.c.l.b16 %v3547
        %v4484 = vunpack.c.h.b16 %v3547
        %v4485 = vunpack.c.l.b16 %v3548
        %v4486 = vunpack.c.h.b16 %v3548
        %v4487 = vunpack.c.l.b16 %v3549
        %v4488 = vunpack.c.h.b16 %v3549
        %v4489 = vunpack.c.l.b16 %v3550
        %v4490 = vunpack.c.h.b16 %v3550
        %v4491 = vunpack.c.l.b16 %v3551
        %v4492 = vunpack.c.h.b16 %v3551
        %v4493 = vunpack.c.l.b16 %v3552
        %v4494 = vunpack.c.h.b16 %v3552
        %v4495 = vunpack.c.l.b16 %v3553
        %v4496 = vunpack.c.h.b16 %v3553
        %v4497 = vunpack.c.l.b16 %v3554
        %v4498 = vunpack.c.h.b16 %v3554
        %v4499 = vunpack.c.l.b16 %v3555
        %v4500 = vunpack.c.h.b16 %v3555
        %v4501 = vunpack.c.l.b16 %v3556
        %v4502 = vunpack.c.h.b16 %v3556
        %v4503 = vunpack.c.l.b16 %v3557
        %v4504 = vunpack.c.h.b16 %v3557
        %v4505 = vunpack.c.l.b16 %v3558
        %v4506 = vunpack.c.h.b16 %v3558
        %v4507 = vunpack.c.l.b16 %v3559
        %v4508 = vunpack.c.h.b16 %v3559
        %v4509 = vunpack.c.l.b16 %v3560
        %v4510 = vunpack.c.h.b16 %v3560
        %v4511 = vunpack.c.l.b16 %v3561
        %v4512 = vunpack.c.h.b16 %v3561
        %v4513 = vunpack.c.l.b16 %v3562
        %v4514 = vunpack.c.h.b16 %v3562
        %v4515 = vunpack.c.l.b16 %v3563
        %v4516 = vunpack.c.h.b16 %v3563
        %v4517 = vunpack.c.l.b16 %v3564
        %v4518 = vunpack.c.h.b16 %v3564
        %v4519 = vunpack.c.l.b16 %v3565
        %v4520 = vunpack.c.h.b16 %v3565
        %v4521 = vunpack.c.l.b16 %v3566
        %v4522 = vunpack.c.h.b16 %v3566
        %v4523 = vunpack.c.l.b16 %v3567
        %v4524 = vunpack.c.h.b16 %v3567
        %v4525 = vunpack.c.l.b16 %v3568
        %v4526 = vunpack.c.h.b16 %v3568
        %v4527 = vunpack.c.l.b16 %v3569
        %v4528 = vunpack.c.h.b16 %v3569
        %v4529 = vunpack.c.l.b16 %v3570
        %v4530 = vunpack.c.h.b16 %v3570
        %v4531 = vunpack.c.l.b16 %v3571
        %v4532 = vunpack.c.h.b16 %v3571
        %v4533 = vunpack.c.l.b16 %v3572
        %v4534 = vunpack.c.h.b16 %v3572
        %v4535 = vunpack.c.l.b16 %v3573
        %v4536 = vunpack.c.h.b16 %v3573
        %v4537 = vunpack.c.l.b16 %v3574
        %v4538 = vunpack.c.h.b16 %v3574
        %v4539 = vunpack.c.l.b16 %v3575
        %v4540 = vunpack.c.h.b16 %v3575
        %v4541 = vunpack.c.l.b16 %v3576
        %v4542 = vunpack.c.h.b16 %v3576
        %v4543 = vunpack.c.l.b16 %v3577
        %v4544 = vunpack.c.h.b16 %v3577
        %v4545 = vunpack.c.l.b16 %v3578
        %v4546 = vunpack.c.h.b16 %v3578
        %v4547 = vunpack.c.l.b16 %v3579
        %v4548 = vunpack.c.h.b16 %v3579
        %v4549 = vunpack.c.l.b16 %v3580
        %v4550 = vunpack.c.h.b16 %v3580
        %v4551 = vunpack.c.l.b16 %v3581
        %v4552 = vunpack.c.h.b16 %v3581
        %v4553 = vunpack.c.l.b16 %v3582
        %v4554 = vunpack.c.h.b16 %v3582
        %v4555 = vunpack.c.l.b16 %v3583
        %v4556 = vunpack.c.h.b16 %v3583
        %v4557 = vunpack.c.l.b16 %v3584
        %v4558 = vunpack.c.h.b16 %v3584
        %v4559 = vunpack.c.l.b16 %v3585
        %v4560 = vunpack.c.h.b16 %v3585
        %v4561 = vunpack.c.l.b16 %v3586
        %v4562 = vunpack.c.h.b16 %v3586
        %v4563 = vunpack.c.l.b16 %v3587
        %v4564 = vunpack.c.h.b16 %v3587
        %v4565 = vunpack.c.l.b16 %v3588
        %v4566 = vunpack.c.h.b16 %v3588
        %v4567 = vunpack.c.l.b16 %v3589
        %v4568 = vunpack.c.h.b16 %v3589
        %v4569 = vunpack.c.l.b16 %v3590
        %v4570 = vunpack.c.h.b16 %v3590
        %v4571 = vunpack.c.l.b16 %v3591
        %v4572 = vunpack.c.h.b16 %v3591
        %v4573 = vunpack.c.l.b16 %v3592
        %v4574 = vunpack.c.h.b16 %v3592
        %v4575 = vunpack.c.l.b16 %v3593
        %v4576 = vunpack.c.h.b16 %v3593
        %v4577 = vunpack.c.l.b16 %v3594
        %v4578 = vunpack.c.h.b16 %v3594
        %v4579 = vunpack.c.l.b16 %v3595
        %v4580 = vunpack.c.h.b16 %v3595
        %v4581 = vunpack.c.l.b16 %v3596
        %v4582 = vunpack.c.h.b16 %v3596
        %v4583 = vunpack.c.l.b16 %v3597
        %v4584 = vunpack.c.h.b16 %v3597
        %v4585 = vunpack.c.l.b16 %v3598
        %v4586 = vunpack.c.h.b16 %v3598
        %v4587 = vunpack.c.l.b16 %v3599
        %v4588 = vunpack.c.h.b16 %v3599
        %v4589 = vunpack.c.l.b16 %v3600
        %v4590 = vunpack.c.h.b16 %v3600
        %v4591 = vunpack.c.l.b16 %v3601
        %v4592 = vunpack.c.h.b16 %v3601
        %v4593 = vunpack.c.l.b16 %v3602
        %v4594 = vunpack.c.h.b16 %v3602
        %v4595 = vunpack.c.l.b16 %v3603
        %v4596 = vunpack.c.h.b16 %v3603
        %v4597 = vunpack.c.l.b16 %v3604
        %v4598 = vunpack.c.h.b16 %v3604
        %v4599 = vunpack.c.l.b16 %v3605
        %v4600 = vunpack.c.h.b16 %v3605
        %v4601 = vunpack.c.l.b16 %v3606
        %v4602 = vunpack.c.h.b16 %v3606
        %v4603 = vunpack.c.l.b16 %v3607
        %v4604 = vunpack.c.h.b16 %v3607
        %v4605 = vunpack.c.l.b16 %v3608
        %v4606 = vunpack.c.h.b16 %v3608
        %v4607 = vunpack.c.l.b16 %v3609
        %v4608 = vunpack.c.h.b16 %v3609
        %v4609 = vunpack.c.l.b16 %v3610
        %v4610 = vunpack.c.h.b16 %v3610
        %v4611 = vunpack.c.l.b16 %v3611
        %v4612 = vunpack.c.h.b16 %v3611
        %v4613 = vunpack.c.l.b16 %v3612
        %v4614 = vunpack.c.h.b16 %v3612
        %v4615 = vunpack.c.l.b16 %v3613
        %v4616 = vunpack.c.h.b16 %v3613
        %v4617 = vunpack.c.l.b16 %v3614
        %v4618 = vunpack.c.h.b16 %v3614
        %v4619 = vunpack.c.l.b16 %v3615
        %v4620 = vunpack.c.h.b16 %v3615
        %v4621 = vunpack.c.l.b16 %v3616
        %v4622 = vunpack.c.h.b16 %v3616
        %v4623 = vunpack.c.l.b16 %v3617
        %v4624 = vunpack.c.h.b16 %v3617
        %v4625 = vunpack.c.l.b16 %v3618
        %v4626 = vunpack.c.h.b16 %v3618
        %v4627 = vunpack.c.l.b16 %v3619
        %v4628 = vunpack.c.h.b16 %v3619
        %v4629 = vunpack.c.l.b16 %v3620
        %v4630 = vunpack.c.h.b16 %v3620
        %v4631 = vunpack.c.l.b16 %v3621
        %v4632 = vunpack.c.h.b16 %v3621
        %v4633 = vunpack.c.l.b16 %v3622
        %v4634 = vunpack.c.h.b16 %v3622
        %v4635 = vunpack.c.l.b16 %v3623
        %v4636 = vunpack.c.h.b16 %v3623
        %v4637 = vunpack.c.l.b16 %v3624
        %v4638 = vunpack.c.h.b16 %v3624
        %v4639 = vunpack.c.l.b16 %v3625
        %v4640 = vunpack.c.h.b16 %v3625
        %v4641 = vunpack.c.l.b16 %v3626
        %v4642 = vunpack.c.h.b16 %v3626
        %v4643 = vunpack.c.l.b16 %v3627
        %v4644 = vunpack.c.h.b16 %v3627
        %v4645 = vunpack.c.l.b16 %v3628
        %v4646 = vunpack.c.h.b16 %v3628
        %v4647 = vunpack.c.l.b16 %v3629
        %v4648 = vunpack.c.h.b16 %v3629
        %v4649 = vunpack.c.l.b16 %v3630
        %v4650 = vunpack.c.h.b16 %v3630
        %v4651 = vunpack.c.l.b16 %v3631
        %v4652 = vunpack.c.h.b16 %v3631
        %v4653 = vunpack.c.l.b16 %v3632
        %v4654 = vunpack.c.h.b16 %v3632
        %v4655 = vunpack.c.l.b16 %v3633
        %v4656 = vunpack.c.h.b16 %v3633
        %v4657 = vunpack.c.l.b16 %v3634
        %v4658 = vunpack.c.h.b16 %v3634
        %v4659 = vunpack.c.l.b16 %v3635
        %v4660 = vunpack.c.h.b16 %v3635
        %v4661 = vunpack.c.l.b16 %v3636
        %v4662 = vunpack.c.h.b16 %v3636
        %v4663 = vunpack.c.l.b16 %v3637
        %v4664 = vunpack.c.h.b16 %v3637
        %v4665 = vunpack.c.l.b16 %v3638
        %v4666 = vunpack.c.h.b16 %v3638
        %v4667 = vunpack.c.l.b16 %v3639
        %v4668 = vunpack.c.h.b16 %v3639
        %v4669 = vunpack.c.l.b16 %v3640
        %v4670 = vunpack.c.h.b16 %v3640
        %v4671 = vunpack.c.l.b16 %v3641
        %v4672 = vunpack.c.h.b16 %v3641
        %v4673 = vunpack.c.l.b16 %v3642
        %v4674 = vunpack.c.h.b16 %v3642
        %v4675 = vunpack.c.l.b16 %v3643
        %v4676 = vunpack.c.h.b16 %v3643
        %v4677 = vunpack.c.l.b16 %v3644
        %v4678 = vunpack.c.h.b16 %v3644
        %v4679 = vunpack.c.l.b16 %v3645
        %v4680 = vunpack.c.h.b16 %v3645
        %v4681 = vunpack.c.l.b16 %v3646
        %v4682 = vunpack.c.h.b16 %v3646
        %v4683 = vunpack.c.l.b16 %v3647
        %v4684 = vunpack.c.h.b16 %v3647
        %v4685 = vunpack.c.l.b16 %v3648
        %v4686 = vunpack.c.h.b16 %v3648
        %v4687 = vunpack.c.l.b16 %v3649
        %v4688 = vunpack.c.h.b16 %v3649
        %v4689 = vunpack.c.l.b16 %v3650
        %v4690 = vunpack.c.h.b16 %v3650
        %v4691 = vunpack.c.l.b16 %v3651
        %v4692 = vunpack.c.h.b16 %v3651
        %v4693 = vunpack.c.l.b16 %v3652
        %v4694 = vunpack.c.h.b16 %v3652
        %v4695 = vunpack.c.l.b16 %v3653
        %v4696 = vunpack.c.h.b16 %v3653
        %v4697 = vunpack.c.l.b16 %v3654
        %v4698 = vunpack.c.h.b16 %v3654
        %v4699 = vunpack.c.l.b16 %v3655
        %v4700 = vunpack.c.h.b16 %v3655
        %v4701 = vunpack.c.l.b16 %v3656
        %v4702 = vunpack.c.h.b16 %v3656
        %v4703 = vunpack.c.l.b16 %v3657
        %v4704 = vunpack.c.h.b16 %v3657
        %v4705 = vunpack.c.l.b16 %v3658
        %v4706 = vunpack.c.h.b16 %v3658
        %v4707 = vunpack.c.l.b16 %v3659
        %v4708 = vunpack.c.h.b16 %v3659
        %v4709 = vunpack.c.l.b16 %v3660
        %v4710 = vunpack.c.h.b16 %v3660
        %v4711 = vunpack.c.l.b16 %v3661
        %v4712 = vunpack.c.h.b16 %v3661
        %v4713 = vunpack.c.l.b16 %v3662
        %v4714 = vunpack.c.h.b16 %v3662
        %v4715 = vunpack.c.l.b16 %v3663
        %v4716 = vunpack.c.h.b16 %v3663
        %v4717 = vunpack.c.l.b16 %v3664
        %v4718 = vunpack.c.h.b16 %v3664
        %v4719 = vunpack.c.l.b16 %v3665
        %v4720 = vunpack.c.h.b16 %v3665
        %v4721 = vunpack.c.l.b16 %v3666
        %v4722 = vunpack.c.h.b16 %v3666
        %v4723 = vunpack.c.l.b16 %v3667
        %v4724 = vunpack.c.h.b16 %v3667
        %v4725 = vunpack.c.l.b16 %v3668
        %v4726 = vunpack.c.h.b16 %v3668
        %v4727 = vunpack.c.l.b16 %v3669
        %v4728 = vunpack.c.h.b16 %v3669
        %v4729 = vunpack.c.l.b16 %v3670
        %v4730 = vunpack.c.h.b16 %v3670
        %v4731 = vunpack.c.l.b16 %v3671
        %v4732 = vunpack.c.h.b16 %v3671
        %v4733 = vunpack.c.l.b16 %v3672
        %v4734 = vunpack.c.h.b16 %v3672
        %v4735 = vunpack.c.l.b16 %v3673
        %v4736 = vunpack.c.h.b16 %v3673
        %v4737 = vunpack.c.l.b16 %v3674
        %v4738 = vunpack.c.h.b16 %v3674
        %v4739 = vunpack.c.l.b16 %v3675
        %v4740 = vunpack.c.h.b16 %v3675
        %v4741 = vunpack.c.l.b16 %v3676
        %v4742 = vunpack.c.h.b16 %v3676
        %v4743 = vunpack.c.l.b16 %v3677
        %v4744 = vunpack.c.h.b16 %v3677
        %v4745 = vunpack.c.l.b16 %v3678
        %v4746 = vunpack.c.h.b16 %v3678
        %v4747 = vunpack.c.l.b16 %v3679
        %v4748 = vunpack.c.h.b16 %v3679
        %v4749 = vunpack.c.l.b16 %v3680
        %v4750 = vunpack.c.h.b16 %v3680
        %v4751 = vunpack.c.l.b16 %v3681
        %v4752 = vunpack.c.h.b16 %v3681
        %v4753 = vunpack.c.l.b16 %v3682
        %v4754 = vunpack.c.h.b16 %v3682
        %v4755 = vunpack.c.l.b16 %v3683
        %v4756 = vunpack.c.h.b16 %v3683
        %v4757 = vunpack.c.l.b16 %v3684
        %v4758 = vunpack.c.h.b16 %v3684
        %v4759 = vunpack.c.l.b16 %v3685
        %v4760 = vunpack.c.h.b16 %v3685
        %v4761 = vunpack.c.l.b16 %v3686
        %v4762 = vunpack.c.h.b16 %v3686
        %v4763 = vunpack.c.l.b16 %v3687
        %v4764 = vunpack.c.h.b16 %v3687
        %v4765 = vunpack.c.l.b16 %v3688
        %v4766 = vunpack.c.h.b16 %v3688
        %v4767 = vunpack.c.l.b16 %v3689
        %v4768 = vunpack.c.h.b16 %v3689
        %v4769 = vunpack.c.l.b16 %v3690
        %v4770 = vunpack.c.h.b16 %v3690
        %v4771 = vunpack.c.l.b16 %v3691
        %v4772 = vunpack.c.h.b16 %v3691
        %v4773 = vunpack.c.l.b16 %v3692
        %v4774 = vunpack.c.h.b16 %v3692
        %v4775 = vunpack.c.l.b16 %v3693
        %v4776 = vunpack.c.h.b16 %v3693
        %v4777 = vunpack.c.l.b16 %v3694
        %v4778 = vunpack.c.h.b16 %v3694
        %v4779 = vunpack.c.l.b16 %v3695
        %v4780 = vunpack.c.h.b16 %v3695
        %v4781 = vunpack.c.l.b16 %v3696
        %v4782 = vunpack.c.h.b16 %v3696
        %v4783 = vunpack.c.l.b16 %v3697
        %v4784 = vunpack.c.h.b16 %v3697
        %v4785 = vunpack.c.l.b16 %v3698
        %v4786 = vunpack.c.h.b16 %v3698
        %v4787 = vunpack.c.l.b16 %v3699
        %v4788 = vunpack.c.h.b16 %v3699
        %v4789 = vunpack.c.l.b16 %v3700
        %v4790 = vunpack.c.h.b16 %v3700
        %v4791 = vunpack.c.l.b16 %v3701
        %v4792 = vunpack.c.h.b16 %v3701
        %v4793 = vunpack.c.l.b16 %v3702
        %v4794 = vunpack.c.h.b16 %v3702
        %v4795 = vunpack.c.l.b16 %v3703
        %v4796 = vunpack.c.h.b16 %v3703
        %v4797 = vunpack.c.l.b16 %v3704
        %v4798 = vunpack.c.h.b16 %v3704
        %v4799 = vunpack.c.l.b16 %v3705
        %v4800 = vunpack.c.h.b16 %v3705
        %v4801 = vunpack.c.l.b16 %v3706
        %v4802 = vunpack.c.h.b16 %v3706
        %v4803 = vunpack.c.l.b16 %v3707
        %v4804 = vunpack.c.h.b16 %v3707
        %v4805 = vunpack.c.l.b16 %v3708
        %v4806 = vunpack.c.h.b16 %v3708
        %v4807 = vunpack.c.l.b16 %v3709
        %v4808 = vunpack.c.h.b16 %v3709
        %v4809 = vunpack.c.l.b16 %v3710
        %v4810 = vunpack.c.h.b16 %v3710
        %v4811 = vunpack.c.l.b16 %v3711
        %v4812 = vunpack.c.h.b16 %v3711
        %v4813 = vunpack.c.l.b16 %v3712
        %v4814 = vunpack.c.h.b16 %v3712
        %v4815 = vunpack.c.l.b16 %v3713
        %v4816 = vunpack.c.h.b16 %v3713
        %v4817 = vunpack.c.l.b16 %v3714
        %v4818 = vunpack.c.h.b16 %v3714
        %v4819 = vunpack.c.l.b16 %v3715
        %v4820 = vunpack.c.h.b16 %v3715
        %v4821 = vunpack.c.l.b16 %v3716
        %v4822 = vunpack.c.h.b16 %v3716
        %v4823 = vunpack.c.l.b16 %v3717
        %v4824 = vunpack.c.h.b16 %v3717
        %v4825 = vunpack.c.l.b16 %v3718
        %v4826 = vunpack.c.h.b16 %v3718
        %v4827 = vunpack.c.l.b16 %v3719
        %v4828 = vunpack.c.h.b16 %v3719
        %v4829 = vunpack.c.l.b16 %v3720
        %v4830 = vunpack.c.h.b16 %v3720
        %v4831 = vunpack.c.l.b16 %v3721
        %v4832 = vunpack.c.h.b16 %v3721
        %v4833 = vunpack.c.l.b16 %v3722
        %v4834 = vunpack.c.h.b16 %v3722
        %v4835 = vunpack.c.l.b16 %v3723
        %v4836 = vunpack.c.h.b16 %v3723
        %v4837 = vunpack.c.l.b16 %v3724
        %v4838 = vunpack.c.h.b16 %v3724
        %v4839 = vunpack.c.l.b16 %v3725
        %v4840 = vunpack.c.h.b16 %v3725
        %v4841 = vunpack.c.l.b16 %v3726
        %v4842 = vunpack.c.h.b16 %v3726
        %v4843 = vunpack.c.l.b16 %v3727
        %v4844 = vunpack.c.h.b16 %v3727
        %v4845 = vunpack.c.l.b16 %v3728
        %v4846 = vunpack.c.h.b16 %v3728
        %v4847 = vunpack.c.l.b16 %v3729
        %v4848 = vunpack.c.h.b16 %v3729
        %v4849 = vunpack.c.l.b16 %v3730
        %v4850 = vunpack.c.h.b16 %v3730
        %v4851 = vunpack.c.l.b16 %v3731
        %v4852 = vunpack.c.h.b16 %v3731
        %v4853 = vunpack.c.l.b16 %v3732
        %v4854 = vunpack.c.h.b16 %v3732
        %v4855 = vunpack.c.l.b16 %v3733
        %v4856 = vunpack.c.h.b16 %v3733
        %v4857 = vunpack.c.l.b16 %v3734
        %v4858 = vunpack.c.h.b16 %v3734
        %v4859 = vunpack.c.l.b16 %v3735
        %v4860 = vunpack.c.h.b16 %v3735
        %v4861 = vunpack.c.l.b16 %v3736
        %v4862 = vunpack.c.h.b16 %v3736
        %v4863 = vunpack.c.l.b16 %v3737
        %v4864 = vunpack.c.h.b16 %v3737
        %v4865 = vunpack.c.l.b16 %v3738
        %v4866 = vunpack.c.h.b16 %v3738
        %v4867 = vunpack.c.l.b16 %v3739
        %v4868 = vunpack.c.h.b16 %v3739
        %v4869 = vunpack.c.l.b16 %v3740
        %v4870 = vunpack.c.h.b16 %v3740
        %v4871 = vunpack.c.l.b16 %v3741
        %v4872 = vunpack.c.h.b16 %v3741
        %v4873 = vunpack.c.l.b16 %v3742
        %v4874 = vunpack.c.h.b16 %v3742
        %v4875 = vunpack.c.l.b16 %v3743
        %v4876 = vunpack.c.h.b16 %v3743
        %v4877 = vunpack.c.l.b16 %v3744
        %v4878 = vunpack.c.h.b16 %v3744
        %v4879 = vunpack.c.l.b16 %v3745
        %v4880 = vunpack.c.h.b16 %v3745
        %v4881 = vunpack.c.l.b16 %v3746
        %v4882 = vunpack.c.h.b16 %v3746
        %v4883 = vunpack.c.l.b16 %v3747
        %v4884 = vunpack.c.h.b16 %v3747
        %v4885 = vunpack.c.l.b16 %v3748
        %v4886 = vunpack.c.h.b16 %v3748
        %v4887 = vunpack.c.l.b16 %v3749
        %v4888 = vunpack.c.h.b16 %v3749
        %v4889 = vunpack.c.l.b16 %v3750
        %v4890 = vunpack.c.h.b16 %v3750
        %v4891 = vunpack.c.l.b16 %v3751
        %v4892 = vunpack.c.h.b16 %v3751
        %v4893 = vunpack.c.l.b16 %v3752
        %v4894 = vunpack.c.h.b16 %v3752
        %v4895 = vunpack.c.l.b16 %v3753
        %v4896 = vunpack.c.h.b16 %v3753
        %v4897 = vunpack.c.l.b16 %v3754
        %v4898 = vunpack.c.h.b16 %v3754
        %v4899 = vunpack.c.l.b16 %v3755
        %v4900 = vunpack.c.h.b16 %v3755
        %v4901 = vunpack.c.l.b16 %v3756
        %v4902 = vunpack.c.h.b16 %v3756
        %v4903 = vunpack.c.l.b16 %v3757
        %v4904 = vunpack.c.h.b16 %v3757
        %v4905 = vunpack.c.l.b16 %v3758
        %v4906 = vunpack.c.h.b16 %v3758
        %v4907 = vunpack.c.l.b16 %v3759
        %v4908 = vunpack.c.h.b16 %v3759
        %v4909 = vunpack.c.l.b16 %v3760
        %v4910 = vunpack.c.h.b16 %v3760
        %v4911 = vunpack.c.l.b16 %v3761
        %v4912 = vunpack.c.h.b16 %v3761
        %v4913 = vunpack.c.l.b16 %v3762
        %v4914 = vunpack.c.h.b16 %v3762
        %v4915 = vpack.c.b16 %v4153, %v4147
        %v4916 = vpack.c.b16 %v4154, %v4148
        %v4917 = vpack.c.b16 %v4155, %v4149
        %v4918 = vpack.c.b16 %v4156, %v4150
        %v4919 = vpack.c.b16 %v4157, %v4151
        %v4920 = vpack.c.b16 %v4158, %v4152
        %v4921 = vpack.c.b16 %v4165, %v4159
        %v4922 = vpack.c.b16 %v4166, %v4160
        %v4923 = vpack.c.b16 %v4167, %v4161
        %v4924 = vpack.c.b16 %v4168, %v4162
        %v4925 = vpack.c.b16 %v4169, %v4163
        %v4926 = vpack.c.b16 %v4170, %v4164
        %v4927 = vpack.c.b16 %v4177, %v4171
        %v4928 = vpack.c.b16 %v4178, %v4172
        %v4929 = vpack.c.b16 %v4179, %v4173
        %v4930 = vpack.c.b16 %v4180, %v4174
        %v4931 = vpack.c.b16 %v4181, %v4175
        %v4932 = vpack.c.b16 %v4182, %v4176
        %v4933 = vpack.c.b16 %v4189, %v4183
        %v4934 = vpack.c.b16 %v4190, %v4184
        %v4935 = vpack.c.b16 %v4191, %v4185
        %v4936 = vpack.c.b16 %v4192, %v4186
        %v4937 = vpack.c.b16 %v4193, %v4187
        %v4938 = vpack.c.b16 %v4194, %v4188
        %v4939 = vpack.c.b16 %v4201, %v4195
        %v4940 = vpack.c.b16 %v4202, %v4196
        %v4941 = vpack.c.b16 %v4203, %v4197
        %v4942 = vpack.c.b16 %v4204, %v4198
        %v4943 = vpack.c.b16 %v4205, %v4199
        %v4944 = vpack.c.b16 %v4206, %v4200
        %v4945 = vpack.c.b16 %v4213, %v4207
        %v4946 = vpack.c.b16 %v4214, %v4208
        %v4947 = vpack.c.b16 %v4215, %v4209
        %v4948 = vpack.c.b16 %v4216, %v4210
        %v4949 = vpack.c.b16 %v4217, %v4211
        %v4950 = vpack.c.b16 %v4218, %v4212
        %v4951 = vpack.c.b16 %v4225, %v4219
        %v4952 = vpack.c.b16 %v4226, %v4220
        %v4953 = vpack.c.b16 %v4227, %v4221
        %v4954 = vpack.c.b16 %v4228, %v4222
        %v4955 = vpack.c.b16 %v4229, %v4223
        %v4956 = vpack.c.b16 %v4230, %v4224
        %v4957 = vpack.c.b16 %v4237, %v4231
        %v4958 = vpack.c.b16 %v4238, %v4232
        %v4959 = vpack.c.b16 %v4239, %v4233
        %v4960 = vpack.c.b16 %v4240, %v4234
        %v4961 = vpack.c.b16 %v4241, %v4235
        %v4962 = vpack.c.b16 %v4242, %v4236
        %v4963 = vpack.c.b16 %v4249, %v4243
        %v4964 = vpack.c.b16 %v4250, %v4244
        %v4965 = vpack.c.b16 %v4251, %v4245
        %v4966 = vpack.c.b16 %v4252, %v4246
        %v4967 = vpack.c.b16 %v4253, %v4247
        %v4968 = vpack.c.b16 %v4254, %v4248
        %v4969 = vpack.c.b16 %v4261, %v4255
        %v4970 = vpack.c.b16 %v4262, %v4256
        %v4971 = vpack.c.b16 %v4263, %v4257
        %v4972 = vpack.c.b16 %v4264, %v4258
        %v4973 = vpack.c.b16 %v4265, %v4259
        %v4974 = vpack.c.b16 %v4266, %v4260
        %v4975 = vpack.c.b16 %v4273, %v4267
        %v4976 = vpack.c.b16 %v4274, %v4268
        %v4977 = vpack.c.b16 %v4275, %v4269
        %v4978 = vpack.c.b16 %v4276, %v4270
        %v4979 = vpack.c.b16 %v4277, %v4271
        %v4980 = vpack.c.b16 %v4278, %v4272
        %v4981 = vpack.c.b16 %v4285, %v4279
        %v4982 = vpack.c.b16 %v4286, %v4280
        %v4983 = vpack.c.b16 %v4287, %v4281
        %v4984 = vpack.c.b16 %v4288, %v4282
        %v4985 = vpack.c.b16 %v4289, %v4283
        %v4986 = vpack.c.b16 %v4290, %v4284
        %v4987 = vpack.c.b16 %v4297, %v4291
        %v4988 = vpack.c.b16 %v4298, %v4292
        %v4989 = vpack.c.b16 %v4299, %v4293
        %v4990 = vpack.c.b16 %v4300, %v4294
        %v4991 = vpack.c.b16 %v4301, %v4295
        %v4992 = vpack.c.b16 %v4302, %v4296
        %v4993 = vpack.c.b16 %v4309, %v4303
        %v4994 = vpack.c.b16 %v4310, %v4304
        %v4995 = vpack.c.b16 %v4311, %v4305
        %v4996 = vpack.c.b16 %v4312, %v4306
        %v4997 = vpack.c.b16 %v4313, %v4307
        %v4998 = vpack.c.b16 %v4314, %v4308
        %v4999 = vpack.c.b16 %v4321, %v4315
        %v5000 = vpack.c.b16 %v4322, %v4316
        %v5001 = vpack.c.b16 %v4323, %v4317
        %v5002 = vpack.c.b16 %v4324, %v4318
        %v5003 = vpack.c.b16 %v4325, %v4319
        %v5004 = vpack.c.b16 %v4326, %v4320
        %v5005 = vpack.c.b16 %v4333, %v4327
        %v5006 = vpack.c.b16 %v4334, %v4328
        %v5007 = vpack.c.b16 %v4335, %v4329
        %v5008 = vpack.c.b16 %v4336, %v4330
        %v5009 = vpack.c.b16 %v4337, %v4331
        %v5010 = vpack.c.b16 %v4338, %v4332
        %v5011 = vpack.c.b16 %v4345, %v4339
        %v5012 = vpack.c.b16 %v4346, %v4340
        %v5013 = vpack.c.b16 %v4347, %v4341
        %v5014 = vpack.c.b16 %v4348, %v4342
        %v5015 = vpack.c.b16 %v4349, %v4343
        %v5016 = vpack.c.b16 %v4350, %v4344
        %v5017 = vpack.c.b16 %v4357, %v4351
        %v5018 = vpack.c.b16 %v4358, %v4352
        %v5019 = vpack.c.b16 %v4359, %v4353
        %v5020 = vpack.c.b16 %v4360, %v4354
        %v5021 = vpack.c.b16 %v4361, %v4355
        %v5022 = vpack.c.b16 %v4362, %v4356
        %v5023 = vpack.c.b16 %v4369, %v4363
        %v5024 = vpack.c.b16 %v4370, %v4364
        %v5025 = vpack.c.b16 %v4371, %v4365
        %v5026 = vpack.c.b16 %v4372, %v4366
        %v5027 = vpack.c.b16 %v4373, %v4367
        %v5028 = vpack.c.b16 %v4374, %v4368
        %v5029 = vpack.c.b16 %v4381, %v4375
        %v5030 = vpack.c.b16 %v4382, %v4376
        %v5031 = vpack.c.b16 %v4383, %v4377
        %v5032 = vpack.c.b16 %v4384, %v4378
        %v5033 = vpack.c.b16 %v4385, %v4379
        %v5034 = vpack.c.b16 %v4386, %v4380
        %v5035 = vpack.c.b16 %v4393, %v4387
        %v5036 = vpack.c.b16 %v4394, %v4388
        %v5037 = vpack.c.b16 %v4395, %v4389
        %v5038 = vpack.c.b16 %v4396, %v4390
        %v5039 = vpack.c.b16 %v4397, %v4391
        %v5040 = vpack.c.b16 %v4398, %v4392
        %v5041 = vpack.c.b16 %v4405, %v4399
        %v5042 = vpack.c.b16 %v4406, %v4400
        %v5043 = vpack.c.b16 %v4407, %v4401
        %v5044 = vpack.c.b16 %v4408, %v4402
        %v5045 = vpack.c.b16 %v4409, %v4403
        %v5046 = vpack.c.b16 %v4410, %v4404
        %v5047 = vpack.c.b16 %v4417, %v4411
        %v5048 = vpack.c.b16 %v4418, %v4412
        %v5049 = vpack.c.b16 %v4419, %v4413
        %v5050 = vpack.c.b16 %v4420, %v4414
        %v5051 = vpack.c.b16 %v4421, %v4415
        %v5052 = vpack.c.b16 %v4422, %v4416
        %v5053 = vpack.c.b16 %v4429, %v4423
        %v5054 = vpack.c.b16 %v4430, %v4424
        %v5055 = vpack.c.b16 %v4431, %v4425
        %v5056 = vpack.c.b16 %v4432, %v4426
        %v5057 = vpack.c.b16 %v4433, %v4427
        %v5058 = vpack.c.b16 %v4434, %v4428
        %v5059 = vpack.c.b16 %v4441, %v4435
        %v5060 = vpack.c.b16 %v4442, %v4436
        %v5061 = vpack.c.b16 %v4443, %v4437
        %v5062 = vpack.c.b16 %v4444, %v4438
        %v5063 = vpack.c.b16 %v4445, %v4439
        %v5064 = vpack.c.b16 %v4446, %v4440
        %v5065 = vpack.c.b16 %v4453, %v4447
        %v5066 = vpack.c.b16 %v4454, %v4448
        %v5067 = vpack.c.b16 %v4455, %v4449
        %v5068 = vpack.c.b16 %v4456, %v4450
        %v5069 = vpack.c.b16 %v4457, %v4451
        %v5070 = vpack.c.b16 %v4458, %v4452
        %v5071 = vpack.c.b16 %v4465, %v4459
        %v5072 = vpack.c.b16 %v4466, %v4460
        %v5073 = vpack.c.b16 %v4467, %v4461
        %v5074 = vpack.c.b16 %v4468, %v4462
        %v5075 = vpack.c.b16 %v4469, %v4463
        %v5076 = vpack.c.b16 %v4470, %v4464
        %v5077 = vpack.c.b16 %v4477, %v4471
        %v5078 = vpack.c.b16 %v4478, %v4472
        %v5079 = vpack.c.b16 %v4479, %v4473
        %v5080 = vpack.c.b16 %v4480, %v4474
        %v5081 = vpack.c.b16 %v4481, %v4475
        %v5082 = vpack.c.b16 %v4482, %v4476
        %v5083 = vpack.c.b16 %v4489, %v4483
        %v5084 = vpack.c.b16 %v4490, %v4484
        %v5085 = vpack.c.b16 %v4491, %v4485
        %v5086 = vpack.c.b16 %v4492, %v4486
        %v5087 = vpack.c.b16 %v4493, %v4487
        %v5088 = vpack.c.b16 %v4494, %v4488
        %v5089 = vpack.c.b16 %v4501, %v4495
        %v5090 = vpack.c.b16 %v4502, %v4496
        %v5091 = vpack.c.b16 %v4503, %v4497
        %v5092 = vpack.c.b16 %v4504, %v4498
        %v5093 = vpack.c.b16 %v4505, %v4499
        %v5094 = vpack.c.b16 %v4506, %v4500
        %v5095 = vpack.c.b16 %v4513, %v4507
        %v5096 = vpack.c.b16 %v4514, %v4508
        %v5097 = vpack.c.b16 %v4515, %v4509
        %v5098 = vpack.c.b16 %v4516, %v4510
        %v5099 = vpack.c.b16 %v4517, %v4511
        %v5100 = vpack.c.b16 %v4518, %v4512
        %v5101 = vpack.c.b16 %v4525, %v4519
        %v5102 = vpack.c.b16 %v4526, %v4520
        %v5103 = vpack.c.b16 %v4527, %v4521
        %v5104 = vpack.c.b16 %v4528, %v4522
        %v5105 = vpack.c.b16 %v4529, %v4523
        %v5106 = vpack.c.b16 %v4530, %v4524
        %v5107 = vpack.c.b16 %v4537, %v4531
        %v5108 = vpack.c.b16 %v4538, %v4532
        %v5109 = vpack.c.b16 %v4539, %v4533
        %v5110 = vpack.c.b16 %v4540, %v4534
        %v5111 = vpack.c.b16 %v4541, %v4535
        %v5112 = vpack.c.b16 %v4542, %v4536
        %v5113 = vpack.c.b16 %v4549, %v4543
        %v5114 = vpack.c.b16 %v4550, %v4544
        %v5115 = vpack.c.b16 %v4551, %v4545
        %v5116 = vpack.c.b16 %v4552, %v4546
        %v5117 = vpack.c.b16 %v4553, %v4547
        %v5118 = vpack.c.b16 %v4554, %v4548
        %v5119 = vpack.c.b16 %v4561, %v4555
        %v5120 = vpack.c.b16 %v4562, %v4556
        %v5121 = vpack.c.b16 %v4563, %v4557
        %v5122 = vpack.c.b16 %v4564, %v4558
        %v5123 = vpack.c.b16 %v4565, %v4559
        %v5124 = vpack.c.b16 %v4566, %v4560
        %v5125 = vpack.c.b16 %v4573, %v4567
        %v5126 = vpack.c.b16 %v4574, %v4568
        %v5127 = vpack.c.b16 %v4575, %v4569
        %v5128 = vpack.c.b16 %v4576, %v4570
        %v5129 = vpack.c.b16 %v4577, %v4571
        %v5130 = vpack.c.b16 %v4578, %v4572
        %v5131 = vpack.c.b16 %v4585, %v4579
        %v5132 = vpack.c.b16 %v4586, %v4580
        %v5133 = vpack.c.b16 %v4587, %v4581
        %v5134 = vpack.c.b16 %v4588, %v4582
        %v5135 = vpack.c.b16 %v4589, %v4583
        %v5136 = vpack.c.b16 %v4590, %v4584
        %v5137 = vpack.c.b16 %v4597, %v4591
        %v5138 = vpack.c.b16 %v4598, %v4592
        %v5139 = vpack.c.b16 %v4599, %v4593
        %v5140 = vpack.c.b16 %v4600, %v4594
        %v5141 = vpack.c.b16 %v4601, %v4595
        %v5142 = vpack.c.b16 %v4602, %v4596
        %v5143 = vpack.c.b16 %v4609, %v4603
        %v5144 = vpack.c.b16 %v4610, %v4604
        %v5145 = vpack.c.b16 %v4611, %v4605
        %v5146 = vpack.c.b16 %v4612, %v4606
        %v5147 = vpack.c.b16 %v4613, %v4607
        %v5148 = vpack.c.b16 %v4614, %v4608
        %v5149 = vpack.c.b16 %v4621, %v4615
        %v5150 = vpack.c.b16 %v4622, %v4616
        %v5151 = vpack.c.b16 %v4623, %v4617
        %v5152 = vpack.c.b16 %v4624, %v4618
        %v5153 = vpack.c.b16 %v4625, %v4619
        %v5154 = vpack.c.b16 %v4626, %v4620
        %v5155 = vpack.c.b16 %v4633, %v4627
        %v5156 = vpack.c.b16 %v4634, %v4628
        %v5157 = vpack.c.b16 %v4635, %v4629
        %v5158 = vpack.c.b16 %v4636, %v4630
        %v5159 = vpack.c.b16 %v4637, %v4631
        %v5160 = vpack.c.b16 %v4638, %v4632
        %v5161 = vpack.c.b16 %v4645, %v4639
        %v5162 = vpack.c.b16 %v4646, %v4640
        %v5163 = vpack.c.b16 %v4647, %v4641
        %v5164 = vpack.c.b16 %v4648, %v4642
        %v5165 = vpack.c.b16 %v4649, %v4643
        %v5166 = vpack.c.b16 %v4650, %v4644
        %v5167 = vpack.c.b16 %v4657, %v4651
        %v5168 = vpack.c.b16 %v4658, %v4652
        %v5169 = vpack.c.b16 %v4659, %v4653
        %v5170 = vpack.c.b16 %v4660, %v4654
        %v5171 = vpack.c.b16 %v4661, %v4655
        %v5172 = vpack.c.b16 %v4662, %v4656
        %v5173 = vpack.c.b16 %v4669, %v4663
        %v5174 = vpack.c.b16 %v4670, %v4664
        %v5175 = vpack.c.b16 %v4671, %v4665
        %v5176 = vpack.c.b16 %v4672, %v4666
        %v5177 = vpack.c.b16 %v4673, %v4667
        %v5178 = vpack.c.b16 %v4674, %v4668
        %v5179 = vpack.c.b16 %v4681, %v4675
        %v5180 = vpack.c.b16 %v4682, %v4676
        %v5181 = vpack.c.b16 %v4683, %v4677
        %v5182 = vpack.c.b16 %v4684, %v4678
        %v5183 = vpack.c.b16 %v4685, %v4679
        %v5184 = vpack.c.b16 %v4686, %v4680
        %v5185 = vpack.c.b16 %v4693, %v4687
        %v5186 = vpack.c.b16 %v4694, %v4688
        %v5187 = vpack.c.b16 %v4695, %v4689
        %v5188 = vpack.c.b16 %v4696, %v4690
        %v5189 = vpack.c.b16 %v4697, %v4691
        %v5190 = vpack.c.b16 %v4698, %v4692
        %v5191 = vpack.c.b16 %v4705, %v4699
        %v5192 = vpack.c.b16 %v4706, %v4700
        %v5193 = vpack.c.b16 %v4707, %v4701
        %v5194 = vpack.c.b16 %v4708, %v4702
        %v5195 = vpack.c.b16 %v4709, %v4703
        %v5196 = vpack.c.b16 %v4710, %v4704
        %v5197 = vpack.c.b16 %v4717, %v4711
        %v5198 = vpack.c.b16 %v4718, %v4712
        %v5199 = vpack.c.b16 %v4719, %v4713
        %v5200 = vpack.c.b16 %v4720, %v4714
        %v5201 = vpack.c.b16 %v4721, %v4715
        %v5202 = vpack.c.b16 %v4722, %v4716
        %v5203 = vpack.c.b16 %v4729, %v4723
        %v5204 = vpack.c.b16 %v4730, %v4724
        %v5205 = vpack.c.b16 %v4731, %v4725
        %v5206 = vpack.c.b16 %v4732, %v4726
        %v5207 = vpack.c.b16 %v4733, %v4727
        %v5208 = vpack.c.b16 %v4734, %v4728
        %v5209 = vpack.c.b16 %v4741, %v4735
        %v5210 = vpack.c.b16 %v4742, %v4736
        %v5211 = vpack.c.b16 %v4743, %v4737
        %v5212 = vpack.c.b16 %v4744, %v4738
        %v5213 = vpack.c.b16 %v4745, %v4739
        %v5214 = vpack.c.b16 %v4746, %v4740
        %v5215 = vpack.c.b16 %v4753, %v4747
        %v5216 = vpack.c.b16 %v4754, %v4748
        %v5217 = vpack.c.b16 %v4755, %v4749
        %v5218 = vpack.c.b16 %v4756, %v4750
        %v5219 = vpack.c.b16 %v4757, %v4751
        %v5220 = vpack.c.b16 %v4758, %v4752
        %v5221 = vpack.c.b16 %v4765, %v4759
        %v5222 = vpack.c.b16 %v4766, %v4760
        %v5223 = vpack.c.b16 %v4767, %v4761
        %v5224 = vpack.c.b16 %v4768, %v4762
        %v5225 = vpack.c.b16 %v4769, %v4763
        %v5226 = vpack.c.b16 %v4770, %v4764
        %v5227 = vpack.c.b16 %v4777, %v4771
        %v5228 = vpack.c.b16 %v4778, %v4772
        %v5229 = vpack.c.b16 %v4779, %v4773
        %v5230 = vpack.c.b16 %v4780, %v4774
        %v5231 = vpack.c.b16 %v4781, %v4775
        %v5232 = vpack.c.b16 %v4782, %v4776
        %v5233 = vpack.c.b16 %v4789, %v4783
        %v5234 = vpack.c.b16 %v4790, %v4784
        %v5235 = vpack.c.b16 %v4791, %v4785
        %v5236 = vpack.c.b16 %v4792, %v4786
        %v5237 = vpack.c.b16 %v4793, %v4787
        %v5238 = vpack.c.b16 %v4794, %v4788
        %v5239 = vpack.c.b16 %v4801, %v4795
        %v5240 = vpack.c.b16 %v4802, %v4796
        %v5241 = vpack.c.b16 %v4803, %v4797
        %v5242 = vpack.c.b16 %v4804, %v4798
        %v5243 = vpack.c.b16 %v4805, %v4799
        %v5244 = vpack.c.b16 %v4806, %v4800
        %v5245 = vpack.c.b16 %v4813, %v4807
        %v5246 = vpack.c.b16 %v4814, %v4808
        %v5247 = vpack.c.b16 %v4815, %v4809
        %v5248 = vpack.c.b16 %v4816, %v4810
        %v5249 = vpack.c.b16 %v4817, %v4811
        %v5250 = vpack.c.b16 %v4818, %v4812
        %v5251 = vpack.c.b16 %v4825, %v4819
        %v5252 = vpack.c.b16 %v4826, %v4820
        %v5253 = vpack.c.b16 %v4827, %v4821
        %v5254 = vpack.c.b16 %v4828, %v4822
        %v5255 = vpack.c.b16 %v4829, %v4823
        %v5256 = vpack.c.b16 %v4830, %v4824
        %v5257 = vpack.c.b16 %v4837, %v4831
        %v5258 = vpack.c.b16 %v4838, %v4832
        %v5259 = vpack.c.b16 %v4839, %v4833
        %v5260 = vpack.c.b16 %v4840, %v4834
        %v5261 = vpack.c.b16 %v4841, %v4835
        %v5262 = vpack.c.b16 %v4842, %v4836
        %v5263 = vpack.c.b16 %v4849, %v4843
        %v5264 = vpack.c.b16 %v4850, %v4844
        %v5265 = vpack.c.b16 %v4851, %v4845
        %v5266 = vpack.c.b16 %v4852, %v4846
        %v5267 = vpack.c.b16 %v4853, %v4847
        %v5268 = vpack.c.b16 %v4854, %v4848
        %v5269 = vpack.c.b16 %v4861, %v4855
        %v5270 = vpack.c.b16 %v4862, %v4856
        %v5271 = vpack.c.b16 %v4863, %v4857
        %v5272 = vpack.c.b16 %v4864, %v4858
        %v5273 = vpack.c.b16 %v4865, %v4859
        %v5274 = vpack.c.b16 %v4866, %v4860
        %v5275 = vpack.c.b16 %v4873, %v4867
        %v5276 = vpack.c.b16 %v4874, %v4868
        %v5277 = vpack.c.b16 %v4875, %v4869
        %v5278 = vpack.c.b16 %v4876, %v4870
        %v5279 = vpack.c.b16 %v4877, %v4871
        %v5280 = vpack.c.b16 %v4878, %v4872
        %v5281 = vpack.c.b16 %v4885, %v4879
        %v5282 = vpack.c.b16 %v4886, %v4880
        %v5283 = vpack.c.b16 %v4887, %v4881
        %v5284 = vpack.c.b16 %v4888, %v4882
        %v5285 = vpack.c.b16 %v4889, %v4883
        %v5286 = vpack.c.b16 %v4890, %v4884
        %v5287 = vpack.c.b16 %v4897, %v4891
        %v5288 = vpack.c.b16 %v4898, %v4892
        %v5289 = vpack.c.b16 %v4899, %v4893
        %v5290 = vpack.c.b16 %v4900, %v4894
        %v5291 = vpack.c.b16 %v4901, %v4895
        %v5292 = vpack.c.b16 %v4902, %v4896
        %v5293 = vpack.c.b16 %v4909, %v4903
        %v5294 = vpack.c.b16 %v4910, %v4904
        %v5295 = vpack.c.b16 %v4911, %v4905
        %v5296 = vpack.c.b16 %v4912, %v4906
        %v5297 = vpack.c.b16 %v4913, %v4907
        %v5298 = vpack.c.b16 %v4914, %v4908
        %5683 = vmatprep.subr.bf16.mxu0 %v4916
        %5684 = vmatpush1.bf16.msra.mxu0 %v4915
        %5685 = vmatprep.subr.bf16.mxu0 %v4922
        %5686 = vmatpush1.bf16.msra.mxu0 %v4921
        %5687 = vmatprep.subr.bf16.mxu0 %v4928
        %5688 = vmatpush1.bf16.msra.mxu0 %v4927
        %5689 = vmatprep.subr.bf16.mxu0 %v4934
        %5690 = vmatpush1.bf16.msra.mxu0 %v4933
        %5691 = vmatprep.subr.bf16.mxu0 %v4940
        %5692 = vmatpush1.bf16.msra.mxu0 %v4939
        %5693 = vmatprep.subr.bf16.mxu0 %v4946
        %5694 = vmatpush1.bf16.msra.mxu0 %v4945
        %5695 = vmatprep.subr.bf16.mxu0 %v4952
        %5696 = vmatpush1.bf16.msra.mxu0 %v4951
        %5697 = vmatprep.subr.bf16.mxu0 %v4958
        %5698 = vmatpush1.bf16.msra.mxu0 %v4957
        %5699 = vmatprep.subr.bf16.mxu0 %v4964
        %5700 = vmatpush1.bf16.msra.mxu0 %v4963
        %5701 = vmatprep.subr.bf16.mxu0 %v4970
        %5702 = vmatpush1.bf16.msra.mxu0 %v4969
        %5703 = vmatprep.subr.bf16.mxu0 %v4976
        %5704 = vmatpush1.bf16.msra.mxu0 %v4975
        %5705 = vmatprep.subr.bf16.mxu0 %v4982
        %5706 = vmatpush1.bf16.msra.mxu0 %v4981
        %5707 = vmatprep.subr.bf16.mxu0 %v4988
        %5708 = vmatpush1.bf16.msra.mxu0 %v4987
        %5709 = vmatprep.subr.bf16.mxu0 %v4994
        %5710 = vmatpush1.bf16.msra.mxu0 %v4993
        %5711 = vmatprep.subr.bf16.mxu0 %v5000
        %5712 = vmatpush1.bf16.msra.mxu0 %v4999
        %5713 = vmatprep.subr.bf16.mxu0 %v5006
        %5714 = vmatpush1.bf16.msra.mxu0 %v5005
        %5715 = vmatprep.mubr.bf16.mxu0 %v3372
        %5716 = vmatmul.mubr.bf16.gmra.mrb[0].mxu0 %v3371
        %v5717 = vpop.f32.mrb[0].mxu0
        %v5718 = vadd.f32 0.0, %v5717
        %v5719 = vpop.f32.mrb[0].mxu0
        %v5720 = vadd.f32 0.0, %v5719
        %v5721 = vpop.f32.mrb[0].mxu0
        %v5722 = vadd.f32 0.0, %v5721
        %v5723 = vpop.f32.mrb[0].mxu0
        %v5724 = vadd.f32 0.0, %v5723
        %5725 = vdwg.mxu0
        %5726 = vmatprep.subr.bf16.mxu0 %v5012
        %5727 = vmatpush1.bf16.msra.mxu0 %v5011
        %5728 = vmatprep.subr.bf16.mxu0 %v5018
        %5729 = vmatpush1.bf16.msra.mxu0 %v5017
        %5730 = vmatprep.subr.bf16.mxu0 %v5024
        %5731 = vmatpush1.bf16.msra.mxu0 %v5023
        %5732 = vmatprep.subr.bf16.mxu0 %v5030
        %5733 = vmatpush1.bf16.msra.mxu0 %v5029
        %5734 = vmatprep.subr.bf16.mxu0 %v5036
        %5735 = vmatpush1.bf16.msra.mxu0 %v5035
        %5736 = vmatprep.subr.bf16.mxu0 %v5042
        %5737 = vmatpush1.bf16.msra.mxu0 %v5041
        %5738 = vmatprep.subr.bf16.mxu0 %v5048
        %5739 = vmatpush1.bf16.msra.mxu0 %v5047
        %5740 = vmatprep.subr.bf16.mxu0 %v5054
        %5741 = vmatpush1.bf16.msra.mxu0 %v5053
        %5742 = vmatprep.subr.bf16.mxu0 %v5060
        %5743 = vmatpush1.bf16.msra.mxu0 %v5059
        %5744 = vmatprep.subr.bf16.mxu0 %v5066
        %5745 = vmatpush1.bf16.msra.mxu0 %v5065
        %5746 = vmatprep.subr.bf16.mxu0 %v5072
        %5747 = vmatpush1.bf16.msra.mxu0 %v5071
        %5748 = vmatprep.subr.bf16.mxu0 %v5078
        %5749 = vmatpush1.bf16.msra.mxu0 %v5077
        %5750 = vmatprep.subr.bf16.mxu0 %v5084
        %5751 = vmatpush1.bf16.msra.mxu0 %v5083
        %5752 = vmatprep.subr.bf16.mxu0 %v5090
        %5753 = vmatpush1.bf16.msra.mxu0 %v5089
        %5754 = vmatprep.subr.bf16.mxu0 %v5096
        %5755 = vmatpush1.bf16.msra.mxu0 %v5095
        %5756 = vmatprep.subr.bf16.mxu0 %v5102
        %5757 = vmatpush1.bf16.msra.mxu0 %v5101
        %5758 = vmatprep.mubr.bf16.mxu0 %v3374
        %5759 = vmatmul.mubr.bf16.gmra.mrb[0].mxu0 %v3373
        %v5760 = vpop.f32.mrb[0].mxu0
        %v5761 = vadd.f32 %v5718, %v5760
        %v5762 = vpop.f32.mrb[0].mxu0
        %v5763 = vadd.f32 %v5720, %v5762
        %v5764 = vpop.f32.mrb[0].mxu0
        %v5765 = vadd.f32 %v5722, %v5764
        %v5766 = vpop.f32.mrb[0].mxu0
        %v5767 = vadd.f32 %v5724, %v5766
        %5768 = vdwg.mxu0
        %5769 = vmatprep.subr.bf16.mxu0 %v5108
        %5770 = vmatpush1.bf16.msra.mxu0 %v5107
        %5771 = vmatprep.subr.bf16.mxu0 %v5114
        %5772 = vmatpush1.bf16.msra.mxu0 %v5113
        %5773 = vmatprep.subr.bf16.mxu0 %v5120
        %5774 = vmatpush1.bf16.msra.mxu0 %v5119
        %5775 = vmatprep.subr.bf16.mxu0 %v5126
        %5776 = vmatpush1.bf16.msra.mxu0 %v5125
        %5777 = vmatprep.subr.bf16.mxu0 %v5132
        %5778 = vmatpush1.bf16.msra.mxu0 %v5131
        %5779 = vmatprep.subr.bf16.mxu0 %v5138
        %5780 = vmatpush1.bf16.msra.mxu0 %v5137
        %5781 = vmatprep.subr.bf16.mxu0 %v5144
        %5782 = vmatpush1.bf16.msra.mxu0 %v5143
        %5783 = vmatprep.subr.bf16.mxu0 %v5150
        %5784 = vmatpush1.bf16.msra.mxu0 %v5149
        %5785 = vmatprep.subr.bf16.mxu0 %v5156
        %5786 = vmatpush1.bf16.msra.mxu0 %v5155
        %5787 = vmatprep.subr.bf16.mxu0 %v5162
        %5788 = vmatpush1.bf16.msra.mxu0 %v5161
        %5789 = vmatprep.subr.bf16.mxu0 %v5168
        %5790 = vmatpush1.bf16.msra.mxu0 %v5167
        %5791 = vmatprep.subr.bf16.mxu0 %v5174
        %5792 = vmatpush1.bf16.msra.mxu0 %v5173
        %5793 = vmatprep.subr.bf16.mxu0 %v5180
        %5794 = vmatpush1.bf16.msra.mxu0 %v5179
        %5795 = vmatprep.subr.bf16.mxu0 %v5186
        %5796 = vmatpush1.bf16.msra.mxu0 %v5185
        %5797 = vmatprep.subr.bf16.mxu0 %v5192
        %5798 = vmatpush1.bf16.msra.mxu0 %v5191
        %5799 = vmatprep.subr.bf16.mxu0 %v5198
        %5800 = vmatpush1.bf16.msra.mxu0 %v5197
        %5801 = vmatprep.mubr.bf16.mxu0 %v3376
        %5802 = vmatmul.mubr.bf16.gmra.mrb[0].mxu0 %v3375
        %v5803 = vpop.f32.mrb[0].mxu0
        %v5804 = vadd.f32 %v5761, %v5803
        %v5805 = vpop.f32.mrb[0].mxu0
        %v5806 = vadd.f32 %v5763, %v5805
        %v5807 = vpop.f32.mrb[0].mxu0
        %v5808 = vadd.f32 %v5765, %v5807
        %v5809 = vpop.f32.mrb[0].mxu0
        %v5810 = vadd.f32 %v5767, %v5809
        %5811 = vdwg.mxu0
        %5812 = vmatprep.subr.bf16.mxu0 %v5204
        %5813 = vmatpush1.bf16.msra.mxu0 %v5203
        %5814 = vmatprep.subr.bf16.mxu0 %v5210
        %5815 = vmatpush1.bf16.msra.mxu0 %v5209
        %5816 = vmatprep.subr.bf16.mxu0 %v5216
        %5817 = vmatpush1.bf16.msra.mxu0 %v5215
        %5818 = vmatprep.subr.bf16.mxu0 %v5222
        %5819 = vmatpush1.bf16.msra.mxu0 %v5221
        %5820 = vmatprep.subr.bf16.mxu0 %v5228
        %5821 = vmatpush1.bf16.msra.mxu0 %v5227
        %5822 = vmatprep.subr.bf16.mxu0 %v5234
        %5823 = vmatpush1.bf16.msra.mxu0 %v5233
        %5824 = vmatprep.subr.bf16.mxu0 %v5240
        %5825 = vmatpush1.bf16.msra.mxu0 %v5239
        %5826 = vmatprep.subr.bf16.mxu0 %v5246
        %5827 = vmatpush1.bf16.msra.mxu0 %v5245
        %5828 = vmatprep.subr.bf16.mxu0 %v5252
        %5829 = vmatpush1.bf16.msra.mxu0 %v5251
        %5830 = vmatprep.subr.bf16.mxu0 %v5258
        %5831 = vmatpush1.bf16.msra.mxu0 %v5257
        %5832 = vmatprep.subr.bf16.mxu0 %v5264
        %5833 = vmatpush1.bf16.msra.mxu0 %v5263
        %5834 = vmatprep.subr.bf16.mxu0 %v5270
        %5835 = vmatpush1.bf16.msra.mxu0 %v5269
        %5836 = vmatprep.subr.bf16.mxu0 %v5276
        %5837 = vmatpush1.bf16.msra.mxu0 %v5275
        %5838 = vmatprep.subr.bf16.mxu0 %v5282
        %5839 = vmatpush1.bf16.msra.mxu0 %v5281
        %5840 = vmatprep.subr.bf16.mxu0 %v5288
        %5841 = vmatpush1.bf16.msra.mxu0 %v5287
        %5842 = vmatprep.subr.bf16.mxu0 %v5294
        %5843 = vmatpush1.bf16.msra.mxu0 %v5293
        %5844 = vmatprep.mubr.bf16.mxu0 %v3378
        %5845 = vmatmul.mubr.bf16.gmra.mrb[0].mxu0 %v3377
        %v5846 = vpop.f32.mrb[0].mxu0
        %v5847 = vadd.f32 %v5804, %v5846
        %v5848 = vpop.f32.mrb[0].mxu0
        %v5849 = vadd.f32 %v5806, %v5848
        %v5850 = vpop.f32.mrb[0].mxu0
        %v5851 = vadd.f32 %v5808, %v5850
        %v5852 = vpop.f32.mrb[0].mxu0
        %v5853 = vadd.f32 %v5810, %v5852
        %5854 = vdwg.mxu0
        %5855 = vmatprep.subr.bf16.mxu0 %v4918
        %5856 = vmatpush1.bf16.msra.mxu0 %v4917
        %5857 = vmatprep.subr.bf16.mxu0 %v4924
        %5858 = vmatpush1.bf16.msra.mxu0 %v4923
        %5859 = vmatprep.subr.bf16.mxu0 %v4930
        %5860 = vmatpush1.bf16.msra.mxu0 %v4929
        %5861 = vmatprep.subr.bf16.mxu0 %v4936
        %5862 = vmatpush1.bf16.msra.mxu0 %v4935
        %5863 = vmatprep.subr.bf16.mxu0 %v4942
        %5864 = vmatpush1.bf16.msra.mxu0 %v4941
        %5865 = vmatprep.subr.bf16.mxu0 %v4948
        %5866 = vmatpush1.bf16.msra.mxu0 %v4947
        %5867 = vmatprep.subr.bf16.mxu0 %v4954
        %5868 = vmatpush1.bf16.msra.mxu0 %v4953
        %5869 = vmatprep.subr.bf16.mxu0 %v4960
        %5870 = vmatpush1.bf16.msra.mxu0 %v4959
        %5871 = vmatprep.subr.bf16.mxu0 %v4966
        %5872 = vmatpush1.bf16.msra.mxu0 %v4965
        %5873 = vmatprep.subr.bf16.mxu0 %v4972
        %5874 = vmatpush1.bf16.msra.mxu0 %v4971
        %5875 = vmatprep.subr.bf16.mxu0 %v4978
        %5876 = vmatpush1.bf16.msra.mxu0 %v4977
        %5877 = vmatprep.subr.bf16.mxu0 %v4984
        %5878 = vmatpush1.bf16.msra.mxu0 %v4983
        %5879 = vmatprep.subr.bf16.mxu0 %v4990
        %5880 = vmatpush1.bf16.msra.mxu0 %v4989
        %5881 = vmatprep.subr.bf16.mxu0 %v4996
        %5882 = vmatpush1.bf16.msra.mxu0 %v4995
        %5883 = vmatprep.subr.bf16.mxu0 %v5002
        %5884 = vmatpush1.bf16.msra.mxu0 %v5001
        %5885 = vmatprep.subr.bf16.mxu0 %v5008
        %5886 = vmatpush1.bf16.msra.mxu0 %v5007
        %5887 = vmatprep.mubr.bf16.mxu0 %v3372
        %5888 = vmatmul.mubr.bf16.gmra.mrb[0].mxu0 %v3371
        %v5889 = vpop.f32.mrb[0].mxu0
        %v5890 = vadd.f32 0.0, %v5889
        %v5891 = vpop.f32.mrb[0].mxu0
        %v5892 = vadd.f32 0.0, %v5891
        %v5893 = vpop.f32.mrb[0].mxu0
        %v5894 = vadd.f32 0.0, %v5893
        %v5895 = vpop.f32.mrb[0].mxu0
        %v5896 = vadd.f32 0.0, %v5895
        %5897 = vdwg.mxu0
        %5898 = vmatprep.subr.bf16.mxu0 %v5014
        %5899 = vmatpush1.bf16.msra.mxu0 %v5013
        %5900 = vmatprep.subr.bf16.mxu0 %v5020
        %5901 = vmatpush1.bf16.msra.mxu0 %v5019
        %5902 = vmatprep.subr.bf16.mxu0 %v5026
        %5903 = vmatpush1.bf16.msra.mxu0 %v5025
        %5904 = vmatprep.subr.bf16.mxu0 %v5032
        %5905 = vmatpush1.bf16.msra.mxu0 %v5031
        %5906 = vmatprep.subr.bf16.mxu0 %v5038
        %5907 = vmatpush1.bf16.msra.mxu0 %v5037
        %5908 = vmatprep.subr.bf16.mxu0 %v5044
        %5909 = vmatpush1.bf16.msra.mxu0 %v5043
        %5910 = vmatprep.subr.bf16.mxu0 %v5050
        %5911 = vmatpush1.bf16.msra.mxu0 %v5049
        %5912 = vmatprep.subr.bf16.mxu0 %v5056
        %5913 = vmatpush1.bf16.msra.mxu0 %v5055
        %5914 = vmatprep.subr.bf16.mxu0 %v5062
        %5915 = vmatpush1.bf16.msra.mxu0 %v5061
        %5916 = vmatprep.subr.bf16.mxu0 %v5068
        %5917 = vmatpush1.bf16.msra.mxu0 %v5067
        %5918 = vmatprep.subr.bf16.mxu0 %v5074
        %5919 = vmatpush1.bf16.msra.mxu0 %v5073
        %5920 = vmatprep.subr.bf16.mxu0 %v5080
        %5921 = vmatpush1.bf16.msra.mxu0 %v5079
        %5922 = vmatprep.subr.bf16.mxu0 %v5086
        %5923 = vmatpush1.bf16.msra.mxu0 %v5085
        %5924 = vmatprep.subr.bf16.mxu0 %v5092
        %5925 = vmatpush1.bf16.msra.mxu0 %v5091
        %5926 = vmatprep.subr.bf16.mxu0 %v5098
        %5927 = vmatpush1.bf16.msra.mxu0 %v5097
        %5928 = vmatprep.subr.bf16.mxu0 %v5104
        %5929 = vmatpush1.bf16.msra.mxu0 %v5103
        %5930 = vmatprep.mubr.bf16.mxu0 %v3374
        %5931 = vmatmul.mubr.bf16.gmra.mrb[0].mxu0 %v3373
        %v5932 = vpop.f32.mrb[0].mxu0
        %v5933 = vadd.f32 %v5890, %v5932
        %v5934 = vpop.f32.mrb[0].mxu0
        %v5935 = vadd.f32 %v5892, %v5934
        %v5936 = vpop.f32.mrb[0].mxu0
        %v5937 = vadd.f32 %v5894, %v5936
        %v5938 = vpop.f32.mrb[0].mxu0
        %v5939 = vadd.f32 %v5896, %v5938
        %5940 = vdwg.mxu0
        %5941 = vmatprep.subr.bf16.mxu0 %v5110
        %5942 = vmatpush1.bf16.msra.mxu0 %v5109
        %5943 = vmatprep.subr.bf16.mxu0 %v5116
        %5944 = vmatpush1.bf16.msra.mxu0 %v5115
        %5945 = vmatprep.subr.bf16.mxu0 %v5122
        %5946 = vmatpush1.bf16.msra.mxu0 %v5121
        %5947 = vmatprep.subr.bf16.mxu0 %v5128
        %5948 = vmatpush1.bf16.msra.mxu0 %v5127
        %5949 = vmatprep.subr.bf16.mxu0 %v5134
        %5950 = vmatpush1.bf16.msra.mxu0 %v5133
        %5951 = vmatprep.subr.bf16.mxu0 %v5140
        %5952 = vmatpush1.bf16.msra.mxu0 %v5139
        %5953 = vmatprep.subr.bf16.mxu0 %v5146
        %5954 = vmatpush1.bf16.msra.mxu0 %v5145
        %5955 = vmatprep.subr.bf16.mxu0 %v5152
        %5956 = vmatpush1.bf16.msra.mxu0 %v5151
        %5957 = vmatprep.subr.bf16.mxu0 %v5158
        %5958 = vmatpush1.bf16.msra.mxu0 %v5157
        %5959 = vmatprep.subr.bf16.mxu0 %v5164
        %5960 = vmatpush1.bf16.msra.mxu0 %v5163
        %5961 = vmatprep.subr.bf16.mxu0 %v5170
        %5962 = vmatpush1.bf16.msra.mxu0 %v5169
        %5963 = vmatprep.subr.bf16.mxu0 %v5176
        %5964 = vmatpush1.bf16.msra.mxu0 %v5175
        %5965 = vmatprep.subr.bf16.mxu0 %v5182
        %5966 = vmatpush1.bf16.msra.mxu0 %v5181
        %5967 = vmatprep.subr.bf16.mxu0 %v5188
        %5968 = vmatpush1.bf16.msra.mxu0 %v5187
        %5969 = vmatprep.subr.bf16.mxu0 %v5194
        %5970 = vmatpush1.bf16.msra.mxu0 %v5193
        %5971 = vmatprep.subr.bf16.mxu0 %v5200
        %5972 = vmatpush1.bf16.msra.mxu0 %v5199
        %5973 = vmatprep.mubr.bf16.mxu0 %v3376
        %5974 = vmatmul.mubr.bf16.gmra.mrb[0].mxu0 %v3375
        %v5975 = vpop.f32.mrb[0].mxu0
        %v5976 = vadd.f32 %v5933, %v5975
        %v5977 = vpop.f32.mrb[0].mxu0
        %v5978 = vadd.f32 %v5935, %v5977
        %v5979 = vpop.f32.mrb[0].mxu0
        %v5980 = vadd.f32 %v5937, %v5979
        %v5981 = vpop.f32.mrb[0].mxu0
        %v5982 = vadd.f32 %v5939, %v5981
        %5983 = vdwg.mxu0
        %5984 = vmatprep.subr.bf16.mxu0 %v5206
        %5985 = vmatpush1.bf16.msra.mxu0 %v5205
        %5986 = vmatprep.subr.bf16.mxu0 %v5212
        %5987 = vmatpush1.bf16.msra.mxu0 %v5211
        %5988 = vmatprep.subr.bf16.mxu0 %v5218
        %5989 = vmatpush1.bf16.msra.mxu0 %v5217
        %5990 = vmatprep.subr.bf16.mxu0 %v5224
        %5991 = vmatpush1.bf16.msra.mxu0 %v5223
        %5992 = vmatprep.subr.bf16.mxu0 %v5230
        %5993 = vmatpush1.bf16.msra.mxu0 %v5229
        %5994 = vmatprep.subr.bf16.mxu0 %v5236
        %5995 = vmatpush1.bf16.msra.mxu0 %v5235
        %5996 = vmatprep.subr.bf16.mxu0 %v5242
        %5997 = vmatpush1.bf16.msra.mxu0 %v5241
        %5998 = vmatprep.subr.bf16.mxu0 %v5248
        %5999 = vmatpush1.bf16.msra.mxu0 %v5247
        %6000 = vmatprep.subr.bf16.mxu0 %v5254
        %6001 = vmatpush1.bf16.msra.mxu0 %v5253
        %6002 = vmatprep.subr.bf16.mxu0 %v5260
        %6003 = vmatpush1.bf16.msra.mxu0 %v5259
        %6004 = vmatprep.subr.bf16.mxu0 %v5266
        %6005 = vmatpush1.bf16.msra.mxu0 %v5265
        %6006 = vmatprep.subr.bf16.mxu0 %v5272
        %6007 = vmatpush1.bf16.msra.mxu0 %v5271
        %6008 = vmatprep.subr.bf16.mxu0 %v5278
        %6009 = vmatpush1.bf16.msra.mxu0 %v5277
        %6010 = vmatprep.subr.bf16.mxu0 %v5284
        %6011 = vmatpush1.bf16.msra.mxu0 %v5283
        %6012 = vmatprep.subr.bf16.mxu0 %v5290
        %6013 = vmatpush1.bf16.msra.mxu0 %v5289
        %6014 = vmatprep.subr.bf16.mxu0 %v5296
        %6015 = vmatpush1.bf16.msra.mxu0 %v5295
        %6016 = vmatprep.mubr.bf16.mxu0 %v3378
        %6017 = vmatmul.mubr.bf16.gmra.mrb[0].mxu0 %v3377
        %v6018 = vpop.f32.mrb[0].mxu0
        %v6019 = vadd.f32 %v5976, %v6018
        %v6020 = vpop.f32.mrb[0].mxu0
        %v6021 = vadd.f32 %v5978, %v6020
        %v6022 = vpop.f32.mrb[0].mxu0
        %v6023 = vadd.f32 %v5980, %v6022
        %v6024 = vpop.f32.mrb[0].mxu0
        %v6025 = vadd.f32 %v5982, %v6024
        %6026 = vdwg.mxu0
        %6027 = vmatprep.subr.bf16.mxu0 %v4920
        %6028 = vmatpush1.bf16.msra.mxu0 %v4919
        %6029 = vmatprep.subr.bf16.mxu0 %v4926
        %6030 = vmatpush1.bf16.msra.mxu0 %v4925
        %6031 = vmatprep.subr.bf16.mxu0 %v4932
        %6032 = vmatpush1.bf16.msra.mxu0 %v4931
        %6033 = vmatprep.subr.bf16.mxu0 %v4938
        %6034 = vmatpush1.bf16.msra.mxu0 %v4937
        %6035 = vmatprep.subr.bf16.mxu0 %v4944
        %6036 = vmatpush1.bf16.msra.mxu0 %v4943
        %6037 = vmatprep.subr.bf16.mxu0 %v4950
        %6038 = vmatpush1.bf16.msra.mxu0 %v4949
        %6039 = vmatprep.subr.bf16.mxu0 %v4956
        %6040 = vmatpush1.bf16.msra.mxu0 %v4955
        %6041 = vmatprep.subr.bf16.mxu0 %v4962
        %6042 = vmatpush1.bf16.msra.mxu0 %v4961
        %6043 = vmatprep.subr.bf16.mxu0 %v4968
        %6044 = vmatpush1.bf16.msra.mxu0 %v4967
        %6045 = vmatprep.subr.bf16.mxu0 %v4974
        %6046 = vmatpush1.bf16.msra.mxu0 %v4973
        %6047 = vmatprep.subr.bf16.mxu0 %v4980
        %6048 = vmatpush1.bf16.msra.mxu0 %v4979
        %6049 = vmatprep.subr.bf16.mxu0 %v4986
        %6050 = vmatpush1.bf16.msra.mxu0 %v4985
        %6051 = vmatprep.subr.bf16.mxu0 %v4992
        %6052 = vmatpush1.bf16.msra.mxu0 %v4991
        %6053 = vmatprep.subr.bf16.mxu0 %v4998
        %6054 = vmatpush1.bf16.msra.mxu0 %v4997
        %6055 = vmatprep.subr.bf16.mxu0 %v5004
        %6056 = vmatpush1.bf16.msra.mxu0 %v5003
        %6057 = vmatprep.subr.bf16.mxu0 %v5010
        %6058 = vmatpush1.bf16.msra.mxu0 %v5009
        %6059 = vmatprep.mubr.bf16.mxu0 %v3372
        %6060 = vmatmul.mubr.bf16.gmra.mrb[0].mxu0 %v3371
        %v6061 = vpop.f32.mrb[0].mxu0
        %v6062 = vadd.f32 0.0, %v6061
        %v6063 = vpop.f32.mrb[0].mxu0
        %v6064 = vadd.f32 0.0, %v6063
        %v6065 = vpop.f32.mrb[0].mxu0
        %v6066 = vadd.f32 0.0, %v6065
        %v6067 = vpop.f32.mrb[0].mxu0
        %v6068 = vadd.f32 0.0, %v6067
        %6069 = vdwg.mxu0
        %6070 = vmatprep.subr.bf16.mxu0 %v5016
        %6071 = vmatpush1.bf16.msra.mxu0 %v5015
        %6072 = vmatprep.subr.bf16.mxu0 %v5022
        %6073 = vmatpush1.bf16.msra.mxu0 %v5021
        %6074 = vmatprep.subr.bf16.mxu0 %v5028
        %6075 = vmatpush1.bf16.msra.mxu0 %v5027
        %6076 = vmatprep.subr.bf16.mxu0 %v5034
        %6077 = vmatpush1.bf16.msra.mxu0 %v5033
        %6078 = vmatprep.subr.bf16.mxu0 %v5040
        %6079 = vmatpush1.bf16.msra.mxu0 %v5039
        %6080 = vmatprep.subr.bf16.mxu0 %v5046
        %6081 = vmatpush1.bf16.msra.mxu0 %v5045
        %6082 = vmatprep.subr.bf16.mxu0 %v5052
        %6083 = vmatpush1.bf16.msra.mxu0 %v5051
        %6084 = vmatprep.subr.bf16.mxu0 %v5058
        %6085 = vmatpush1.bf16.msra.mxu0 %v5057
        %6086 = vmatprep.subr.bf16.mxu0 %v5064
        %6087 = vmatpush1.bf16.msra.mxu0 %v5063
        %6088 = vmatprep.subr.bf16.mxu0 %v5070
        %6089 = vmatpush1.bf16.msra.mxu0 %v5069
        %6090 = vmatprep.subr.bf16.mxu0 %v5076
        %6091 = vmatpush1.bf16.msra.mxu0 %v5075
        %6092 = vmatprep.subr.bf16.mxu0 %v5082
        %6093 = vmatpush1.bf16.msra.mxu0 %v5081
        %6094 = vmatprep.subr.bf16.mxu0 %v5088
        %6095 = vmatpush1.bf16.msra.mxu0 %v5087
        %6096 = vmatprep.subr.bf16.mxu0 %v5094
        %6097 = vmatpush1.bf16.msra.mxu0 %v5093
        %6098 = vmatprep.subr.bf16.mxu0 %v5100
        %6099 = vmatpush1.bf16.msra.mxu0 %v5099
        %6100 = vmatprep.subr.bf16.mxu0 %v5106
        %6101 = vmatpush1.bf16.msra.mxu0 %v5105
        %6102 = vmatprep.mubr.bf16.mxu0 %v3374
        %6103 = vmatmul.mubr.bf16.gmra.mrb[0].mxu0 %v3373
        %v6104 = vpop.f32.mrb[0].mxu0
        %v6105 = vadd.f32 %v6062, %v6104
        %v6106 = vpop.f32.mrb[0].mxu0
        %v6107 = vadd.f32 %v6064, %v6106
        %v6108 = vpop.f32.mrb[0].mxu0
        %v6109 = vadd.f32 %v6066, %v6108
        %v6110 = vpop.f32.mrb[0].mxu0
        %v6111 = vadd.f32 %v6068, %v6110
        %6112 = vdwg.mxu0
        %6113 = vmatprep.subr.bf16.mxu0 %v5112
        %6114 = vmatpush1.bf16.msra.mxu0 %v5111
        %6115 = vmatprep.subr.bf16.mxu0 %v5118
        %6116 = vmatpush1.bf16.msra.mxu0 %v5117
        %6117 = vmatprep.subr.bf16.mxu0 %v5124
        %6118 = vmatpush1.bf16.msra.mxu0 %v5123
        %6119 = vmatprep.subr.bf16.mxu0 %v5130
        %6120 = vmatpush1.bf16.msra.mxu0 %v5129
        %6121 = vmatprep.subr.bf16.mxu0 %v5136
        %6122 = vmatpush1.bf16.msra.mxu0 %v5135
        %6123 = vmatprep.subr.bf16.mxu0 %v5142
        %6124 = vmatpush1.bf16.msra.mxu0 %v5141
        %6125 = vmatprep.subr.bf16.mxu0 %v5148
        %6126 = vmatpush1.bf16.msra.mxu0 %v5147
        %6127 = vmatprep.subr.bf16.mxu0 %v5154
        %6128 = vmatpush1.bf16.msra.mxu0 %v5153
        %6129 = vmatprep.subr.bf16.mxu0 %v5160
        %6130 = vmatpush1.bf16.msra.mxu0 %v5159
        %6131 = vmatprep.subr.bf16.mxu0 %v5166
        %6132 = vmatpush1.bf16.msra.mxu0 %v5165
        %6133 = vmatprep.subr.bf16.mxu0 %v5172
        %6134 = vmatpush1.bf16.msra.mxu0 %v5171
        %6135 = vmatprep.subr.bf16.mxu0 %v5178
        %6136 = vmatpush1.bf16.msra.mxu0 %v5177
        %6137 = vmatprep.subr.bf16.mxu0 %v5184
        %6138 = vmatpush1.bf16.msra.mxu0 %v5183
        %6139 = vmatprep.subr.bf16.mxu0 %v5190
        %6140 = vmatpush1.bf16.msra.mxu0 %v5189
        %6141 = vmatprep.subr.bf16.mxu0 %v5196
        %6142 = vmatpush1.bf16.msra.mxu0 %v5195
        %6143 = vmatprep.subr.bf16.mxu0 %v5202
        %6144 = vmatpush1.bf16.msra.mxu0 %v5201
        %6145 = vmatprep.mubr.bf16.mxu0 %v3376
        %6146 = vmatmul.mubr.bf16.gmra.mrb[0].mxu0 %v3375
        %v6147 = vpop.f32.mrb[0].mxu0
        %v6148 = vadd.f32 %v6105, %v6147
        %v6149 = vpop.f32.mrb[0].mxu0
        %v6150 = vadd.f32 %v6107, %v6149
        %v6151 = vpop.f32.mrb[0].mxu0
        %v6152 = vadd.f32 %v6109, %v6151
        %v6153 = vpop.f32.mrb[0].mxu0
        %v6154 = vadd.f32 %v6111, %v6153
        %6155 = vdwg.mxu0
        %6156 = vmatprep.subr.bf16.mxu0 %v5208
        %6157 = vmatpush1.bf16.msra.mxu0 %v5207
        %6158 = vmatprep.subr.bf16.mxu0 %v5214
        %6159 = vmatpush1.bf16.msra.mxu0 %v5213
        %6160 = vmatprep.subr.bf16.mxu0 %v5220
        %6161 = vmatpush1.bf16.msra.mxu0 %v5219
        %6162 = vmatprep.subr.bf16.mxu0 %v5226
        %6163 = vmatpush1.bf16.msra.mxu0 %v5225
        %6164 = vmatprep.subr.bf16.mxu0 %v5232
        %6165 = vmatpush1.bf16.msra.mxu0 %v5231
        %6166 = vmatprep.subr.bf16.mxu0 %v5238
        %6167 = vmatpush1.bf16.msra.mxu0 %v5237
        %6168 = vmatprep.subr.bf16.mxu0 %v5244
        %6169 = vmatpush1.bf16.msra.mxu0 %v5243
        %6170 = vmatprep.subr.bf16.mxu0 %v5250
        %6171 = vmatpush1.bf16.msra.mxu0 %v5249
        %6172 = vmatprep.subr.bf16.mxu0 %v5256
        %6173 = vmatpush1.bf16.msra.mxu0 %v5255
        %6174 = vmatprep.subr.bf16.mxu0 %v5262
        %6175 = vmatpush1.bf16.msra.mxu0 %v5261
        %6176 = vmatprep.subr.bf16.mxu0 %v5268
        %6177 = vmatpush1.bf16.msra.mxu0 %v5267
        %6178 = vmatprep.subr.bf16.mxu0 %v5274
        %6179 = vmatpush1.bf16.msra.mxu0 %v5273
        %6180 = vmatprep.subr.bf16.mxu0 %v5280
        %6181 = vmatpush1.bf16.msra.mxu0 %v5279
        %6182 = vmatprep.subr.bf16.mxu0 %v5286
        %6183 = vmatpush1.bf16.msra.mxu0 %v5285
        %6184 = vmatprep.subr.bf16.mxu0 %v5292
        %6185 = vmatpush1.bf16.msra.mxu0 %v5291
        %6186 = vmatprep.subr.bf16.mxu0 %v5298
        %6187 = vmatpush1.bf16.msra.mxu0 %v5297
        %6188 = vmatprep.mubr.bf16.mxu0 %v3378
        %6189 = vmatmul.mubr.bf16.gmra.mrb[0].mxu0 %v3377
        %v6190 = vpop.f32.mrb[0].mxu0
        %v6191 = vadd.f32 %v6148, %v6190
        %v6192 = vpop.f32.mrb[0].mxu0
        %v6193 = vadd.f32 %v6150, %v6192
        %v6194 = vpop.f32.mrb[0].mxu0
        %v6195 = vadd.f32 %v6152, %v6194
        %v6196 = vpop.f32.mrb[0].mxu0
        %v6197 = vadd.f32 %v6154, %v6196
        %6198 = vdwg.mxu0
        %v6199 = vadd.f32 %v3359, %v5847
        %v6200 = vadd.f32 %v3360, %v5849
        %v6201 = vadd.f32 %v3361, %v6019
        %v6202 = vadd.f32 %v3362, %v6021
        %v6203 = vadd.f32 %v3363, %v6191
        %v6204 = vadd.f32 %v3364, %v6193
        %v6205 = vadd.f32 %v3365, %v5851
        %v6206 = vadd.f32 %v3366, %v5853
        %v6207 = vadd.f32 %v3367, %v6023
        %v6208 = vadd.f32 %v3368, %v6025
        %v6209 = vadd.f32 %v3369, %v6195
        %v6210 = vadd.f32 %v3370, %v6197
        %6211 = vst [vmem:[#allocation2] sm:$0xff] %v6199
        %6212 = vst [vmem:[#allocation2 + $0x8] sm:$0xff] %v6200
        %6213 = vst [vmem:[#allocation2 + $0x10] sm:$0xff] %v6201
        %6214 = vst [vmem:[#allocation2 + $0x18] sm:$0xff] %v6202
        %6215 = vst [vmem:[#allocation2 + $0x20] sm:$0xff] %v6203
        %6216 = vst [vmem:[#allocation2 + $0x28] sm:$0xff] %v6204
        %6217 = vst [vmem:[#allocation2 + $0x30] sm:$0xff] %v6205
        %6218 = vst [vmem:[#allocation2 + $0x38] sm:$0xff] %v6206
        %6219 = vst [vmem:[#allocation2 + $0x40] sm:$0xff] %v6207
        %6220 = vst [vmem:[#allocation2 + $0x48] sm:$0xff] %v6208
        %6221 = vst [vmem:[#allocation2 + $0x50] sm:$0xff] %v6209
        %6222 = vst [vmem:[#allocation2 + $0x58] sm:$0xff] %v6210
        %p6223 = scmp.eq.s32.totalorder %s29, 2
        // Predicated region
        $region65: #{tpu_custom_call.1} parent=39 // pred_check
          %p6224 = pneg %p6223
        $region66: #{tpu_custom_call.1} parent=39 // pred_check_branch
          %6226 = sbr.rel (%p6224) target = $region68
        $region67: #{tpu_custom_call.1} parent=39 // pred_region
          %v6227 = vld [vmem:[#allocation2] sm:$0xff]
          %v6228 = vld [vmem:[#allocation2 + $0x8] sm:$0xff]
          %v6229 = vld [vmem:[#allocation2 + $0x10] sm:$0xff]
          %v6230 = vld [vmem:[#allocation2 + $0x18] sm:$0xff]
          %v6231 = vld [vmem:[#allocation2 + $0x20] sm:$0xff]
          %v6232 = vld [vmem:[#allocation2 + $0x28] sm:$0xff]
          %v6233 = vld [vmem:[#allocation2 + $0x30] sm:$0xff]
          %v6234 = vld [vmem:[#allocation2 + $0x38] sm:$0xff]
          %v6235 = vld [vmem:[#allocation2 + $0x40] sm:$0xff]
          %v6236 = vld [vmem:[#allocation2 + $0x48] sm:$0xff]
          %v6237 = vld [vmem:[#allocation2 + $0x50] sm:$0xff]
          %v6238 = vld [vmem:[#allocation2 + $0x58] sm:$0xff]
          %v6239 = vld [vmem:[#allocation11] sm:$0x3f]
          %v6241 = vlaneseq
          %v6242 = vshrl.u32 %v6241, 7
          %v6243 = vsub.s32 0, %v6242
          %v6244 = vrot.slane %v6239, %v6243
          %v6245 = vlaneseq
          %v6246 = vshrl.u32 %v6245, 7
          %v6247 = vsub.s32 1, %v6246
          %v6248 = vrot.slane %v6239, %v6247
          %v6249 = vlaneseq
          %v6250 = vshrl.u32 %v6249, 7
          %v6251 = vsub.s32 2, %v6250
          %v6252 = vrot.slane %v6239, %v6251
          %v6253 = vlaneseq
          %v6254 = vshrl.u32 %v6253, 7
          %v6255 = vsub.s32 3, %v6254
          %v6256 = vrot.slane %v6239, %v6255
          %v6257 = vlaneseq
          %v6258 = vshrl.u32 %v6257, 7
          %v6259 = vsub.s32 4, %v6258
          %v6260 = vrot.slane %v6239, %v6259
          %v6261 = vlaneseq
          %v6262 = vshrl.u32 %v6261, 7
          %v6263 = vsub.s32 5, %v6262
          %v6264 = vrot.slane %v6239, %v6263
          %v6271 = vadd.f32 %v6227, %v6244
          %v6272 = vadd.f32 %v6228, %v6248
          %v6273 = vadd.f32 %v6229, %v6252
          %v6274 = vadd.f32 %v6230, %v6256
          %v6275 = vadd.f32 %v6231, %v6260
          %v6276 = vadd.f32 %v6232, %v6264
          %v6277 = vadd.f32 %v6233, %v6244
          %v6278 = vadd.f32 %v6234, %v6248
          %v6279 = vadd.f32 %v6235, %v6252
          %v6280 = vadd.f32 %v6236, %v6256
          %v6281 = vadd.f32 %v6237, %v6260
          %v6282 = vadd.f32 %v6238, %v6264
          %6283 = vst [vmem:[#allocation12] sm:$0xff] %v6271
          %6284 = vst [vmem:[#allocation12 + $0x8] sm:$0xff] %v6272
          %6285 = vst [vmem:[#allocation12 + $0x10] sm:$0xff] %v6273
          %6286 = vst [vmem:[#allocation12 + $0x18] sm:$0xff] %v6274
          %6287 = vst [vmem:[#allocation12 + $0x20] sm:$0xff] %v6275
          %6288 = vst [vmem:[#allocation12 + $0x28] sm:$0xff] %v6276
          %6289 = vst [vmem:[#allocation12 + $0x30] sm:$0xff] %v6277
          %6290 = vst [vmem:[#allocation12 + $0x38] sm:$0xff] %v6278
          %6291 = vst [vmem:[#allocation12 + $0x40] sm:$0xff] %v6279
          %6292 = vst [vmem:[#allocation12 + $0x48] sm:$0xff] %v6280
          %6293 = vst [vmem:[#allocation12 + $0x50] sm:$0xff] %v6281
          %6294 = vst [vmem:[#allocation12 + $0x58] sm:$0xff] %v6282
        $region68: #{tpu_custom_call.1} parent=39 // pred_fallthru
          _
        // Predicated region
        $region69: #{tpu_custom_call.1} parent=39 // pred_check
          %p6295 = pneg %p179
        $region70: #{tpu_custom_call.1} parent=39 // pred_check_branch
          %6297 = sbr.rel (%p6295) target = $region72
        $region71: #{tpu_custom_call.1} parent=39 // pred_region
          %s6298 = smul.u32 2, %s28
          %s6300 = ssub.s32 1536, 1536
          %6301 = vsyncadd [#allocation5], %s6300
          %s6302 = smul.addr %s6298, 6
          %s6303 = smul.addr %s6302, 128
          %s6304 = scalar_lea.hbm %s5, %s6303
          %s6305 = sshll.u32 [#allocation12], 4
          %s6306 = int_to_ptr.vmem [resolvable:$true] %s6305
          %6311 = dma.vmem_to_hbm [thread:$0]  %s6306, 1536, %s6304, [#allocation5], 768, 768, 48
        $region72: #{tpu_custom_call.1} parent=39 // pred_fallthru
          _
        // Predicated region
        $region73: #{tpu_custom_call.1} parent=39 // pred_check
          %p6312 = pneg %p179
        $region74: #{tpu_custom_call.1} parent=39 // pred_check_branch
          %6314 = sbr.rel (%p6312) target = $region76
        $region75: #{tpu_custom_call.1} parent=39 // pred_region
          %6315 = dma.done [#allocation5], 1536
        $region76: #{tpu_custom_call.1} parent=39 // pred_fallthru
          _
      $region40: #{tpu_custom_call.1} parent=5 // pred_fallthru
        _
      %p6316 = scmp.le.s32.totalorder 2, %s19
      // Predicated region
      $region77: #{tpu_custom_call.1} parent=5 // pred_check
        %p6317 = pneg %p6316
      $region78: #{tpu_custom_call.1} parent=5 // pred_check_branch
        %6319 = sbr.rel (%p6317) target = $region80
      $region79: #{tpu_custom_call.1} parent=5 // pred_region
        %s6320 = ssub.s32 %s19, 2
      $region80: #{tpu_custom_call.1} parent=5 // pred_fallthru
        _
    $region6: #{tpu_custom_call.1} parent=1 // loop_footer
      %s23 = sadd.s32 1, %s19
    $region7: #{tpu_custom_call.1} parent=1 // loop_footer_branch
      %18 = sbr.rel target = $region3
    $region8: #{tpu_custom_call.1} parent=1 // loop_exit
      _
    %6321 = vsyncpa [#allocation4], 1
    %s6322 = scalar_lea.sflag [#allocation4], 1
    %6323 = vsyncpa %s6322, 1
    %6324 = vsyncpa [#allocation7], 1
    %s6325 = scalar_lea.sflag [#allocation7], 1
    %6326 = vsyncpa %s6325, 1
    %6327 = vsyncpa [#allocation10], 1
    %s6328 = scalar_lea.sflag [#allocation10], 1
    %6329 = vsyncpa %s6328, 1
    %6330 = vsyncpa [#allocation5], 1
    %s6331 = scalar_lea.sflag [#allocation5], 1
    %6332 = vsyncpa %s6331, 1

</llo_original>
